<compile_context>
chip_gen: v6e
topology: v6e:2x2x1
jax: 0.10.0
libtpu: 0.0.40
codegen_flags: <defaults>
</compile_context>

<pallas_src>
import math

import jax
import jax.numpy as jnp
from jax.experimental import pallas as pl
from jax.experimental.pallas import tpu as pltpu


# --------------------------------------------------------------------------
# Kernel
# --------------------------------------------------------------------------
def make_block_kernel(n_head: int):
    H = n_head

    def kernel(x_ref, mem_ref, cos_ref, sin_ref, bias_ref,
               g1_ref, g2_ref, g3_ref,
               wattn_ref, wpsa_ref, wq_ref, wkv_ref, wpca_ref,
               wfc1_ref, wfc2_ref, o_ref):
        x = x_ref[...]                      # (Bb, T, C)   f32
        mem = mem_ref[...]                  # (Bb, Tm, C)  f32
        Bb, T, C = x.shape
        Tm = mem.shape[1]
        hd = C // H
        half = hd // 2
        bf16 = jnp.bfloat16
        f32 = jnp.float32

        cos_full = cos_ref[...]             # (T, hd)  = [cos | cos]
        sin_signed = sin_ref[...]           # (T, hd)  = [-sin | sin]
        causal_bias = bias_ref[...]         # (T, T) additive (0 / -1e30)

        x2d = x.reshape(Bb * T, C)          # fold batch into matmul rows
        mem2d = mem.reshape(Bb * Tm, C)

        def layer_norm(h, g_ref):
            mu = jnp.mean(h, axis=-1, keepdims=True)
            var = jnp.mean((h - mu) ** 2, axis=-1, keepdims=True)
            return (h - mu) * jax.lax.rsqrt(var + 1e-5) * g_ref[...]

        def mm(a, w_ref):
            # bf16 MXU matmul with f32 accumulation (weights already bf16).
            return jnp.dot(a.astype(bf16), w_ref[...],
                           preferred_element_type=f32)

        def to_heads(t2d, Tn):
            # (Bb*Tn, C) -> (H*Bb, Tn, hd); 128-lane-aligned slices + leading
            # axis concat (tile placement only, no intra-vreg relayout).
            return jnp.concatenate(
                [t2d[:, h * hd:(h + 1) * hd].reshape(Bb, Tn, hd)
                 for h in range(H)], axis=0)

        def rope(t3):
            # Per-head channels were de-interleaved to [evens | odds] by the
            # wrapper, so interleaved RoPE == full-width FMA + lane roll.
            rolled = pltpu.roll(t3, shift=half, axis=2)   # [odds | evens]
            return t3 * cos_full + rolled * sin_signed

        def mha(q3, k3, v3, wproj_ref, bias, Tq):
            # q3: (H*Bb, Tq, hd); k3/v3: (H*Bb, Tk, hd); wproj_ref: (H, hd, C)
            s = jax.lax.dot_general(
                q3.astype(bf16), k3.astype(bf16),
                dimension_numbers=(((2,), (2,)), ((0,), (0,))),
                preferred_element_type=f32)                 # (H*Bb, Tq, Tk)
            if bias is not None:
                s = s + bias                                # broadcast over H*Bb
            m = jnp.max(s, axis=-1, keepdims=True)
            e = jnp.exp(s - m)
            p = e * pl.reciprocal(jnp.sum(e, axis=-1, keepdims=True),
                                  approx=True)
            ctx = jax.lax.dot_general(
                p.astype(bf16), v3.astype(bf16),
                dimension_numbers=(((2,), (1,)), ((0,), (0,))),
                preferred_element_type=f32)                 # (H*Bb, Tq, hd)
            # Per-head output projection accumulated into (Bb*Tq, C); no
            # (H, Tq, C) intermediate, no post-hoc reduction over heads.
            out = jnp.zeros((Bb * Tq, C), f32)
            for h in range(H):                              # small, static
                ctx_h = ctx[h * Bb:(h + 1) * Bb].reshape(Bb * Tq, hd)
                out = out + jnp.dot(ctx_h.astype(bf16), wproj_ref[h],
                                    preferred_element_type=f32)
            return out                                      # (Bb*Tq, C)

        # ---------- self attention (causal + RoPE; scale folded into W) ------
        h1 = layer_norm(x2d, g1_ref)
        qkv = mm(h1, wattn_ref)                             # (Bb*T, 3C)
        q3 = rope(to_heads(qkv[:, :C], T))
        k3 = rope(to_heads(qkv[:, C:2 * C], T))
        v3 = to_heads(qkv[:, 2 * C:], T)
        x1 = x2d + mha(q3, k3, v3, wpsa_ref, causal_bias, T)

        # ---------- cross attention (no mask, no RoPE) ------------------------
        h2 = layer_norm(x1, g2_ref)
        qc3 = to_heads(mm(h2, wq_ref), T)
        kvm = mm(mem2d, wkv_ref)                            # (Bb*Tm, 2C)
        kc3 = to_heads(kvm[:, :C], Tm)
        vc3 = to_heads(kvm[:, C:], Tm)
        x2 = x1 + mha(qc3, kc3, vc3, wpca_ref, None, T)

        # ---------- MLP (exact erf GELU to preserve module semantics) --------
        # TODO(synk): tanh-approx GELU would move to the (idle) EUP slot.
        h3 = layer_norm(x2, g3_ref)
        a = mm(h3, wfc1_ref)                                # (Bb*T, 4C)
        a = 0.5 * a * (1.0 + jax.lax.erf(a * 0.7071067811865476))
        x3 = x2 + mm(a, wfc2_ref)

        o_ref[...] = x3.reshape(Bb, T, C)

    return kernel


# --------------------------------------------------------------------------
# Wrapper
# --------------------------------------------------------------------------
def block_forward(x, mem, cos, sin, params, n_head, batch_block=None):
    """params are the PyTorch-layout f32 weights (Linear weights as (in, out)).
    Host-side one-time preprocessing (documented — any checkpoint loader must
    go through this wrapper):
      * q/k output columns of c_attn are de-interleaved PER HEAD (a common
        permutation of q and k leaves q.k^T invariant) so in-kernel RoPE is a
        full-width FMA + lane roll,
      * the softmax 1/sqrt(hd) scale is folded into the q columns of c_attn
        and into wq,
      * both attention output projections are reshaped to (H, hd, C),
      * cos/sin are expanded to lane-dense (T, hd) as [cos|cos] / [-sin|sin],
      * the causal additive bias is precomputed once,
      * all matmul weights are cast to bf16 (f32 accumulation in-kernel)."""
    g1, g2, g3, w_attn, w_psa, w_q, w_kv, w_pca, w_fc1, w_fc2 = params
    B, T, C = x.shape
    Tm = mem.shape[1]
    H = n_head
    hd = C // H
    half = hd // 2
    assert C % H == 0 and hd % 2 == 0
    assert cos.shape == (T, half) and sin.shape == (T, half), \
        "freqs_cis must be (T, head_dim // 2)"

    if batch_block is None:
        # Fold as much batch as possible into the matmul M dimension while
        # keeping >= 2 grid steps for v7x megacore when B allows it.
        # Production: target batch_block * T >= 256 (v6e/v7x) / >= 128 (v5e).
        divisors = [d for d in range(1, B + 1) if B % d == 0]
        cands = [d for d in divisors if B // d >= 2] or divisors
        batch_block = max(cands)
    assert B % batch_block == 0

    scale = 1.0 / math.sqrt(hd)

    # per-head de-interleave permutation: [0,2,...,hd-2, 1,3,...,hd-1]
    per_head = jnp.concatenate([jnp.arange(0, hd, 2), jnp.arange(1, hd, 2)])
    perm = (jnp.arange(H)[:, None] * hd + per_head[None, :]).reshape(C)
    w_attn_k = jnp.concatenate(
        [w_attn[:, :C][:, perm] * scale,   # q cols: de-interleave + fold scale
         w_attn[:, C:2 * C][:, perm],      # k cols: de-interleave
         w_attn[:, 2 * C:]],               # v cols untouched
        axis=1)

    # lane-dense RoPE tables and batch-invariant causal bias
    cos_full = jnp.concatenate([cos, cos], axis=1)          # (T, hd)
    sin_signed = jnp.concatenate([-sin, sin], axis=1)       # (T, hd)
    rows = jnp.arange(T)[:, None]
    cols = jnp.arange(T)[None, :]
    causal_bias = jnp.where(rows >= cols, 0.0, -1e30).astype(jnp.float32)

    bf16 = jnp.bfloat16
    weights = (
        g1, g2, g3,
        w_attn_k.astype(bf16),
        w_psa.reshape(H, hd, C).astype(bf16),
        (w_q * scale).astype(bf16),
        w_kv.astype(bf16),
        w_pca.reshape(H, hd, C).astype(bf16),
        w_fc1.astype(bf16),
        w_fc2.astype(bf16),
    )

    def const(shape):
        # constant across the grid: block index never changes -> no re-fetch.
        return pl.BlockSpec(shape, lambda b: (0,) * len(shape))

    return pl.pallas_call(
        make_block_kernel(H),
        out_shape=jax.ShapeDtypeStruct((B, T, C), jnp.float32),
        grid=(B // batch_block,),
        in_specs=[
            pl.BlockSpec((batch_block, T, C), lambda b: (b, 0, 0)),   # x
            pl.BlockSpec((batch_block, Tm, C), lambda b: (b, 0, 0)),  # mem
            const((T, hd)),              # cos_full
            const((T, hd)),              # sin_signed
            const((T, T)),               # causal additive bias
            const((1, C)),               # ln1 gamma
            const((1, C)),               # ln2 gamma
            const((1, C)),               # ln3 gamma
            const((C, 3 * C)),           # c_attn (q/k de-interleaved, q scaled)
            const((H, hd, C)),           # self-attn proj, per-head
            const((C, C)),               # wq (cross, scaled)
            const((C, 2 * C)),           # wkv (cross)
            const((H, hd, C)),           # cross-attn proj, per-head
            const((C, 4 * C)),           # fc1
            const((4 * C, C)),           # fc2
        ],
        out_specs=pl.BlockSpec((batch_block, T, C), lambda b: (b, 0, 0)),
        compiler_params=pltpu.CompilerParams(
            dimension_semantics=("parallel",),
            # 48 MiB: safe on v7x (64 MiB physical), plenty on v5e/v6e.
            # Raise toward ~100 MiB on v6e at production tile sizes.
            vmem_limit_bytes=48 * 1024 * 1024),
    )(x, mem, cos_full, sin_signed, causal_bias, *weights)


# --------------------------------------------------------------------------
# Pure-JAX reference (mirrors the PyTorch forward exactly, f32 everywhere)
# --------------------------------------------------------------------------
def ref_block(x, mem, cos, sin, params, n_head):
    g1, g2, g3, w_attn, w_psa, w_q, w_kv, w_pca, w_fc1, w_fc2 = params
    B, T, C = x.shape
    Tm = mem.shape[1]
    H = n_head
    hd = C // H

    def ln(h, g):
        mu = h.mean(-1, keepdims=True)
        var = ((h - mu) ** 2).mean(-1, keepdims=True)
        return (h - mu) / jnp.sqrt(var + 1e-5) * g

    def rope4(t):  # t: (B, H, T, hd), interleaved complex pairs
        te, to = t[..., 0::2], t[..., 1::2]
        oe = te * cos - to * sin
        oo = te * sin + to * cos
        return jnp.stack([oe, oo], axis=-1).reshape(t.shape)

    def split_heads(t, tn):
        return t.reshape(B, tn, H, hd).transpose(0, 2, 1, 3)

    def merge_heads(t, tn):
        return t.transpose(0, 2, 1, 3).reshape(B, tn, C)

    def attn(q, k, v, causal):
        s = jnp.einsum('bhqd,bhkd->bhqk', q, k) / math.sqrt(hd)
        if causal:
            tq, tk = s.shape[-2:]
            m = jnp.tril(jnp.ones((tq, tk), bool))
            s = jnp.where(m, s, -jnp.inf)
        p = jax.nn.softmax(s, axis=-1)
        return jnp.einsum('bhqk,bhkd->bhqd', p, v)

    # self attention
    h1 = ln(x, g1)
    q, k, v = jnp.split(h1 @ w_attn, 3, axis=-1)
    q = rope4(split_heads(q, T))
    k = rope4(split_heads(k, T))
    v = split_heads(v, T)
    x1 = x + merge_heads(attn(q, k, v, True), T) @ w_psa
    # cross attention
    h2 = ln(x1, g2)
    qc = split_heads(h2 @ w_q, T)
    kc, vc = jnp.split(mem @ w_kv, 2, axis=-1)
    kc, vc = split_heads(kc, Tm), split_heads(vc, Tm)
    x2 = x1 + merge_heads(attn(qc, kc, vc, False), T) @ w_pca
    # mlp
    h3 = ln(x2, g3)
    a = h3 @ w_fc1
    a = 0.5 * a * (1.0 + jax.lax.erf(a / jnp.sqrt(2.0)))
    return x2 + a @ w_fc2


# --------------------------------------------------------------------------
# Parameter / input construction
# --------------------------------------------------------------------------
def xavier(key, shape):
    fan_in, fan_out = shape
    a = math.sqrt(6.0 / (fan_in + fan_out))
    return jax.random.uniform(key, shape, jnp.float32, -a, a)


if __name__ == "__main__":
    # small but lane-aligned config: head_dim = 128, C = 256
    # B=4 so the wrapper picks batch_block=2 -> grid of 2 parallel steps,
    # with batch folded into the matmul M dimension (M = 2*T per step).
    B, T, Tm, C, H = 4, 8, 16, 256, 2
    hd = C // H
    half = hd // 2

    key = jax.random.PRNGKey(0)
    keys = jax.random.split(key, 12)

    x = jax.random.normal(keys[0], (B, T, C), jnp.float32)
    mem = jax.random.normal(keys[1], (B, Tm, C), jnp.float32)

    # freqs_cis (standard RoPE frequencies), stored as cos/sin of shape (T, hd/2)
    inv_freq = 1.0 / (10000.0 ** (jnp.arange(half, dtype=jnp.float32) * 2.0 / hd))
    ang = jnp.outer(jnp.arange(T, dtype=jnp.float32), inv_freq)
    cos, sin = jnp.cos(ang), jnp.sin(ang)

    # deterministic parameter init (bias=False, LayerNorm weight = ones)
    g1 = jnp.ones((1, C), jnp.float32)
    g2 = jnp.ones((1, C), jnp.float32)
    g3 = jnp.ones((1, C), jnp.float32)
    w_attn = xavier(keys[2], (C, 3 * C))
    w_psa = xavier(keys[3], (C, C))
    w_q = xavier(keys[4], (C, C))
    w_kv = xavier(keys[5], (C, 2 * C))
    w_pca = xavier(keys[6], (C, C))
    w_fc1 = xavier(keys[7], (C, 4 * C))
    w_fc2 = xavier(keys[8], (4 * C, C))
    params = (g1, g2, g3, w_attn, w_psa, w_q, w_kv, w_pca, w_fc1, w_fc2)

    out = block_forward(x, mem, cos, sin, params, n_head=H)
    out = jax.block_until_ready(out)

    ref = ref_block(x, mem, cos, sin, params, n_head=H)
    err = jnp.max(jnp.abs(out - ref))
    assert out.shape == (B, T, C)
    # bf16 matmuls + approx reciprocal -> loosened (but still tight) tolerance
    assert jnp.allclose(out, ref, atol=1e-1, rtol=1e-1), f"max abs err {err}"

    print("KERNEL_OK")
</pallas_src>

<mosaic_0001>
module attributes {stable_mosaic.version = 11 : i64} {
  func.func @kernel(%arg0: i32, %arg1: memref<2x8x256xf32, #tpu.memory_space<vmem>>, %arg2: memref<2x16x256xf32, #tpu.memory_space<vmem>>, %arg3: memref<8x128xf32, #tpu.memory_space<vmem>>, %arg4: memref<8x128xf32, #tpu.memory_space<vmem>>, %arg5: memref<8x8xf32, #tpu.memory_space<vmem>>, %arg6: memref<1x256xf32, #tpu.memory_space<vmem>>, %arg7: memref<1x256xf32, #tpu.memory_space<vmem>>, %arg8: memref<1x256xf32, #tpu.memory_space<vmem>>, %arg9: memref<256x768xbf16, #tpu.memory_space<vmem>>, %arg10: memref<2x128x256xbf16, #tpu.memory_space<vmem>>, %arg11: memref<256x256xbf16, #tpu.memory_space<vmem>>, %arg12: memref<256x512xbf16, #tpu.memory_space<vmem>>, %arg13: memref<2x128x256xbf16, #tpu.memory_space<vmem>>, %arg14: memref<256x1024xbf16, #tpu.memory_space<vmem>>, %arg15: memref<1024x256xbf16, #tpu.memory_space<vmem>>, %arg16: memref<2x8x256xf32, #tpu.memory_space<vmem>>) attributes {dimension_semantics = [#tpu.dimension_semantics<parallel>], iteration_bounds = array<i64: 2>, scalar_prefetch = 0 : i64, scratch_operands = 0 : i64, tpu.core_type = #tpu.core_type<tc>, window_params = [{transform_indices = @transform_0, window_bounds = array<i64: 2, 8, 256>}, {transform_indices = @transform_1, window_bounds = array<i64: 2, 16, 256>}, {pipeline_mode = #tpu.pipeline_mode<synchronous>, transform_indices = @transform_2, window_bounds = array<i64: 8, 128>}, {pipeline_mode = #tpu.pipeline_mode<synchronous>, transform_indices = @transform_3, window_bounds = array<i64: 8, 128>}, {pipeline_mode = #tpu.pipeline_mode<synchronous>, transform_indices = @transform_4, window_bounds = array<i64: 8, 8>}, {pipeline_mode = #tpu.pipeline_mode<synchronous>, transform_indices = @transform_5, window_bounds = array<i64: 1, 256>}, {pipeline_mode = #tpu.pipeline_mode<synchronous>, transform_indices = @transform_6, window_bounds = array<i64: 1, 256>}, {pipeline_mode = #tpu.pipeline_mode<synchronous>, transform_indices = @transform_7, window_bounds = array<i64: 1, 256>}, {pipeline_mode = #tpu.pipeline_mode<synchronous>, transform_indices = @transform_8, window_bounds = array<i64: 256, 768>}, {pipeline_mode = #tpu.pipeline_mode<synchronous>, transform_indices = @transform_9, window_bounds = array<i64: 2, 128, 256>}, {pipeline_mode = #tpu.pipeline_mode<synchronous>, transform_indices = @transform_10, window_bounds = array<i64: 256, 256>}, {pipeline_mode = #tpu.pipeline_mode<synchronous>, transform_indices = @transform_11, window_bounds = array<i64: 256, 512>}, {pipeline_mode = #tpu.pipeline_mode<synchronous>, transform_indices = @transform_12, window_bounds = array<i64: 2, 128, 256>}, {pipeline_mode = #tpu.pipeline_mode<synchronous>, transform_indices = @transform_13, window_bounds = array<i64: 256, 1024>}, {pipeline_mode = #tpu.pipeline_mode<synchronous>, transform_indices = @transform_14, window_bounds = array<i64: 1024, 256>}, {transform_indices = @transform_15, window_bounds = array<i64: 2, 8, 256>}]} {
    %c0 = arith.constant 0 : index
    %c0_0 = arith.constant 0 : index
    %c0_1 = arith.constant 0 : index
    %0 = vector.load %arg1[%c0, %c0_0, %c0_1] : memref<2x8x256xf32, #tpu.memory_space<vmem>>, vector<2x8x256xf32>
    %c0_2 = arith.constant 0 : index
    %c0_3 = arith.constant 0 : index
    %c0_4 = arith.constant 0 : index
    %1 = vector.load %arg2[%c0_2, %c0_3, %c0_4] : memref<2x16x256xf32, #tpu.memory_space<vmem>>, vector<2x16x256xf32>
    %c0_5 = arith.constant 0 : index
    %c0_6 = arith.constant 0 : index
    %2 = vector.load %arg3[%c0_5, %c0_6] : memref<8x128xf32, #tpu.memory_space<vmem>>, vector<8x128xf32>
    %c0_7 = arith.constant 0 : index
    %c0_8 = arith.constant 0 : index
    %3 = vector.load %arg4[%c0_7, %c0_8] : memref<8x128xf32, #tpu.memory_space<vmem>>, vector<8x128xf32>
    %c0_9 = arith.constant 0 : index
    %c0_10 = arith.constant 0 : index
    %4 = vector.load %arg5[%c0_9, %c0_10] : memref<8x8xf32, #tpu.memory_space<vmem>>, vector<8x8xf32>
    %5 = vector.shape_cast %0 : vector<2x8x256xf32> to vector<16x256xf32>
    %6 = vector.shape_cast %1 : vector<2x16x256xf32> to vector<32x256xf32>
    %cst = arith.constant dense<0.000000e+00> : vector<16xf32>
    %7 = vector.multi_reduction <add>, %5, %cst [1] : vector<16x256xf32> to vector<16xf32>
    %8 = vector.shape_cast %7 : vector<16xf32> to vector<16x1xf32>
    %cst_11 = arith.constant 2.560000e+02 : f32
    %9 = vector.broadcast %cst_11 : f32 to vector<16x1xf32>
    %10 = arith.divf %8, %9 : vector<16x1xf32>
    %11 = vector.broadcast %10 : vector<16x1xf32> to vector<16x256xf32>
    %12 = arith.subf %5, %11 : vector<16x256xf32>
    %13 = arith.mulf %12, %12 : vector<16x256xf32>
    %cst_12 = arith.constant dense<0.000000e+00> : vector<16xf32>
    %14 = vector.multi_reduction <add>, %13, %cst_12 [1] : vector<16x256xf32> to vector<16xf32>
    %15 = vector.shape_cast %14 : vector<16xf32> to vector<16x1xf32>
    %cst_13 = arith.constant 2.560000e+02 : f32
    %16 = vector.broadcast %cst_13 : f32 to vector<16x1xf32>
    %17 = arith.divf %15, %16 : vector<16x1xf32>
    %18 = vector.broadcast %10 : vector<16x1xf32> to vector<16x256xf32>
    %19 = arith.subf %5, %18 : vector<16x256xf32>
    %cst_14 = arith.constant 9.99999974E-6 : f32
    %20 = vector.broadcast %cst_14 : f32 to vector<16x1xf32>
    %21 = arith.addf %17, %20 : vector<16x1xf32>
    %22 = math.rsqrt %21 : vector<16x1xf32>
    %23 = vector.broadcast %22 : vector<16x1xf32> to vector<16x256xf32>
    %24 = arith.mulf %19, %23 : vector<16x256xf32>
    %c0_15 = arith.constant 0 : index
    %c0_16 = arith.constant 0 : index
    %25 = vector.load %arg6[%c0_15, %c0_16] : memref<1x256xf32, #tpu.memory_space<vmem>>, vector<1x256xf32>
    %26 = vector.broadcast %25 : vector<1x256xf32> to vector<16x256xf32>
    %27 = arith.mulf %24, %26 : vector<16x256xf32>
    %28 = arith.truncf %27 : vector<16x256xf32> to vector<16x256xbf16>
    %c0_17 = arith.constant 0 : index
    %c0_18 = arith.constant 0 : index
    %29 = vector.load %arg9[%c0_17, %c0_18] : memref<256x768xbf16, #tpu.memory_space<vmem>>, vector<256x768xbf16>
    %cst_19 = arith.constant dense<0.000000e+00> : vector<16x768xf32>
    %30 = tpu.matmul %28, %29, %cst_19 {dimension_numbers = #tpu.dot_dimension_numbers<[1], [0], [0], [1], [0, 0, 1, 1], [], []>} : vector<16x256xbf16>, vector<256x768xbf16>, vector<16x768xf32> -> vector<16x768xf32>
    %31 = vector.extract_strided_slice %30 {offsets = [0, 0], sizes = [16, 256], strides = [1, 1]} : vector<16x768xf32> to vector<16x256xf32>
    %32 = vector.extract_strided_slice %31 {offsets = [0, 0], sizes = [16, 128], strides = [1, 1]} : vector<16x256xf32> to vector<16x128xf32>
    %33 = vector.shape_cast %32 : vector<16x128xf32> to vector<2x8x128xf32>
    %34 = vector.extract_strided_slice %31 {offsets = [0, 128], sizes = [16, 128], strides = [1, 1]} : vector<16x256xf32> to vector<16x128xf32>
    %35 = vector.shape_cast %34 : vector<16x128xf32> to vector<2x8x128xf32>
    %36 = tpu.concatenate %33, %35 in 0 : vector<2x8x128xf32>, vector<2x8x128xf32> -> vector<4x8x128xf32>
    %c64_i32 = arith.constant 64 : i32
    %37 = tpu.dynamic_rotate %36 by %c64_i32 dim 2 : vector<4x8x128xf32>, i32 -> vector<4x8x128xf32>
    %38 = vector.shape_cast %2 : vector<8x128xf32> to vector<1x8x128xf32>
    %39 = vector.broadcast %38 : vector<1x8x128xf32> to vector<4x8x128xf32>
    %40 = arith.mulf %36, %39 : vector<4x8x128xf32>
    %41 = vector.shape_cast %3 : vector<8x128xf32> to vector<1x8x128xf32>
    %42 = vector.broadcast %41 : vector<1x8x128xf32> to vector<4x8x128xf32>
    %43 = arith.mulf %37, %42 : vector<4x8x128xf32>
    %44 = arith.addf %40, %43 : vector<4x8x128xf32>
    %45 = vector.extract_strided_slice %30 {offsets = [0, 256], sizes = [16, 256], strides = [1, 1]} : vector<16x768xf32> to vector<16x256xf32>
    %46 = vector.extract_strided_slice %45 {offsets = [0, 0], sizes = [16, 128], strides = [1, 1]} : vector<16x256xf32> to vector<16x128xf32>
    %47 = vector.shape_cast %46 : vector<16x128xf32> to vector<2x8x128xf32>
    %48 = vector.extract_strided_slice %45 {offsets = [0, 128], sizes = [16, 128], strides = [1, 1]} : vector<16x256xf32> to vector<16x128xf32>
    %49 = vector.shape_cast %48 : vector<16x128xf32> to vector<2x8x128xf32>
    %50 = tpu.concatenate %47, %49 in 0 : vector<2x8x128xf32>, vector<2x8x128xf32> -> vector<4x8x128xf32>
    %c64_i32_20 = arith.constant 64 : i32
    %51 = tpu.dynamic_rotate %50 by %c64_i32_20 dim 2 : vector<4x8x128xf32>, i32 -> vector<4x8x128xf32>
    %52 = vector.shape_cast %2 : vector<8x128xf32> to vector<1x8x128xf32>
    %53 = vector.broadcast %52 : vector<1x8x128xf32> to vector<4x8x128xf32>
    %54 = arith.mulf %50, %53 : vector<4x8x128xf32>
    %55 = vector.shape_cast %3 : vector<8x128xf32> to vector<1x8x128xf32>
    %56 = vector.broadcast %55 : vector<1x8x128xf32> to vector<4x8x128xf32>
    %57 = arith.mulf %51, %56 : vector<4x8x128xf32>
    %58 = arith.addf %54, %57 : vector<4x8x128xf32>
    %59 = vector.extract_strided_slice %30 {offsets = [0, 512], sizes = [16, 256], strides = [1, 1]} : vector<16x768xf32> to vector<16x256xf32>
    %60 = vector.extract_strided_slice %59 {offsets = [0, 0], sizes = [16, 128], strides = [1, 1]} : vector<16x256xf32> to vector<16x128xf32>
    %61 = vector.shape_cast %60 : vector<16x128xf32> to vector<2x8x128xf32>
    %62 = vector.extract_strided_slice %59 {offsets = [0, 128], sizes = [16, 128], strides = [1, 1]} : vector<16x256xf32> to vector<16x128xf32>
    %63 = vector.shape_cast %62 : vector<16x128xf32> to vector<2x8x128xf32>
    %64 = tpu.concatenate %61, %63 in 0 : vector<2x8x128xf32>, vector<2x8x128xf32> -> vector<4x8x128xf32>
    %65 = arith.truncf %44 : vector<4x8x128xf32> to vector<4x8x128xbf16>
    %66 = arith.truncf %58 : vector<4x8x128xf32> to vector<4x8x128xbf16>
    %cst_21 = arith.constant dense<0.000000e+00> : vector<4x8x8xf32>
    %67 = tpu.matmul %65, %66, %cst_21 {dimension_numbers = #tpu.dot_dimension_numbers<[2], [2], [1], [1], [0, 0, 0, 1, 1, 1], [0], [0]>} : vector<4x8x128xbf16>, vector<4x8x128xbf16>, vector<4x8x8xf32> -> vector<4x8x8xf32>
    %68 = vector.shape_cast %4 : vector<8x8xf32> to vector<1x8x8xf32>
    %69 = vector.broadcast %68 : vector<1x8x8xf32> to vector<4x8x8xf32>
    %70 = arith.addf %67, %69 : vector<4x8x8xf32>
    %cst_22 = arith.constant dense<0xFF800000> : vector<4x8xf32>
    %71 = vector.multi_reduction <maximumf>, %70, %cst_22 [2] : vector<4x8x8xf32> to vector<4x8xf32>
    %72 = vector.shape_cast %71 : vector<4x8xf32> to vector<4x8x1xf32>
    %73 = vector.broadcast %72 : vector<4x8x1xf32> to vector<4x8x8xf32>
    %74 = arith.subf %70, %73 : vector<4x8x8xf32>
    %75 = math.exp %74 : vector<4x8x8xf32>
    %cst_23 = arith.constant dense<0.000000e+00> : vector<4x8xf32>
    %76 = vector.multi_reduction <add>, %75, %cst_23 [2] : vector<4x8x8xf32> to vector<4x8xf32>
    %77 = vector.shape_cast %76 : vector<4x8xf32> to vector<4x8x1xf32>
    %78 = tpu.reciprocal %77 {approx = true} : vector<4x8x1xf32> -> vector<4x8x1xf32>
    %79 = vector.broadcast %78 : vector<4x8x1xf32> to vector<4x8x8xf32>
    %80 = arith.mulf %75, %79 : vector<4x8x8xf32>
    %81 = arith.truncf %80 : vector<4x8x8xf32> to vector<4x8x8xbf16>
    %82 = arith.truncf %64 : vector<4x8x128xf32> to vector<4x8x128xbf16>
    %cst_24 = arith.constant dense<0.000000e+00> : vector<4x8x128xf32>
    %83 = tpu.matmul %81, %82, %cst_24 {dimension_numbers = #tpu.dot_dimension_numbers<[2], [1], [1], [2], [0, 0, 0, 1, 1, 2], [0], [0]>} : vector<4x8x8xbf16>, vector<4x8x128xbf16>, vector<4x8x128xf32> -> vector<4x8x128xf32>
    %cst_25 = arith.constant 0.000000e+00 : f32
    %84 = vector.broadcast %cst_25 : f32 to vector<16x256xf32>
    %85 = vector.extract_strided_slice %83 {offsets = [0, 0, 0], sizes = [2, 8, 128], strides = [1, 1, 1]} : vector<4x8x128xf32> to vector<2x8x128xf32>
    %86 = vector.shape_cast %85 : vector<2x8x128xf32> to vector<16x128xf32>
    %87 = arith.truncf %86 : vector<16x128xf32> to vector<16x128xbf16>
    %c0_26 = arith.constant 0 : index
    %c0_27 = arith.constant 0 : index
    %c0_28 = arith.constant 0 : index
    %88 = vector.load %arg10[%c0_26, %c0_27, %c0_28] : memref<2x128x256xbf16, #tpu.memory_space<vmem>>, vector<1x128x256xbf16>
    %89 = vector.shape_cast %88 : vector<1x128x256xbf16> to vector<128x256xbf16>
    %cst_29 = arith.constant dense<0.000000e+00> : vector<16x256xf32>
    %90 = tpu.matmul %87, %89, %cst_29 {dimension_numbers = #tpu.dot_dimension_numbers<[1], [0], [0], [1], [0, 0, 1, 1], [], []>} : vector<16x128xbf16>, vector<128x256xbf16>, vector<16x256xf32> -> vector<16x256xf32>
    %91 = arith.addf %84, %90 : vector<16x256xf32>
    %92 = vector.extract_strided_slice %83 {offsets = [2, 0, 0], sizes = [2, 8, 128], strides = [1, 1, 1]} : vector<4x8x128xf32> to vector<2x8x128xf32>
    %93 = vector.shape_cast %92 : vector<2x8x128xf32> to vector<16x128xf32>
    %94 = arith.truncf %93 : vector<16x128xf32> to vector<16x128xbf16>
    %c1 = arith.constant 1 : index
    %c0_30 = arith.constant 0 : index
    %c0_31 = arith.constant 0 : index
    %95 = vector.load %arg10[%c1, %c0_30, %c0_31] : memref<2x128x256xbf16, #tpu.memory_space<vmem>>, vector<1x128x256xbf16>
    %96 = vector.shape_cast %95 : vector<1x128x256xbf16> to vector<128x256xbf16>
    %cst_32 = arith.constant dense<0.000000e+00> : vector<16x256xf32>
    %97 = tpu.matmul %94, %96, %cst_32 {dimension_numbers = #tpu.dot_dimension_numbers<[1], [0], [0], [1], [0, 0, 1, 1], [], []>} : vector<16x128xbf16>, vector<128x256xbf16>, vector<16x256xf32> -> vector<16x256xf32>
    %98 = arith.addf %91, %97 : vector<16x256xf32>
    %99 = arith.addf %5, %98 : vector<16x256xf32>
    %cst_33 = arith.constant dense<0.000000e+00> : vector<16xf32>
    %100 = vector.multi_reduction <add>, %99, %cst_33 [1] : vector<16x256xf32> to vector<16xf32>
    %101 = vector.shape_cast %100 : vector<16xf32> to vector<16x1xf32>
    %cst_34 = arith.constant 2.560000e+02 : f32
    %102 = vector.broadcast %cst_34 : f32 to vector<16x1xf32>
    %103 = arith.divf %101, %102 : vector<16x1xf32>
    %104 = vector.broadcast %103 : vector<16x1xf32> to vector<16x256xf32>
    %105 = arith.subf %99, %104 : vector<16x256xf32>
    %106 = arith.mulf %105, %105 : vector<16x256xf32>
    %cst_35 = arith.constant dense<0.000000e+00> : vector<16xf32>
    %107 = vector.multi_reduction <add>, %106, %cst_35 [1] : vector<16x256xf32> to vector<16xf32>
    %108 = vector.shape_cast %107 : vector<16xf32> to vector<16x1xf32>
    %cst_36 = arith.constant 2.560000e+02 : f32
    %109 = vector.broadcast %cst_36 : f32 to vector<16x1xf32>
    %110 = arith.divf %108, %109 : vector<16x1xf32>
    %111 = vector.broadcast %103 : vector<16x1xf32> to vector<16x256xf32>
    %112 = arith.subf %99, %111 : vector<16x256xf32>
    %cst_37 = arith.constant 9.99999974E-6 : f32
    %113 = vector.broadcast %cst_37 : f32 to vector<16x1xf32>
    %114 = arith.addf %110, %113 : vector<16x1xf32>
    %115 = math.rsqrt %114 : vector<16x1xf32>
    %116 = vector.broadcast %115 : vector<16x1xf32> to vector<16x256xf32>
    %117 = arith.mulf %112, %116 : vector<16x256xf32>
    %c0_38 = arith.constant 0 : index
    %c0_39 = arith.constant 0 : index
    %118 = vector.load %arg7[%c0_38, %c0_39] : memref<1x256xf32, #tpu.memory_space<vmem>>, vector<1x256xf32>
    %119 = vector.broadcast %118 : vector<1x256xf32> to vector<16x256xf32>
    %120 = arith.mulf %117, %119 : vector<16x256xf32>
    %121 = arith.truncf %120 : vector<16x256xf32> to vector<16x256xbf16>
    %c0_40 = arith.constant 0 : index
    %c0_41 = arith.constant 0 : index
    %122 = vector.load %arg11[%c0_40, %c0_41] : memref<256x256xbf16, #tpu.memory_space<vmem>>, vector<256x256xbf16>
    %cst_42 = arith.constant dense<0.000000e+00> : vector<16x256xf32>
    %123 = tpu.matmul %121, %122, %cst_42 {dimension_numbers = #tpu.dot_dimension_numbers<[1], [0], [0], [1], [0, 0, 1, 1], [], []>} : vector<16x256xbf16>, vector<256x256xbf16>, vector<16x256xf32> -> vector<16x256xf32>
    %124 = vector.extract_strided_slice %123 {offsets = [0, 0], sizes = [16, 128], strides = [1, 1]} : vector<16x256xf32> to vector<16x128xf32>
    %125 = vector.shape_cast %124 : vector<16x128xf32> to vector<2x8x128xf32>
    %126 = vector.extract_strided_slice %123 {offsets = [0, 128], sizes = [16, 128], strides = [1, 1]} : vector<16x256xf32> to vector<16x128xf32>
    %127 = vector.shape_cast %126 : vector<16x128xf32> to vector<2x8x128xf32>
    %128 = tpu.concatenate %125, %127 in 0 : vector<2x8x128xf32>, vector<2x8x128xf32> -> vector<4x8x128xf32>
    %129 = arith.truncf %6 : vector<32x256xf32> to vector<32x256xbf16>
    %c0_43 = arith.constant 0 : index
    %c0_44 = arith.constant 0 : index
    %130 = vector.load %arg12[%c0_43, %c0_44] : memref<256x512xbf16, #tpu.memory_space<vmem>>, vector<256x512xbf16>
    %cst_45 = arith.constant dense<0.000000e+00> : vector<32x512xf32>
    %131 = tpu.matmul %129, %130, %cst_45 {dimension_numbers = #tpu.dot_dimension_numbers<[1], [0], [0], [1], [0, 0, 1, 1], [], []>} : vector<32x256xbf16>, vector<256x512xbf16>, vector<32x512xf32> -> vector<32x512xf32>
    %132 = vector.extract_strided_slice %131 {offsets = [0, 0], sizes = [32, 256], strides = [1, 1]} : vector<32x512xf32> to vector<32x256xf32>
    %133 = vector.extract_strided_slice %132 {offsets = [0, 0], sizes = [32, 128], strides = [1, 1]} : vector<32x256xf32> to vector<32x128xf32>
    %134 = vector.shape_cast %133 : vector<32x128xf32> to vector<2x16x128xf32>
    %135 = vector.extract_strided_slice %132 {offsets = [0, 128], sizes = [32, 128], strides = [1, 1]} : vector<32x256xf32> to vector<32x128xf32>
    %136 = vector.shape_cast %135 : vector<32x128xf32> to vector<2x16x128xf32>
    %137 = tpu.concatenate %134, %136 in 0 : vector<2x16x128xf32>, vector<2x16x128xf32> -> vector<4x16x128xf32>
    %138 = vector.extract_strided_slice %131 {offsets = [0, 256], sizes = [32, 256], strides = [1, 1]} : vector<32x512xf32> to vector<32x256xf32>
    %139 = vector.extract_strided_slice %138 {offsets = [0, 0], sizes = [32, 128], strides = [1, 1]} : vector<32x256xf32> to vector<32x128xf32>
    %140 = vector.shape_cast %139 : vector<32x128xf32> to vector<2x16x128xf32>
    %141 = vector.extract_strided_slice %138 {offsets = [0, 128], sizes = [32, 128], strides = [1, 1]} : vector<32x256xf32> to vector<32x128xf32>
    %142 = vector.shape_cast %141 : vector<32x128xf32> to vector<2x16x128xf32>
    %143 = tpu.concatenate %140, %142 in 0 : vector<2x16x128xf32>, vector<2x16x128xf32> -> vector<4x16x128xf32>
    %144 = arith.truncf %128 : vector<4x8x128xf32> to vector<4x8x128xbf16>
    %145 = arith.truncf %137 : vector<4x16x128xf32> to vector<4x16x128xbf16>
    %cst_46 = arith.constant dense<0.000000e+00> : vector<4x8x16xf32>
    %146 = tpu.matmul %144, %145, %cst_46 {dimension_numbers = #tpu.dot_dimension_numbers<[2], [2], [1], [1], [0, 0, 0, 1, 1, 1], [0], [0]>} : vector<4x8x128xbf16>, vector<4x16x128xbf16>, vector<4x8x16xf32> -> vector<4x8x16xf32>
    %cst_47 = arith.constant dense<0xFF800000> : vector<4x8xf32>
    %147 = vector.multi_reduction <maximumf>, %146, %cst_47 [2] : vector<4x8x16xf32> to vector<4x8xf32>
    %148 = vector.shape_cast %147 : vector<4x8xf32> to vector<4x8x1xf32>
    %149 = vector.broadcast %148 : vector<4x8x1xf32> to vector<4x8x16xf32>
    %150 = arith.subf %146, %149 : vector<4x8x16xf32>
    %151 = math.exp %150 : vector<4x8x16xf32>
    %cst_48 = arith.constant dense<0.000000e+00> : vector<4x8xf32>
    %152 = vector.multi_reduction <add>, %151, %cst_48 [2] : vector<4x8x16xf32> to vector<4x8xf32>
    %153 = vector.shape_cast %152 : vector<4x8xf32> to vector<4x8x1xf32>
    %154 = tpu.reciprocal %153 {approx = true} : vector<4x8x1xf32> -> vector<4x8x1xf32>
    %155 = vector.broadcast %154 : vector<4x8x1xf32> to vector<4x8x16xf32>
    %156 = arith.mulf %151, %155 : vector<4x8x16xf32>
    %157 = arith.truncf %156 : vector<4x8x16xf32> to vector<4x8x16xbf16>
    %158 = arith.truncf %143 : vector<4x16x128xf32> to vector<4x16x128xbf16>
    %cst_49 = arith.constant dense<0.000000e+00> : vector<4x8x128xf32>
    %159 = tpu.matmul %157, %158, %cst_49 {dimension_numbers = #tpu.dot_dimension_numbers<[2], [1], [1], [2], [0, 0, 0, 1, 1, 2], [0], [0]>} : vector<4x8x16xbf16>, vector<4x16x128xbf16>, vector<4x8x128xf32> -> vector<4x8x128xf32>
    %cst_50 = arith.constant 0.000000e+00 : f32
    %160 = vector.broadcast %cst_50 : f32 to vector<16x256xf32>
    %161 = vector.extract_strided_slice %159 {offsets = [0, 0, 0], sizes = [2, 8, 128], strides = [1, 1, 1]} : vector<4x8x128xf32> to vector<2x8x128xf32>
    %162 = vector.shape_cast %161 : vector<2x8x128xf32> to vector<16x128xf32>
    %163 = arith.truncf %162 : vector<16x128xf32> to vector<16x128xbf16>
    %c0_51 = arith.constant 0 : index
    %c0_52 = arith.constant 0 : index
    %c0_53 = arith.constant 0 : index
    %164 = vector.load %arg13[%c0_51, %c0_52, %c0_53] : memref<2x128x256xbf16, #tpu.memory_space<vmem>>, vector<1x128x256xbf16>
    %165 = vector.shape_cast %164 : vector<1x128x256xbf16> to vector<128x256xbf16>
    %cst_54 = arith.constant dense<0.000000e+00> : vector<16x256xf32>
    %166 = tpu.matmul %163, %165, %cst_54 {dimension_numbers = #tpu.dot_dimension_numbers<[1], [0], [0], [1], [0, 0, 1, 1], [], []>} : vector<16x128xbf16>, vector<128x256xbf16>, vector<16x256xf32> -> vector<16x256xf32>
    %167 = arith.addf %160, %166 : vector<16x256xf32>
    %168 = vector.extract_strided_slice %159 {offsets = [2, 0, 0], sizes = [2, 8, 128], strides = [1, 1, 1]} : vector<4x8x128xf32> to vector<2x8x128xf32>
    %169 = vector.shape_cast %168 : vector<2x8x128xf32> to vector<16x128xf32>
    %170 = arith.truncf %169 : vector<16x128xf32> to vector<16x128xbf16>
    %c1_55 = arith.constant 1 : index
    %c0_56 = arith.constant 0 : index
    %c0_57 = arith.constant 0 : index
    %171 = vector.load %arg13[%c1_55, %c0_56, %c0_57] : memref<2x128x256xbf16, #tpu.memory_space<vmem>>, vector<1x128x256xbf16>
    %172 = vector.shape_cast %171 : vector<1x128x256xbf16> to vector<128x256xbf16>
    %cst_58 = arith.constant dense<0.000000e+00> : vector<16x256xf32>
    %173 = tpu.matmul %170, %172, %cst_58 {dimension_numbers = #tpu.dot_dimension_numbers<[1], [0], [0], [1], [0, 0, 1, 1], [], []>} : vector<16x128xbf16>, vector<128x256xbf16>, vector<16x256xf32> -> vector<16x256xf32>
    %174 = arith.addf %167, %173 : vector<16x256xf32>
    %175 = arith.addf %99, %174 : vector<16x256xf32>
    %cst_59 = arith.constant dense<0.000000e+00> : vector<16xf32>
    %176 = vector.multi_reduction <add>, %175, %cst_59 [1] : vector<16x256xf32> to vector<16xf32>
    %177 = vector.shape_cast %176 : vector<16xf32> to vector<16x1xf32>
    %cst_60 = arith.constant 2.560000e+02 : f32
    %178 = vector.broadcast %cst_60 : f32 to vector<16x1xf32>
    %179 = arith.divf %177, %178 : vector<16x1xf32>
    %180 = vector.broadcast %179 : vector<16x1xf32> to vector<16x256xf32>
    %181 = arith.subf %175, %180 : vector<16x256xf32>
    %182 = arith.mulf %181, %181 : vector<16x256xf32>
    %cst_61 = arith.constant dense<0.000000e+00> : vector<16xf32>
    %183 = vector.multi_reduction <add>, %182, %cst_61 [1] : vector<16x256xf32> to vector<16xf32>
    %184 = vector.shape_cast %183 : vector<16xf32> to vector<16x1xf32>
    %cst_62 = arith.constant 2.560000e+02 : f32
    %185 = vector.broadcast %cst_62 : f32 to vector<16x1xf32>
    %186 = arith.divf %184, %185 : vector<16x1xf32>
    %187 = vector.broadcast %179 : vector<16x1xf32> to vector<16x256xf32>
    %188 = arith.subf %175, %187 : vector<16x256xf32>
    %cst_63 = arith.constant 9.99999974E-6 : f32
    %189 = vector.broadcast %cst_63 : f32 to vector<16x1xf32>
    %190 = arith.addf %186, %189 : vector<16x1xf32>
    %191 = math.rsqrt %190 : vector<16x1xf32>
    %192 = vector.broadcast %191 : vector<16x1xf32> to vector<16x256xf32>
    %193 = arith.mulf %188, %192 : vector<16x256xf32>
    %c0_64 = arith.constant 0 : index
    %c0_65 = arith.constant 0 : index
    %194 = vector.load %arg8[%c0_64, %c0_65] : memref<1x256xf32, #tpu.memory_space<vmem>>, vector<1x256xf32>
    %195 = vector.broadcast %194 : vector<1x256xf32> to vector<16x256xf32>
    %196 = arith.mulf %193, %195 : vector<16x256xf32>
    %197 = arith.truncf %196 : vector<16x256xf32> to vector<16x256xbf16>
    %c0_66 = arith.constant 0 : index
    %c0_67 = arith.constant 0 : index
    %198 = vector.load %arg14[%c0_66, %c0_67] : memref<256x1024xbf16, #tpu.memory_space<vmem>>, vector<256x1024xbf16>
    %cst_68 = arith.constant dense<0.000000e+00> : vector<16x1024xf32>
    %199 = tpu.matmul %197, %198, %cst_68 {dimension_numbers = #tpu.dot_dimension_numbers<[1], [0], [0], [1], [0, 0, 1, 1], [], []>} : vector<16x256xbf16>, vector<256x1024xbf16>, vector<16x1024xf32> -> vector<16x1024xf32>
    %cst_69 = arith.constant 5.000000e-01 : f32
    %200 = vector.broadcast %cst_69 : f32 to vector<16x1024xf32>
    %201 = arith.mulf %200, %199 : vector<16x1024xf32>
    %cst_70 = arith.constant 0.707106769 : f32
    %202 = vector.broadcast %cst_70 : f32 to vector<16x1024xf32>
    %203 = arith.mulf %199, %202 : vector<16x1024xf32>
    %204 = math.erf %203 : vector<16x1024xf32>
    %cst_71 = arith.constant 1.000000e+00 : f32
    %205 = vector.broadcast %cst_71 : f32 to vector<16x1024xf32>
    %206 = arith.addf %205, %204 : vector<16x1024xf32>
    %207 = arith.mulf %201, %206 : vector<16x1024xf32>
    %208 = arith.truncf %207 : vector<16x1024xf32> to vector<16x1024xbf16>
    %c0_72 = arith.constant 0 : index
    %c0_73 = arith.constant 0 : index
    %209 = vector.load %arg15[%c0_72, %c0_73] : memref<1024x256xbf16, #tpu.memory_space<vmem>>, vector<1024x256xbf16>
    %cst_74 = arith.constant dense<0.000000e+00> : vector<16x256xf32>
    %210 = tpu.matmul %208, %209, %cst_74 {dimension_numbers = #tpu.dot_dimension_numbers<[1], [0], [0], [1], [0, 0, 1, 1], [], []>} : vector<16x1024xbf16>, vector<1024x256xbf16>, vector<16x256xf32> -> vector<16x256xf32>
    %211 = arith.addf %175, %210 : vector<16x256xf32>
    %212 = vector.shape_cast %211 : vector<16x256xf32> to vector<2x8x256xf32>
    %c0_75 = arith.constant 0 : index
    %c0_76 = arith.constant 0 : index
    %c0_77 = arith.constant 0 : index
    %213 = vector.load %arg16[%c0_75, %c0_76, %c0_77] : memref<2x8x256xf32, #tpu.memory_space<vmem>>, vector<2x8x256xf32>
    tpu.vector_store %arg16[%c0_75, %c0_76, %c0_77], %212 {strides = array<i32>} : memref<2x8x256xf32, #tpu.memory_space<vmem>>, vector<2x8x256xf32>,
    return
  }
  func.func @transform_0(%arg0: i32) -> (i32, i32, i32) {
    %c0_i32 = arith.constant 0 : i32
    %c0_i32_0 = arith.constant 0 : i32
    %c0_i32_1 = arith.constant 0 : i32
    return %arg0, %c0_i32, %c0_i32_0 : i32, i32, i32
  }
  func.func @transform_1(%arg0: i32) -> (i32, i32, i32) {
    %c0_i32 = arith.constant 0 : i32
    %c0_i32_0 = arith.constant 0 : i32
    %c0_i32_1 = arith.constant 0 : i32
    return %arg0, %c0_i32, %c0_i32_0 : i32, i32, i32
  }
  func.func @transform_2(%arg0: i32) -> (i32, i32) {
    %c0_i32 = arith.constant 0 : i32
    %c0_i32_0 = arith.constant 0 : i32
    %c0_i32_1 = arith.constant 0 : i32
    return %c0_i32, %c0_i32_0 : i32, i32
  }
  func.func @transform_3(%arg0: i32) -> (i32, i32) {
    %c0_i32 = arith.constant 0 : i32
    %c0_i32_0 = arith.constant 0 : i32
    %c0_i32_1 = arith.constant 0 : i32
    return %c0_i32, %c0_i32_0 : i32, i32
  }
  func.func @transform_4(%arg0: i32) -> (i32, i32) {
    %c0_i32 = arith.constant 0 : i32
    %c0_i32_0 = arith.constant 0 : i32
    %c0_i32_1 = arith.constant 0 : i32
    return %c0_i32, %c0_i32_0 : i32, i32
  }
  func.func @transform_5(%arg0: i32) -> (i32, i32) {
    %c0_i32 = arith.constant 0 : i32
    %c0_i32_0 = arith.constant 0 : i32
    %c0_i32_1 = arith.constant 0 : i32
    return %c0_i32, %c0_i32_0 : i32, i32
  }
  func.func @transform_6(%arg0: i32) -> (i32, i32) {
    %c0_i32 = arith.constant 0 : i32
    %c0_i32_0 = arith.constant 0 : i32
    %c0_i32_1 = arith.constant 0 : i32
    return %c0_i32, %c0_i32_0 : i32, i32
  }
  func.func @transform_7(%arg0: i32) -> (i32, i32) {
    %c0_i32 = arith.constant 0 : i32
    %c0_i32_0 = arith.constant 0 : i32
    %c0_i32_1 = arith.constant 0 : i32
    return %c0_i32, %c0_i32_0 : i32, i32
  }
  func.func @transform_8(%arg0: i32) -> (i32, i32) {
    %c0_i32 = arith.constant 0 : i32
    %c0_i32_0 = arith.constant 0 : i32
    %c0_i32_1 = arith.constant 0 : i32
    return %c0_i32, %c0_i32_0 : i32, i32
  }
  func.func @transform_9(%arg0: i32) -> (i32, i32, i32) {
    %c0_i32 = arith.constant 0 : i32
    %c0_i32_0 = arith.constant 0 : i32
    %c0_i32_1 = arith.constant 0 : i32
    %c0_i32_2 = arith.constant 0 : i32
    return %c0_i32, %c0_i32_0, %c0_i32_1 : i32, i32, i32
  }
  func.func @transform_10(%arg0: i32) -> (i32, i32) {
    %c0_i32 = arith.constant 0 : i32
    %c0_i32_0 = arith.constant 0 : i32
    %c0_i32_1 = arith.constant 0 : i32
    return %c0_i32, %c0_i32_0 : i32, i32
  }
  func.func @transform_11(%arg0: i32) -> (i32, i32) {
    %c0_i32 = arith.constant 0 : i32
    %c0_i32_0 = arith.constant 0 : i32
    %c0_i32_1 = arith.constant 0 : i32
    return %c0_i32, %c0_i32_0 : i32, i32
  }
  func.func @transform_12(%arg0: i32) -> (i32, i32, i32) {
    %c0_i32 = arith.constant 0 : i32
    %c0_i32_0 = arith.constant 0 : i32
    %c0_i32_1 = arith.constant 0 : i32
    %c0_i32_2 = arith.constant 0 : i32
    return %c0_i32, %c0_i32_0, %c0_i32_1 : i32, i32, i32
  }
  func.func @transform_13(%arg0: i32) -> (i32, i32) {
    %c0_i32 = arith.constant 0 : i32
    %c0_i32_0 = arith.constant 0 : i32
    %c0_i32_1 = arith.constant 0 : i32
    return %c0_i32, %c0_i32_0 : i32, i32
  }
  func.func @transform_14(%arg0: i32) -> (i32, i32) {
    %c0_i32 = arith.constant 0 : i32
    %c0_i32_0 = arith.constant 0 : i32
    %c0_i32_1 = arith.constant 0 : i32
    return %c0_i32, %c0_i32_0 : i32, i32
  }
  func.func @transform_15(%arg0: i32) -> (i32, i32, i32) {
    %c0_i32 = arith.constant 0 : i32
    %c0_i32_0 = arith.constant 0 : i32
    %c0_i32_1 = arith.constant 0 : i32
    return %arg0, %c0_i32, %c0_i32_0 : i32, i32, i32
  }
}

</mosaic_0001>

<llo_original>
// kernel: tpu_custom_call.1
$region0: #{tpu_custom_call.1}
  #allocation0 [shape = 'u32[]', space=smem, size = 0x4, offset = 0x4, fixed_abs, tag = 'smem constant byte address 0x4 - core index']
  #allocation1 [shape = 'u32[144,128]{1,0:T(1,128)}', space=vmem, size = 0x12000, scoped, tag = 'internal scratch']
  %s0 = inlined_call_operand.hbm [shape: f32[4,8,256], index: 0, kind: input, shape index: {}]
  %s1 = inlined_call_operand.hbm [shape: f32[4,16,256], index: 1, kind: input, shape index: {}]
  %s2 = inlined_call_operand.hbm [shape: f32[8,128], index: 2, kind: input, shape index: {}]
  %s3 = inlined_call_operand.hbm [shape: f32[8,128], index: 3, kind: input, shape index: {}]
  %s4 = inlined_call_operand.hbm [shape: f32[8,8], index: 4, kind: input, shape index: {}]
  %s5 = inlined_call_operand.vmem [shape: f32[1,256], index: 5, kind: input, shape index: {}]
  %s6 = inlined_call_operand.vmem [shape: f32[1,256], index: 6, kind: input, shape index: {}]
  %s7 = inlined_call_operand.vmem [shape: f32[1,256], index: 7, kind: input, shape index: {}]
  %s8 = inlined_call_operand.hbm [shape: bf16[256,768], index: 8, kind: input, shape index: {}]
  %s9 = inlined_call_operand.hbm [shape: bf16[2,128,256], index: 9, kind: input, shape index: {}]
  %s10 = inlined_call_operand.hbm [shape: bf16[256,256], index: 10, kind: input, shape index: {}]
  %s11 = inlined_call_operand.hbm [shape: bf16[256,512], index: 11, kind: input, shape index: {}]
  %s12 = inlined_call_operand.hbm [shape: bf16[2,128,256], index: 12, kind: input, shape index: {}]
  %s13 = inlined_call_operand.hbm [shape: bf16[256,1024], index: 13, kind: input, shape index: {}]
  %s14 = inlined_call_operand.hbm [shape: bf16[1024,256], index: 14, kind: input, shape index: {}]
  %s15 = inlined_call_operand.hbm [shape: f32[4,8,256], index: 15, kind: output, shape index: {}]
  %s16 = sld [smem:[#allocation0]]
  $region141: #{tpu_custom_call.1} parent=0
    _
  %s18 = ssub.s32 1, %s16
  %s19 = scalar_select 0, %s18, %s16
  $region1: #{tpu_custom_call.1} parent=0
    #allocation2 [shape = 'u8[32768]{0}', space=vmem, size = 0x8000, scoped, tag = 'input window, operand 0']
    #allocation3 [shape = 's32[2]{0}', space=sflag, size = 0x8, scoped, tag = 'scoped memory for tpu_custom_call.1']
    #allocation4 [shape = 's32[2]{0}', space=sflag, size = 0x8, scoped, tag = 'scoped memory for tpu_custom_call.1']
    #allocation5 [shape = 'u8[65536]{0}', space=vmem, size = 0x10000, scoped, tag = 'input window, operand 1']
    #allocation6 [shape = 's32[2]{0}', space=sflag, size = 0x8, scoped, tag = 'scoped memory for tpu_custom_call.1']
    #allocation7 [shape = 'u8[4096]{0}', space=vmem, size = 0x1000, scoped, tag = 'input window, operand 2, single buffered']
    #allocation8 [shape = 'u8[4096]{0}', space=vmem, size = 0x1000, scoped, tag = 'input window, operand 3, single buffered']
    #allocation9 [shape = 's32[1]{0}', space=sflag, size = 0x4, scoped, tag = 'scoped memory for tpu_custom_call.1']
    #allocation10 [shape = 'u8[4096]{0}', space=vmem, size = 0x1000, scoped, tag = 'input window, operand 4, single buffered']
    #allocation11 [shape = 'u8[393216]{0}', space=vmem, size = 0x60000, scoped, tag = 'input window, operand 8, single buffered']
    #allocation12 [shape = 's32[1]{0}', space=sflag, size = 0x4, scoped, tag = 'scoped memory for tpu_custom_call.1']
    #allocation13 [shape = 'u8[131072]{0}', space=vmem, size = 0x20000, scoped, tag = 'input window, operand 9, single buffered']
    #allocation14 [shape = 'u8[131072]{0}', space=vmem, size = 0x20000, scoped, tag = 'input window, operand 10, single buffered']
    #allocation15 [shape = 's32[1]{0}', space=sflag, size = 0x4, scoped, tag = 'scoped memory for tpu_custom_call.1']
    #allocation16 [shape = 'u8[262144]{0}', space=vmem, size = 0x40000, scoped, tag = 'input window, operand 11, single buffered']
    #allocation17 [shape = 'u8[131072]{0}', space=vmem, size = 0x20000, scoped, tag = 'input window, operand 12, single buffered']
    #allocation18 [shape = 's32[1]{0}', space=sflag, size = 0x4, scoped, tag = 'scoped memory for tpu_custom_call.1']
    #allocation19 [shape = 'u8[524288]{0}', space=vmem, size = 0x80000, scoped, tag = 'input window, operand 13, single buffered']
    #allocation20 [shape = 'u8[524288]{0}', space=vmem, size = 0x80000, scoped, tag = 'input window, operand 14, single buffered']
    #allocation21 [shape = 's32[1]{0}', space=sflag, size = 0x4, scoped, tag = 'scoped memory for tpu_custom_call.1']
    #allocation22 [shape = 'u8[32768]{0}', space=vmem, size = 0x8000, scoped, tag = 'output window, operand 0']
    %20 = vsyncpa [#allocation3], 0
    %s21 = scalar_lea.sflag [#allocation3], 1
    %22 = vsyncpa %s21, 0
    %23 = vsyncpa [#allocation6], 0
    %s24 = scalar_lea.sflag [#allocation6], 1
    %25 = vsyncpa %s24, 0
    %26 = vsyncpa [#allocation9], 0
    %27 = vsyncpa [#allocation12], 0
    %28 = vsyncpa [#allocation15], 0
    %29 = vsyncpa [#allocation18], 0
    %30 = vsyncpa [#allocation21], 0
    %31 = vsyncpa [#allocation4], 0
    %s32 = scalar_lea.sflag [#allocation4], 1
    %33 = vsyncpa %s32, 0
    loop: start=0, step=1, limit=4
    $region2: #{tpu_custom_call.1} parent=1 // loop_pre_header
      _
    $region3: #{tpu_custom_call.1} parent=1 // loop_header
      %s35 = sphi 0, %s39
      %p36 = scmp.ge.s32.totalorder %s35, 4
      %s45 = sphi 0, %s47
      %s48 = sphi 0, %s45
      %s49 = sphi 0, %s48
      %s65 = sphi 0, %s49
      %s71 = sphi 0, %s73
      %s74 = sphi 0, %s71
      %s75 = sphi 0, %s74
      %s91 = sphi 0, %s75
      %s95 = sphi 0, %s95
      %s97 = sphi 0, %s95
      %s98 = sphi 0, %s97
      %s112 = sphi 0, %s98
      %s116 = sphi 0, %s116
      %s118 = sphi 0, %s116
      %s119 = sphi 0, %s118
      %s133 = sphi 0, %s119
      %s137 = sphi 0, %s137
      %s139 = sphi 0, %s137
      %s140 = sphi 0, %s139
      %s154 = sphi 0, %s140
      %s158 = sphi 0, %s158
      %s160 = sphi 0, %s158
      %s161 = sphi 0, %s160
      %s175 = sphi 0, %s161
      %s179 = sphi 0, %s179
      %s181 = sphi 0, %s179
      %s182 = sphi 0, %s181
      %s196 = sphi 0, %s182
      %s200 = sphi 0, %s200
      %s202 = sphi 0, %s200
      %s203 = sphi 0, %s202
      %s217 = sphi 0, %s203
      %s221 = sphi 0, %s221
      %s223 = sphi 0, %s221
      %s224 = sphi 0, %s223
      %s238 = sphi 0, %s224
      %s242 = sphi 0, %s242
      %s244 = sphi 0, %s242
      %s245 = sphi 0, %s244
      %s259 = sphi 0, %s245
      %s263 = sphi 0, %s263
      %s265 = sphi 0, %s263
      %s266 = sphi 0, %s265
      %s280 = sphi 0, %s266
      %s284 = sphi 0, %s284
      %s286 = sphi 0, %s284
      %s287 = sphi 0, %s286
      %s301 = sphi 0, %s287
      %s305 = sphi 0, %s305
      %s307 = sphi 0, %s305
      %s308 = sphi 0, %s307
      %s322 = sphi 0, %s308
      %s326 = sphi 0, %s326
      %s328 = sphi 0, %s326
      %s329 = sphi 0, %s328
      %s343 = sphi 0, %s329
      %s347 = sphi 0, %s347
      %s349 = sphi 0, %s347
      %s350 = sphi 0, %s349
      %s364 = sphi 0, %s350
      %s370 = sphi 0, %s372
      %s373 = sphi 0, %s370
      %s374 = sphi 0, %s373
      %s390 = sphi 0, %s374
    $region4: #{tpu_custom_call.1} parent=1 // loop_header_branch
      %38 = sbr.rel (%p36) target = $region8
    $region5: #{tpu_custom_call.1} parent=1 // loop_body
      %s40 = ssub.s32 %s35, 1
      %s41 = ssub.s32 %s35, 2
      %s42 = sadd.s32 %s35, 1
      %s43 = ssub.s32 %s35, %s42
      %p44 = scmp.eq.s32.totalorder %s43, 0
      %s46 = sadd.s32 %s45, 1
      %s47 = scalar_select %p44, %s45, %s46
      %p50 = pneg %p44
      %p51 = scmp.eq.s32.totalorder %s35, 1
      %p52 = por %p50, %p51
      %p53 = scmp.ne.s32.totalorder %s45, %s48
      %p54 = scmp.eq.s32.totalorder %s35, 0
      %p55 = por %p53, %p54
      %p56 = scmp.ne.s32.totalorder %s45, %s48
      %p57 = scmp.eq.s32.totalorder %s40, 1
      %p58 = por %p56, %p57
      %p59 = scmp.ne.s32.totalorder %s48, %s49
      %p60 = scmp.eq.s32.totalorder %s40, 0
      %p61 = por %p59, %p60
      %p62 = scmp.ne.s32.totalorder %s48, %s49
      %p63 = scmp.eq.s32.totalorder %s41, 1
      %p64 = por %p62, %p63
      %p66 = scmp.ne.s32.totalorder %s49, %s65
      %p67 = scmp.eq.s32.totalorder %s41, 0
      %p68 = por %p66, %p67
      %s69 = ssub.s32 %s35, %s42
      %p70 = scmp.eq.s32.totalorder %s69, 0
      %s72 = sadd.s32 %s71, 1
      %s73 = scalar_select %p70, %s71, %s72
      %p76 = pneg %p70
      %p77 = scmp.eq.s32.totalorder %s35, 1
      %p78 = por %p76, %p77
      %p79 = scmp.ne.s32.totalorder %s71, %s74
      %p80 = scmp.eq.s32.totalorder %s35, 0
      %p81 = por %p79, %p80
      %p82 = scmp.ne.s32.totalorder %s71, %s74
      %p83 = scmp.eq.s32.totalorder %s40, 1
      %p84 = por %p82, %p83
      %p85 = scmp.ne.s32.totalorder %s74, %s75
      %p86 = scmp.eq.s32.totalorder %s40, 0
      %p87 = por %p85, %p86
      %p88 = scmp.ne.s32.totalorder %s74, %s75
      %p89 = scmp.eq.s32.totalorder %s41, 1
      %p90 = por %p88, %p89
      %p92 = scmp.ne.s32.totalorder %s75, %s91
      %p93 = scmp.eq.s32.totalorder %s41, 0
      %p94 = por %p92, %p93
      %s96 = sadd.s32 %s95, 1
      %p99 = scmp.eq.s32.totalorder %s35, 1
      %p100 = scmp.ne.s32.totalorder %s95, %s97
      %p101 = scmp.eq.s32.totalorder %s35, 0
      %p102 = por %p100, %p101
      %p103 = scmp.ne.s32.totalorder %s95, %s97
      %p104 = scmp.eq.s32.totalorder %s40, 1
      %p105 = por %p103, %p104
      %p106 = scmp.ne.s32.totalorder %s97, %s98
      %p107 = scmp.eq.s32.totalorder %s40, 0
      %p108 = por %p106, %p107
      %p109 = scmp.ne.s32.totalorder %s97, %s98
      %p110 = scmp.eq.s32.totalorder %s41, 1
      %p111 = por %p109, %p110
      %p113 = scmp.ne.s32.totalorder %s98, %s112
      %p114 = scmp.eq.s32.totalorder %s41, 0
      %p115 = por %p113, %p114
      %s117 = sadd.s32 %s116, 1
      %p120 = scmp.eq.s32.totalorder %s35, 1
      %p121 = scmp.ne.s32.totalorder %s116, %s118
      %p122 = scmp.eq.s32.totalorder %s35, 0
      %p123 = por %p121, %p122
      %p124 = scmp.ne.s32.totalorder %s116, %s118
      %p125 = scmp.eq.s32.totalorder %s40, 1
      %p126 = por %p124, %p125
      %p127 = scmp.ne.s32.totalorder %s118, %s119
      %p128 = scmp.eq.s32.totalorder %s40, 0
      %p129 = por %p127, %p128
      %p130 = scmp.ne.s32.totalorder %s118, %s119
      %p131 = scmp.eq.s32.totalorder %s41, 1
      %p132 = por %p130, %p131
      %p134 = scmp.ne.s32.totalorder %s119, %s133
      %p135 = scmp.eq.s32.totalorder %s41, 0
      %p136 = por %p134, %p135
      %s138 = sadd.s32 %s137, 1
      %p141 = scmp.eq.s32.totalorder %s35, 1
      %p142 = scmp.ne.s32.totalorder %s137, %s139
      %p143 = scmp.eq.s32.totalorder %s35, 0
      %p144 = por %p142, %p143
      %p145 = scmp.ne.s32.totalorder %s137, %s139
      %p146 = scmp.eq.s32.totalorder %s40, 1
      %p147 = por %p145, %p146
      %p148 = scmp.ne.s32.totalorder %s139, %s140
      %p149 = scmp.eq.s32.totalorder %s40, 0
      %p150 = por %p148, %p149
      %p151 = scmp.ne.s32.totalorder %s139, %s140
      %p152 = scmp.eq.s32.totalorder %s41, 1
      %p153 = por %p151, %p152
      %p155 = scmp.ne.s32.totalorder %s140, %s154
      %p156 = scmp.eq.s32.totalorder %s41, 0
      %p157 = por %p155, %p156
      %s159 = sadd.s32 %s158, 1
      %p162 = scmp.eq.s32.totalorder %s35, 1
      %p163 = scmp.ne.s32.totalorder %s158, %s160
      %p164 = scmp.eq.s32.totalorder %s35, 0
      %p165 = por %p163, %p164
      %p166 = scmp.ne.s32.totalorder %s158, %s160
      %p167 = scmp.eq.s32.totalorder %s40, 1
      %p168 = por %p166, %p167
      %p169 = scmp.ne.s32.totalorder %s160, %s161
      %p170 = scmp.eq.s32.totalorder %s40, 0
      %p171 = por %p169, %p170
      %p172 = scmp.ne.s32.totalorder %s160, %s161
      %p173 = scmp.eq.s32.totalorder %s41, 1
      %p174 = por %p172, %p173
      %p176 = scmp.ne.s32.totalorder %s161, %s175
      %p177 = scmp.eq.s32.totalorder %s41, 0
      %p178 = por %p176, %p177
      %s180 = sadd.s32 %s179, 1
      %p183 = scmp.eq.s32.totalorder %s35, 1
      %p184 = scmp.ne.s32.totalorder %s179, %s181
      %p185 = scmp.eq.s32.totalorder %s35, 0
      %p186 = por %p184, %p185
      %p187 = scmp.ne.s32.totalorder %s179, %s181
      %p188 = scmp.eq.s32.totalorder %s40, 1
      %p189 = por %p187, %p188
      %p190 = scmp.ne.s32.totalorder %s181, %s182
      %p191 = scmp.eq.s32.totalorder %s40, 0
      %p192 = por %p190, %p191
      %p193 = scmp.ne.s32.totalorder %s181, %s182
      %p194 = scmp.eq.s32.totalorder %s41, 1
      %p195 = por %p193, %p194
      %p197 = scmp.ne.s32.totalorder %s182, %s196
      %p198 = scmp.eq.s32.totalorder %s41, 0
      %p199 = por %p197, %p198
      %s201 = sadd.s32 %s200, 1
      %p204 = scmp.eq.s32.totalorder %s35, 1
      %p205 = scmp.ne.s32.totalorder %s200, %s202
      %p206 = scmp.eq.s32.totalorder %s35, 0
      %p207 = por %p205, %p206
      %p208 = scmp.ne.s32.totalorder %s200, %s202
      %p209 = scmp.eq.s32.totalorder %s40, 1
      %p210 = por %p208, %p209
      %p211 = scmp.ne.s32.totalorder %s202, %s203
      %p212 = scmp.eq.s32.totalorder %s40, 0
      %p213 = por %p211, %p212
      %p214 = scmp.ne.s32.totalorder %s202, %s203
      %p215 = scmp.eq.s32.totalorder %s41, 1
      %p216 = por %p214, %p215
      %p218 = scmp.ne.s32.totalorder %s203, %s217
      %p219 = scmp.eq.s32.totalorder %s41, 0
      %p220 = por %p218, %p219
      %s222 = sadd.s32 %s221, 1
      %p225 = scmp.eq.s32.totalorder %s35, 1
      %p226 = scmp.ne.s32.totalorder %s221, %s223
      %p227 = scmp.eq.s32.totalorder %s35, 0
      %p228 = por %p226, %p227
      %p229 = scmp.ne.s32.totalorder %s221, %s223
      %p230 = scmp.eq.s32.totalorder %s40, 1
      %p231 = por %p229, %p230
      %p232 = scmp.ne.s32.totalorder %s223, %s224
      %p233 = scmp.eq.s32.totalorder %s40, 0
      %p234 = por %p232, %p233
      %p235 = scmp.ne.s32.totalorder %s223, %s224
      %p236 = scmp.eq.s32.totalorder %s41, 1
      %p237 = por %p235, %p236
      %p239 = scmp.ne.s32.totalorder %s224, %s238
      %p240 = scmp.eq.s32.totalorder %s41, 0
      %p241 = por %p239, %p240
      %s243 = sadd.s32 %s242, 1
      %p246 = scmp.eq.s32.totalorder %s35, 1
      %p247 = scmp.ne.s32.totalorder %s242, %s244
      %p248 = scmp.eq.s32.totalorder %s35, 0
      %p249 = por %p247, %p248
      %p250 = scmp.ne.s32.totalorder %s242, %s244
      %p251 = scmp.eq.s32.totalorder %s40, 1
      %p252 = por %p250, %p251
      %p253 = scmp.ne.s32.totalorder %s244, %s245
      %p254 = scmp.eq.s32.totalorder %s40, 0
      %p255 = por %p253, %p254
      %p256 = scmp.ne.s32.totalorder %s244, %s245
      %p257 = scmp.eq.s32.totalorder %s41, 1
      %p258 = por %p256, %p257
      %p260 = scmp.ne.s32.totalorder %s245, %s259
      %p261 = scmp.eq.s32.totalorder %s41, 0
      %p262 = por %p260, %p261
      %s264 = sadd.s32 %s263, 1
      %p267 = scmp.eq.s32.totalorder %s35, 1
      %p268 = scmp.ne.s32.totalorder %s263, %s265
      %p269 = scmp.eq.s32.totalorder %s35, 0
      %p270 = por %p268, %p269
      %p271 = scmp.ne.s32.totalorder %s263, %s265
      %p272 = scmp.eq.s32.totalorder %s40, 1
      %p273 = por %p271, %p272
      %p274 = scmp.ne.s32.totalorder %s265, %s266
      %p275 = scmp.eq.s32.totalorder %s40, 0
      %p276 = por %p274, %p275
      %p277 = scmp.ne.s32.totalorder %s265, %s266
      %p278 = scmp.eq.s32.totalorder %s41, 1
      %p279 = por %p277, %p278
      %p281 = scmp.ne.s32.totalorder %s266, %s280
      %p282 = scmp.eq.s32.totalorder %s41, 0
      %p283 = por %p281, %p282
      %s285 = sadd.s32 %s284, 1
      %p288 = scmp.eq.s32.totalorder %s35, 1
      %p289 = scmp.ne.s32.totalorder %s284, %s286
      %p290 = scmp.eq.s32.totalorder %s35, 0
      %p291 = por %p289, %p290
      %p292 = scmp.ne.s32.totalorder %s284, %s286
      %p293 = scmp.eq.s32.totalorder %s40, 1
      %p294 = por %p292, %p293
      %p295 = scmp.ne.s32.totalorder %s286, %s287
      %p296 = scmp.eq.s32.totalorder %s40, 0
      %p297 = por %p295, %p296
      %p298 = scmp.ne.s32.totalorder %s286, %s287
      %p299 = scmp.eq.s32.totalorder %s41, 1
      %p300 = por %p298, %p299
      %p302 = scmp.ne.s32.totalorder %s287, %s301
      %p303 = scmp.eq.s32.totalorder %s41, 0
      %p304 = por %p302, %p303
      %s306 = sadd.s32 %s305, 1
      %p309 = scmp.eq.s32.totalorder %s35, 1
      %p310 = scmp.ne.s32.totalorder %s305, %s307
      %p311 = scmp.eq.s32.totalorder %s35, 0
      %p312 = por %p310, %p311
      %p313 = scmp.ne.s32.totalorder %s305, %s307
      %p314 = scmp.eq.s32.totalorder %s40, 1
      %p315 = por %p313, %p314
      %p316 = scmp.ne.s32.totalorder %s307, %s308
      %p317 = scmp.eq.s32.totalorder %s40, 0
      %p318 = por %p316, %p317
      %p319 = scmp.ne.s32.totalorder %s307, %s308
      %p320 = scmp.eq.s32.totalorder %s41, 1
      %p321 = por %p319, %p320
      %p323 = scmp.ne.s32.totalorder %s308, %s322
      %p324 = scmp.eq.s32.totalorder %s41, 0
      %p325 = por %p323, %p324
      %s327 = sadd.s32 %s326, 1
      %p330 = scmp.eq.s32.totalorder %s35, 1
      %p331 = scmp.ne.s32.totalorder %s326, %s328
      %p332 = scmp.eq.s32.totalorder %s35, 0
      %p333 = por %p331, %p332
      %p334 = scmp.ne.s32.totalorder %s326, %s328
      %p335 = scmp.eq.s32.totalorder %s40, 1
      %p336 = por %p334, %p335
      %p337 = scmp.ne.s32.totalorder %s328, %s329
      %p338 = scmp.eq.s32.totalorder %s40, 0
      %p339 = por %p337, %p338
      %p340 = scmp.ne.s32.totalorder %s328, %s329
      %p341 = scmp.eq.s32.totalorder %s41, 1
      %p342 = por %p340, %p341
      %p344 = scmp.ne.s32.totalorder %s329, %s343
      %p345 = scmp.eq.s32.totalorder %s41, 0
      %p346 = por %p344, %p345
      %s348 = sadd.s32 %s347, 1
      %p351 = scmp.eq.s32.totalorder %s35, 1
      %p352 = scmp.ne.s32.totalorder %s347, %s349
      %p353 = scmp.eq.s32.totalorder %s35, 0
      %p354 = por %p352, %p353
      %p355 = scmp.ne.s32.totalorder %s347, %s349
      %p356 = scmp.eq.s32.totalorder %s40, 1
      %p357 = por %p355, %p356
      %p358 = scmp.ne.s32.totalorder %s349, %s350
      %p359 = scmp.eq.s32.totalorder %s40, 0
      %p360 = por %p358, %p359
      %p361 = scmp.ne.s32.totalorder %s349, %s350
      %p362 = scmp.eq.s32.totalorder %s41, 1
      %p363 = por %p361, %p362
      %p365 = scmp.ne.s32.totalorder %s350, %s364
      %p366 = scmp.eq.s32.totalorder %s41, 0
      %p367 = por %p365, %p366
      %s368 = ssub.s32 %s35, %s42
      %p369 = scmp.eq.s32.totalorder %s368, 0
      %s371 = sadd.s32 %s370, 1
      %s372 = scalar_select %p369, %s370, %s371
      %p375 = pneg %p369
      %p376 = scmp.eq.s32.totalorder %s35, 1
      %p377 = por %p375, %p376
      %p378 = scmp.ne.s32.totalorder %s370, %s373
      %p379 = scmp.eq.s32.totalorder %s35, 0
      %p380 = por %p378, %p379
      %p381 = scmp.ne.s32.totalorder %s370, %s373
      %p382 = scmp.eq.s32.totalorder %s40, 1
      %p383 = por %p381, %p382
      %p384 = scmp.ne.s32.totalorder %s373, %s374
      %p385 = scmp.eq.s32.totalorder %s40, 0
      %p386 = por %p384, %p385
      %p387 = scmp.ne.s32.totalorder %s373, %s374
      %p388 = scmp.eq.s32.totalorder %s41, 1
      %p389 = por %p387, %p388
      %p391 = scmp.ne.s32.totalorder %s374, %s390
      %p392 = scmp.eq.s32.totalorder %s41, 0
      %p393 = por %p391, %p392
      %p394 = scmp.le.s32.totalorder 1, %s35
      %p395 = scmp.lt.s32.totalorder %s35, 3
      %p396 = pnand %p394, %p395
      %p397 = pneg %p396
      // Predicated region
      $region9: #{tpu_custom_call.1} parent=5 // pred_check
        _
      $region10: #{tpu_custom_call.1} parent=5 // pred_check_branch
        %399 = sbr.rel (%p396) target = $region12
      $region11: #{tpu_custom_call.1} parent=5 // pred_region
        %s400 = ssub.s32 %s35, 1
        // Predicated region
        $region13: #{tpu_custom_call.1} parent=11 // pred_check
          %p401 = pneg %p108
        $region14: #{tpu_custom_call.1} parent=11 // pred_check_branch
          %403 = sbr.rel (%p401) target = $region16
        $region15: #{tpu_custom_call.1} parent=11 // pred_region
          %s405 = ssub.s32 128, 128
          %406 = vsyncadd [#allocation6], %s405
          %s408 = sshll.u32 [#allocation7], 4
          %s409 = int_to_ptr.vmem [resolvable:$true] %s408
          %411 = dma.hbm_to_vmem [thread:$0]  %s2, 128, %s409, [#allocation6]
        $region16: #{tpu_custom_call.1} parent=11 // pred_fallthru
          _
        // Predicated region
        $region17: #{tpu_custom_call.1} parent=11 // pred_check
          %p412 = pneg %p129
        $region18: #{tpu_custom_call.1} parent=11 // pred_check_branch
          %414 = sbr.rel (%p412) target = $region20
        $region19: #{tpu_custom_call.1} parent=11 // pred_region
          %s416 = ssub.s32 128, 128
          %417 = vsyncadd [#allocation9], %s416
          %s419 = sshll.u32 [#allocation8], 4
          %s420 = int_to_ptr.vmem [resolvable:$true] %s419
          %422 = dma.hbm_to_vmem [thread:$0]  %s3, 128, %s420, [#allocation9]
        $region20: #{tpu_custom_call.1} parent=11 // pred_fallthru
          _
        // Predicated region
        $region21: #{tpu_custom_call.1} parent=11 // pred_check
          %p423 = pneg %p150
        $region22: #{tpu_custom_call.1} parent=11 // pred_check_branch
          %425 = sbr.rel (%p423) target = $region24
        $region23: #{tpu_custom_call.1} parent=11 // pred_region
          %s427 = ssub.s32 128, 128
          %428 = vsyncadd [#allocation9], %s427
          %s430 = sshll.u32 [#allocation10], 4
          %s431 = int_to_ptr.vmem [resolvable:$true] %s430
          %433 = dma.hbm_to_vmem [thread:$0]  %s4, 128, %s431, [#allocation9]
        $region24: #{tpu_custom_call.1} parent=11 // pred_fallthru
          _
        // Predicated region
        $region25: #{tpu_custom_call.1} parent=11 // pred_check
          %p434 = pneg %p171
        $region26: #{tpu_custom_call.1} parent=11 // pred_check_branch
          %436 = sbr.rel (%p434) target = $region28
        $region27: #{tpu_custom_call.1} parent=11 // pred_region
          _
        $region28: #{tpu_custom_call.1} parent=11 // pred_fallthru
          _
        // Predicated region
        $region29: #{tpu_custom_call.1} parent=11 // pred_check
          %p437 = pneg %p192
        $region30: #{tpu_custom_call.1} parent=11 // pred_check_branch
          %439 = sbr.rel (%p437) target = $region32
        $region31: #{tpu_custom_call.1} parent=11 // pred_region
          _
        $region32: #{tpu_custom_call.1} parent=11 // pred_fallthru
          _
        // Predicated region
        $region33: #{tpu_custom_call.1} parent=11 // pred_check
          %p440 = pneg %p213
        $region34: #{tpu_custom_call.1} parent=11 // pred_check_branch
          %442 = sbr.rel (%p440) target = $region36
        $region35: #{tpu_custom_call.1} parent=11 // pred_region
          _
        $region36: #{tpu_custom_call.1} parent=11 // pred_fallthru
          _
        // Predicated region
        $region37: #{tpu_custom_call.1} parent=11 // pred_check
          %p443 = pneg %p234
        $region38: #{tpu_custom_call.1} parent=11 // pred_check_branch
          %445 = sbr.rel (%p443) target = $region40
        $region39: #{tpu_custom_call.1} parent=11 // pred_region
          %s447 = ssub.s32 12288, 12288
          %448 = vsyncadd [#allocation12], %s447
          %s449 = sshll.u32 [#allocation11], 4
          %s450 = int_to_ptr.vmem [resolvable:$true] %s449
          %455 = dma.hbm_to_vmem [thread:$0]  %s8, 12288, %s450, [#allocation12], 384, 384, 24
        $region40: #{tpu_custom_call.1} parent=11 // pred_fallthru
          _
        // Predicated region
        $region41: #{tpu_custom_call.1} parent=11 // pred_check
          %p456 = pneg %p255
        $region42: #{tpu_custom_call.1} parent=11 // pred_check_branch
          %458 = sbr.rel (%p456) target = $region44
        $region43: #{tpu_custom_call.1} parent=11 // pred_region
          %s460 = ssub.s32 4096, 4096
          %461 = vsyncadd [#allocation12], %s460
          %s462 = sshll.u32 [#allocation13], 4
          %s463 = int_to_ptr.vmem [resolvable:$true] %s462
          %468 = dma.hbm_to_vmem [thread:$0]  %s9, 4096, %s463, [#allocation12], 128, 128, 8
        $region44: #{tpu_custom_call.1} parent=11 // pred_fallthru
          _
        // Predicated region
        $region45: #{tpu_custom_call.1} parent=11 // pred_check
          %p469 = pneg %p276
        $region46: #{tpu_custom_call.1} parent=11 // pred_check_branch
          %471 = sbr.rel (%p469) target = $region48
        $region47: #{tpu_custom_call.1} parent=11 // pred_region
          %s473 = ssub.s32 4096, 4096
          %474 = vsyncadd [#allocation15], %s473
          %s475 = sshll.u32 [#allocation14], 4
          %s476 = int_to_ptr.vmem [resolvable:$true] %s475
          %481 = dma.hbm_to_vmem [thread:$0]  %s10, 4096, %s476, [#allocation15], 128, 128, 8
        $region48: #{tpu_custom_call.1} parent=11 // pred_fallthru
          _
        // Predicated region
        $region49: #{tpu_custom_call.1} parent=11 // pred_check
          %p482 = pneg %p297
        $region50: #{tpu_custom_call.1} parent=11 // pred_check_branch
          %484 = sbr.rel (%p482) target = $region52
        $region51: #{tpu_custom_call.1} parent=11 // pred_region
          %s486 = ssub.s32 8192, 8192
          %487 = vsyncadd [#allocation15], %s486
          %s488 = sshll.u32 [#allocation16], 4
          %s489 = int_to_ptr.vmem [resolvable:$true] %s488
          %494 = dma.hbm_to_vmem [thread:$0]  %s11, 8192, %s489, [#allocation15], 256, 256, 16
        $region52: #{tpu_custom_call.1} parent=11 // pred_fallthru
          _
        // Predicated region
        $region53: #{tpu_custom_call.1} parent=11 // pred_check
          %p495 = pneg %p318
        $region54: #{tpu_custom_call.1} parent=11 // pred_check_branch
          %497 = sbr.rel (%p495) target = $region56
        $region55: #{tpu_custom_call.1} parent=11 // pred_region
          %s499 = ssub.s32 4096, 4096
          %500 = vsyncadd [#allocation18], %s499
          %s501 = sshll.u32 [#allocation17], 4
          %s502 = int_to_ptr.vmem [resolvable:$true] %s501
          %507 = dma.hbm_to_vmem [thread:$0]  %s12, 4096, %s502, [#allocation18], 128, 128, 8
        $region56: #{tpu_custom_call.1} parent=11 // pred_fallthru
          _
        // Predicated region
        $region57: #{tpu_custom_call.1} parent=11 // pred_check
          %p508 = pneg %p339
        $region58: #{tpu_custom_call.1} parent=11 // pred_check_branch
          %510 = sbr.rel (%p508) target = $region60
        $region59: #{tpu_custom_call.1} parent=11 // pred_region
          %s512 = ssub.s32 16384, 16384
          %513 = vsyncadd [#allocation18], %s512
          %s514 = sshll.u32 [#allocation19], 4
          %s515 = int_to_ptr.vmem [resolvable:$true] %s514
          %520 = dma.hbm_to_vmem [thread:$0]  %s13, 16384, %s515, [#allocation18], 512, 512, 32
        $region60: #{tpu_custom_call.1} parent=11 // pred_fallthru
          _
        // Predicated region
        $region61: #{tpu_custom_call.1} parent=11 // pred_check
          %p521 = pneg %p360
        $region62: #{tpu_custom_call.1} parent=11 // pred_check_branch
          %523 = sbr.rel (%p521) target = $region64
        $region63: #{tpu_custom_call.1} parent=11 // pred_region
          %s525 = ssub.s32 16384, 16384
          %526 = vsyncadd [#allocation21], %s525
          %s527 = sshll.u32 [#allocation20], 4
          %s528 = int_to_ptr.vmem [resolvable:$true] %s527
          %533 = dma.hbm_to_vmem [thread:$0]  %s14, 16384, %s528, [#allocation21], 128, 128, 8
        $region64: #{tpu_custom_call.1} parent=11 // pred_fallthru
          _
      $region12: #{tpu_custom_call.1} parent=5 // pred_fallthru
        _
      %p534 = scmp.lt.s32.totalorder %s35, 2
      // Predicated region
      $region65: #{tpu_custom_call.1} parent=5 // pred_check
        %p535 = pneg %p534
      $region66: #{tpu_custom_call.1} parent=5 // pred_check_branch
        %537 = sbr.rel (%p535) target = $region68
      $region67: #{tpu_custom_call.1} parent=5 // pred_region
        // Predicated region
        $region69: #{tpu_custom_call.1} parent=67 // pred_check
          %p538 = pneg %p55
        $region70: #{tpu_custom_call.1} parent=67 // pred_check_branch
          %540 = sbr.rel (%p538) target = $region72
        $region71: #{tpu_custom_call.1} parent=67 // pred_region
          %s541 = sand.u32 %s45, 1
          %s542 = scalar_lea.sflag [#allocation3], %s541
          %s543 = sand.u32 %s45, 1
          %s544 = smul.addr %s543, 32
          %s545 = scalar_lea.vmem [#allocation2], %s544
          %s546 = smul.u32 2, %s35
          %s548 = ssub.s32 512, 512
          %549 = vsyncadd %s542, %s548
          %s550 = smul.addr %s546, 2
          %s551 = smul.addr %s550, 128
          %s552 = scalar_lea.hbm %s0, %s551
          %s553 = sshll.u32 %s545, 4
          %s554 = int_to_ptr.vmem [resolvable:$true] %s553
          %559 = dma.hbm_to_vmem [thread:$0]  %s552, 512, %s554, %s542, 256, 256, 16
        $region72: #{tpu_custom_call.1} parent=67 // pred_fallthru
          _
        // Predicated region
        $region73: #{tpu_custom_call.1} parent=67 // pred_check
          %p560 = pneg %p81
        $region74: #{tpu_custom_call.1} parent=67 // pred_check_branch
          %562 = sbr.rel (%p560) target = $region76
        $region75: #{tpu_custom_call.1} parent=67 // pred_region
          %s563 = sand.u32 %s35, 1
          %s564 = scalar_lea.sflag [#allocation6], %s563
          %s565 = sand.u32 %s71, 1
          %s566 = smul.addr %s565, 64
          %s567 = scalar_lea.vmem [#allocation5], %s566
          %s568 = smul.u32 2, %s35
          %s570 = ssub.s32 1024, 1024
          %571 = vsyncadd %s564, %s570
          %s572 = smul.addr %s568, 4
          %s573 = smul.addr %s572, 128
          %s574 = scalar_lea.hbm %s1, %s573
          %s575 = sshll.u32 %s567, 4
          %s576 = int_to_ptr.vmem [resolvable:$true] %s575
          %581 = dma.hbm_to_vmem [thread:$0]  %s574, 1024, %s576, %s564, 256, 256, 16
        $region76: #{tpu_custom_call.1} parent=67 // pred_fallthru
          _
      $region68: #{tpu_custom_call.1} parent=5 // pred_fallthru
        _
      %p582 = scmp.le.s32.totalorder 1, %s35
      %p583 = scmp.lt.s32.totalorder %s35, 3
      %p584 = pnand %p582, %p583
      %p585 = pneg %p584
      // Predicated region
      $region77: #{tpu_custom_call.1} parent=5 // pred_check
        _
      $region78: #{tpu_custom_call.1} parent=5 // pred_check_branch
        %587 = sbr.rel (%p584) target = $region80
      $region79: #{tpu_custom_call.1} parent=5 // pred_region
        %s588 = ssub.s32 %s35, 1
        %s589 = sand.u32 %s48, 1
        %s590 = scalar_lea.sflag [#allocation3], %s589
        %s591 = sand.u32 %s48, 1
        %s592 = smul.addr %s591, 32
        %s593 = scalar_lea.vmem [#allocation2], %s592
        // Predicated region
        $region81: #{tpu_custom_call.1} parent=79 // pred_check
          %p594 = pneg %p61
        $region82: #{tpu_custom_call.1} parent=79 // pred_check_branch
          %596 = sbr.rel (%p594) target = $region84
        $region83: #{tpu_custom_call.1} parent=79 // pred_region
          %597 = dma.done %s590, 512
        $region84: #{tpu_custom_call.1} parent=79 // pred_fallthru
          _
        %s598 = sand.u32 %s40, 1
        %s599 = scalar_lea.sflag [#allocation6], %s598
        %s600 = sand.u32 %s74, 1
        %s601 = smul.addr %s600, 64
        %s602 = scalar_lea.vmem [#allocation5], %s601
        // Predicated region
        $region85: #{tpu_custom_call.1} parent=79 // pred_check
          %p603 = pneg %p87
        $region86: #{tpu_custom_call.1} parent=79 // pred_check_branch
          %605 = sbr.rel (%p603) target = $region88
        $region87: #{tpu_custom_call.1} parent=79 // pred_region
          %606 = dma.done %s599, 1024
        $region88: #{tpu_custom_call.1} parent=79 // pred_fallthru
          _
        // Predicated region
        $region89: #{tpu_custom_call.1} parent=79 // pred_check
          %p607 = pneg %p108
        $region90: #{tpu_custom_call.1} parent=79 // pred_check_branch
          %609 = sbr.rel (%p607) target = $region92
        $region91: #{tpu_custom_call.1} parent=79 // pred_region
          %610 = dma.done [#allocation6], 128
        $region92: #{tpu_custom_call.1} parent=79 // pred_fallthru
          _
        // Predicated region
        $region93: #{tpu_custom_call.1} parent=79 // pred_check
          %p611 = pneg %p129
        $region94: #{tpu_custom_call.1} parent=79 // pred_check_branch
          %613 = sbr.rel (%p611) target = $region96
        $region95: #{tpu_custom_call.1} parent=79 // pred_region
          %614 = dma.done [#allocation9], 128
        $region96: #{tpu_custom_call.1} parent=79 // pred_fallthru
          _
        // Predicated region
        $region97: #{tpu_custom_call.1} parent=79 // pred_check
          %p615 = pneg %p150
        $region98: #{tpu_custom_call.1} parent=79 // pred_check_branch
          %617 = sbr.rel (%p615) target = $region100
        $region99: #{tpu_custom_call.1} parent=79 // pred_region
          %618 = dma.done [#allocation9], 128
        $region100: #{tpu_custom_call.1} parent=79 // pred_fallthru
          _
        // Predicated region
        $region101: #{tpu_custom_call.1} parent=79 // pred_check
          %p619 = pneg %p234
        $region102: #{tpu_custom_call.1} parent=79 // pred_check_branch
          %621 = sbr.rel (%p619) target = $region104
        $region103: #{tpu_custom_call.1} parent=79 // pred_region
          %622 = dma.done [#allocation12], 12288
        $region104: #{tpu_custom_call.1} parent=79 // pred_fallthru
          _
        // Predicated region
        $region105: #{tpu_custom_call.1} parent=79 // pred_check
          %p623 = pneg %p255
        $region106: #{tpu_custom_call.1} parent=79 // pred_check_branch
          %625 = sbr.rel (%p623) target = $region108
        $region107: #{tpu_custom_call.1} parent=79 // pred_region
          %626 = dma.done [#allocation12], 4096
        $region108: #{tpu_custom_call.1} parent=79 // pred_fallthru
          _
        // Predicated region
        $region109: #{tpu_custom_call.1} parent=79 // pred_check
          %p627 = pneg %p276
        $region110: #{tpu_custom_call.1} parent=79 // pred_check_branch
          %629 = sbr.rel (%p627) target = $region112
        $region111: #{tpu_custom_call.1} parent=79 // pred_region
          %630 = dma.done [#allocation15], 4096
        $region112: #{tpu_custom_call.1} parent=79 // pred_fallthru
          _
        // Predicated region
        $region113: #{tpu_custom_call.1} parent=79 // pred_check
          %p631 = pneg %p297
        $region114: #{tpu_custom_call.1} parent=79 // pred_check_branch
          %633 = sbr.rel (%p631) target = $region116
        $region115: #{tpu_custom_call.1} parent=79 // pred_region
          %634 = dma.done [#allocation15], 8192
        $region116: #{tpu_custom_call.1} parent=79 // pred_fallthru
          _
        // Predicated region
        $region117: #{tpu_custom_call.1} parent=79 // pred_check
          %p635 = pneg %p318
        $region118: #{tpu_custom_call.1} parent=79 // pred_check_branch
          %637 = sbr.rel (%p635) target = $region120
        $region119: #{tpu_custom_call.1} parent=79 // pred_region
          %638 = dma.done [#allocation18], 4096
        $region120: #{tpu_custom_call.1} parent=79 // pred_fallthru
          _
        // Predicated region
        $region121: #{tpu_custom_call.1} parent=79 // pred_check
          %p639 = pneg %p339
        $region122: #{tpu_custom_call.1} parent=79 // pred_check_branch
          %641 = sbr.rel (%p639) target = $region124
        $region123: #{tpu_custom_call.1} parent=79 // pred_region
          %642 = dma.done [#allocation18], 16384
        $region124: #{tpu_custom_call.1} parent=79 // pred_fallthru
          _
        // Predicated region
        $region125: #{tpu_custom_call.1} parent=79 // pred_check
          %p643 = pneg %p360
        $region126: #{tpu_custom_call.1} parent=79 // pred_check_branch
          %645 = sbr.rel (%p643) target = $region128
        $region127: #{tpu_custom_call.1} parent=79 // pred_region
          %646 = dma.done [#allocation21], 16384
        $region128: #{tpu_custom_call.1} parent=79 // pred_fallthru
          _
        %s647 = sand.u32 %s48, 1
        %s648 = scalar_lea.sflag [#allocation3], %s647
        %s649 = sand.u32 %s48, 1
        %s650 = smul.addr %s649, 32
        %s651 = scalar_lea.vmem [#allocation2], %s650
        %p652 = pneg %p61
        %p653 = pneg %p58
        %s654 = sand.u32 %s40, 1
        %s655 = scalar_lea.sflag [#allocation6], %s654
        %s656 = sand.u32 %s74, 1
        %s657 = smul.addr %s656, 64
        %s658 = scalar_lea.vmem [#allocation5], %s657
        %p659 = pneg %p87
        %p660 = pneg %p84
        %p661 = pneg %p108
        %p662 = pneg %p105
        %p663 = pneg %p129
        %p664 = pneg %p126
        %p665 = pneg %p150
        %p666 = pneg %p147
        %p667 = pneg %p171
        %p668 = pneg %p168
        %p669 = pneg %p192
        %p670 = pneg %p189
        %p671 = pneg %p213
        %p672 = pneg %p210
        %p673 = pneg %p234
        %p674 = pneg %p231
        %p675 = pneg %p255
        %p676 = pneg %p252
        %p677 = pneg %p276
        %p678 = pneg %p273
        %p679 = pneg %p297
        %p680 = pneg %p294
        %p681 = pneg %p318
        %p682 = pneg %p315
        %p683 = pneg %p339
        %p684 = pneg %p336
        %p685 = pneg %p360
        %p686 = pneg %p357
        %p687 = pneg %p386
        %p688 = pneg %p383
        %s689 = sand.u32 %s373, 1
        %s690 = scalar_lea.sflag [#allocation4], %s689
        %s691 = sand.u32 %s373, 1
        %s692 = smul.addr %s691, 32
        %s693 = scalar_lea.vmem [#allocation22], %s692
        %s694 = smul.u32 2, %s40
        %s695 = smul.u32 2, %s40
        %s696 = smul.u32 2, %s40
        %v698 = vld [vmem:[%s593] sm:$0xff]
        %v699 = vld [vmem:[%s593 + $0x8] sm:$0xff]
        %v700 = vld [vmem:[%s593 + $0x10] sm:$0xff]
        %v701 = vld [vmem:[%s593 + $0x18] sm:$0xff]
        %v702 = vld [vmem:[%s602] sm:$0xff]
        %v703 = vld [vmem:[%s602 + $0x8] sm:$0xff]
        %v704 = vld [vmem:[%s602 + $0x10] sm:$0xff]
        %v705 = vld [vmem:[%s602 + $0x18] sm:$0xff]
        %v706 = vld [vmem:[%s602 + $0x20] sm:$0xff]
        %v707 = vld [vmem:[%s602 + $0x28] sm:$0xff]
        %v708 = vld [vmem:[%s602 + $0x30] sm:$0xff]
        %v709 = vld [vmem:[%s602 + $0x38] sm:$0xff]
        %v710 = vld [vmem:[#allocation7] sm:$0xff]
        %v711 = vld [vmem:[#allocation8] sm:$0xff]
        %v712 = vld [vmem:[#allocation10] sm:$0xff]
        %v713 = vadd.f32 %v698, %v699
        %714 = vadd.xlane.f32.xlu0 %v713
        %v715 = vpop.xlane.xlu0 %714
        %v716 = vadd.f32 %v700, %v701
        %717 = vadd.xlane.f32.xlu0 %v716
        %v718 = vpop.xlane.xlu0 %717
        %v719 = vrcp.pop 256.0
        %v720 = vmul.f32 %v715, %v719
        %v721 = vmul.f32 %v718, %v719
        %v722 = vsub.f32 %v698, %v720
        %v723 = vsub.f32 %v699, %v720
        %v724 = vsub.f32 %v700, %v721
        %v725 = vsub.f32 %v701, %v721
        %v726 = vmul.f32 %v722, %v722
        %v727 = vmul.f32 %v723, %v723
        %v728 = vmul.f32 %v724, %v724
        %v729 = vmul.f32 %v725, %v725
        %v730 = vadd.f32 %v726, %v727
        %731 = vadd.xlane.f32.xlu0 %v730
        %v732 = vpop.xlane.xlu0 %731
        %v733 = vadd.f32 %v728, %v729
        %734 = vadd.xlane.f32.xlu0 %v733
        %v735 = vpop.xlane.xlu0 %734
        %v736 = vmul.f32 %v732, %v719
        %v737 = vmul.f32 %v735, %v719
        %v738 = vadd.f32 %v736, 1e-05
        %v739 = vadd.f32 %v737, 1e-05
        %v740 = vrsqrt.pop %v738
        %v741 = vrsqrt.pop %v739
        %v742 = vmul.f32 %v722, %v740
        %v743 = vmul.f32 %v723, %v740
        %v744 = vmul.f32 %v724, %v741
        %v745 = vmul.f32 %v725, %v741
        %v746 = vld [vmem:[%s5] sm:$0x3]
        %v748 = vlaneseq
        %v749 = vshrl.u32 %v748, 7
        %v750 = vsub.s32 0, %v749
        %v751 = vrot.slane %v746, %v750
        %v752 = vlaneseq
        %v753 = vshrl.u32 %v752, 7
        %v754 = vsub.s32 1, %v753
        %v755 = vrot.slane %v746, %v754
        %v758 = vmul.f32 %v742, %v751
        %v759 = vmul.f32 %v743, %v755
        %v760 = vmul.f32 %v744, %v751
        %v761 = vmul.f32 %v745, %v755
        %v762 = vpack.c.bf16 %v760, %v758
        %v763 = vpack.c.bf16 %v761, %v759
        %v764 = vld [vmem:[#allocation11] sm:$0xff]
        %v765 = vld [vmem:[#allocation11 + $0x8] sm:$0xff]
        %v766 = vld [vmem:[#allocation11 + $0x10] sm:$0xff]
        %v767 = vld [vmem:[#allocation11 + $0x18] sm:$0xff]
        %v768 = vld [vmem:[#allocation11 + $0x20] sm:$0xff]
        %v769 = vld [vmem:[#allocation11 + $0x28] sm:$0xff]
        %v770 = vld [vmem:[#allocation11 + $0x30] sm:$0xff]
        %v771 = vld [vmem:[#allocation11 + $0x38] sm:$0xff]
        %v772 = vld [vmem:[#allocation11 + $0x40] sm:$0xff]
        %v773 = vld [vmem:[#allocation11 + $0x48] sm:$0xff]
        %v774 = vld [vmem:[#allocation11 + $0x50] sm:$0xff]
        %v775 = vld [vmem:[#allocation11 + $0x58] sm:$0xff]
        %v776 = vld [vmem:[#allocation11 + $0x60] sm:$0xff]
        %v777 = vld [vmem:[#allocation11 + $0x68] sm:$0xff]
        %v778 = vld [vmem:[#allocation11 + $0x70] sm:$0xff]
        %v779 = vld [vmem:[#allocation11 + $0x78] sm:$0xff]
        %v780 = vld [vmem:[#allocation11 + $0x80] sm:$0xff]
        %v781 = vld [vmem:[#allocation11 + $0x88] sm:$0xff]
        %v782 = vld [vmem:[#allocation11 + $0x90] sm:$0xff]
        %v783 = vld [vmem:[#allocation11 + $0x98] sm:$0xff]
        %v784 = vld [vmem:[#allocation11 + $0xa0] sm:$0xff]
        %v785 = vld [vmem:[#allocation11 + $0xa8] sm:$0xff]
        %v786 = vld [vmem:[#allocation11 + $0xb0] sm:$0xff]
        %v787 = vld [vmem:[#allocation11 + $0xb8] sm:$0xff]
        %v788 = vld [vmem:[#allocation11 + $0xc0] sm:$0xff]
        %v789 = vld [vmem:[#allocation11 + $0xc8] sm:$0xff]
        %v790 = vld [vmem:[#allocation11 + $0xd0] sm:$0xff]
        %v791 = vld [vmem:[#allocation11 + $0xd8] sm:$0xff]
        %v792 = vld [vmem:[#allocation11 + $0xe0] sm:$0xff]
        %v793 = vld [vmem:[#allocation11 + $0xe8] sm:$0xff]
        %v794 = vld [vmem:[#allocation11 + $0xf0] sm:$0xff]
        %v795 = vld [vmem:[#allocation11 + $0xf8] sm:$0xff]
        %v796 = vld [vmem:[#allocation11 + $0x100] sm:$0xff]
        %v797 = vld [vmem:[#allocation11 + $0x108] sm:$0xff]
        %v798 = vld [vmem:[#allocation11 + $0x110] sm:$0xff]
        %v799 = vld [vmem:[#allocation11 + $0x118] sm:$0xff]
        %v800 = vld [vmem:[#allocation11 + $0x120] sm:$0xff]
        %v801 = vld [vmem:[#allocation11 + $0x128] sm:$0xff]
        %v802 = vld [vmem:[#allocation11 + $0x130] sm:$0xff]
        %v803 = vld [vmem:[#allocation11 + $0x138] sm:$0xff]
        %v804 = vld [vmem:[#allocation11 + $0x140] sm:$0xff]
        %v805 = vld [vmem:[#allocation11 + $0x148] sm:$0xff]
        %v806 = vld [vmem:[#allocation11 + $0x150] sm:$0xff]
        %v807 = vld [vmem:[#allocation11 + $0x158] sm:$0xff]
        %v808 = vld [vmem:[#allocation11 + $0x160] sm:$0xff]
        %v809 = vld [vmem:[#allocation11 + $0x168] sm:$0xff]
        %v810 = vld [vmem:[#allocation11 + $0x170] sm:$0xff]
        %v811 = vld [vmem:[#allocation11 + $0x178] sm:$0xff]
        %v812 = vld [vmem:[#allocation11 + $0x180] sm:$0xff]
        %v813 = vld [vmem:[#allocation11 + $0x188] sm:$0xff]
        %v814 = vld [vmem:[#allocation11 + $0x190] sm:$0xff]
        %v815 = vld [vmem:[#allocation11 + $0x198] sm:$0xff]
        %v816 = vld [vmem:[#allocation11 + $0x1a0] sm:$0xff]
        %v817 = vld [vmem:[#allocation11 + $0x1a8] sm:$0xff]
        %v818 = vld [vmem:[#allocation11 + $0x1b0] sm:$0xff]
        %v819 = vld [vmem:[#allocation11 + $0x1b8] sm:$0xff]
        %v820 = vld [vmem:[#allocation11 + $0x1c0] sm:$0xff]
        %v821 = vld [vmem:[#allocation11 + $0x1c8] sm:$0xff]
        %v822 = vld [vmem:[#allocation11 + $0x1d0] sm:$0xff]
        %v823 = vld [vmem:[#allocation11 + $0x1d8] sm:$0xff]
        %v824 = vld [vmem:[#allocation11 + $0x1e0] sm:$0xff]
        %v825 = vld [vmem:[#allocation11 + $0x1e8] sm:$0xff]
        %v826 = vld [vmem:[#allocation11 + $0x1f0] sm:$0xff]
        %v827 = vld [vmem:[#allocation11 + $0x1f8] sm:$0xff]
        %v828 = vld [vmem:[#allocation11 + $0x200] sm:$0xff]
        %v829 = vld [vmem:[#allocation11 + $0x208] sm:$0xff]
        %v830 = vld [vmem:[#allocation11 + $0x210] sm:$0xff]
        %v831 = vld [vmem:[#allocation11 + $0x218] sm:$0xff]
        %v832 = vld [vmem:[#allocation11 + $0x220] sm:$0xff]
        %v833 = vld [vmem:[#allocation11 + $0x228] sm:$0xff]
        %v834 = vld [vmem:[#allocation11 + $0x230] sm:$0xff]
        %v835 = vld [vmem:[#allocation11 + $0x238] sm:$0xff]
        %v836 = vld [vmem:[#allocation11 + $0x240] sm:$0xff]
        %v837 = vld [vmem:[#allocation11 + $0x248] sm:$0xff]
        %v838 = vld [vmem:[#allocation11 + $0x250] sm:$0xff]
        %v839 = vld [vmem:[#allocation11 + $0x258] sm:$0xff]
        %v840 = vld [vmem:[#allocation11 + $0x260] sm:$0xff]
        %v841 = vld [vmem:[#allocation11 + $0x268] sm:$0xff]
        %v842 = vld [vmem:[#allocation11 + $0x270] sm:$0xff]
        %v843 = vld [vmem:[#allocation11 + $0x278] sm:$0xff]
        %v844 = vld [vmem:[#allocation11 + $0x280] sm:$0xff]
        %v845 = vld [vmem:[#allocation11 + $0x288] sm:$0xff]
        %v846 = vld [vmem:[#allocation11 + $0x290] sm:$0xff]
        %v847 = vld [vmem:[#allocation11 + $0x298] sm:$0xff]
        %v848 = vld [vmem:[#allocation11 + $0x2a0] sm:$0xff]
        %v849 = vld [vmem:[#allocation11 + $0x2a8] sm:$0xff]
        %v850 = vld [vmem:[#allocation11 + $0x2b0] sm:$0xff]
        %v851 = vld [vmem:[#allocation11 + $0x2b8] sm:$0xff]
        %v852 = vld [vmem:[#allocation11 + $0x2c0] sm:$0xff]
        %v853 = vld [vmem:[#allocation11 + $0x2c8] sm:$0xff]
        %v854 = vld [vmem:[#allocation11 + $0x2d0] sm:$0xff]
        %v855 = vld [vmem:[#allocation11 + $0x2d8] sm:$0xff]
        %v856 = vld [vmem:[#allocation11 + $0x2e0] sm:$0xff]
        %v857 = vld [vmem:[#allocation11 + $0x2e8] sm:$0xff]
        %v858 = vld [vmem:[#allocation11 + $0x2f0] sm:$0xff]
        %v859 = vld [vmem:[#allocation11 + $0x2f8] sm:$0xff]
        %v956 = vunpack.c.l.b16 %v764
        %v957 = vunpack.c.h.b16 %v764
        %v958 = vunpack.c.l.b16 %v765
        %v959 = vunpack.c.h.b16 %v765
        %v960 = vunpack.c.l.b16 %v766
        %v961 = vunpack.c.h.b16 %v766
        %v962 = vunpack.c.l.b16 %v767
        %v963 = vunpack.c.h.b16 %v767
        %v964 = vunpack.c.l.b16 %v768
        %v965 = vunpack.c.h.b16 %v768
        %v966 = vunpack.c.l.b16 %v769
        %v967 = vunpack.c.h.b16 %v769
        %v968 = vunpack.c.l.b16 %v770
        %v969 = vunpack.c.h.b16 %v770
        %v970 = vunpack.c.l.b16 %v771
        %v971 = vunpack.c.h.b16 %v771
        %v972 = vunpack.c.l.b16 %v772
        %v973 = vunpack.c.h.b16 %v772
        %v974 = vunpack.c.l.b16 %v773
        %v975 = vunpack.c.h.b16 %v773
        %v976 = vunpack.c.l.b16 %v774
        %v977 = vunpack.c.h.b16 %v774
        %v978 = vunpack.c.l.b16 %v775
        %v979 = vunpack.c.h.b16 %v775
        %v980 = vunpack.c.l.b16 %v776
        %v981 = vunpack.c.h.b16 %v776
        %v982 = vunpack.c.l.b16 %v777
        %v983 = vunpack.c.h.b16 %v777
        %v984 = vunpack.c.l.b16 %v778
        %v985 = vunpack.c.h.b16 %v778
        %v986 = vunpack.c.l.b16 %v779
        %v987 = vunpack.c.h.b16 %v779
        %v988 = vunpack.c.l.b16 %v780
        %v989 = vunpack.c.h.b16 %v780
        %v990 = vunpack.c.l.b16 %v781
        %v991 = vunpack.c.h.b16 %v781
        %v992 = vunpack.c.l.b16 %v782
        %v993 = vunpack.c.h.b16 %v782
        %v994 = vunpack.c.l.b16 %v783
        %v995 = vunpack.c.h.b16 %v783
        %v996 = vunpack.c.l.b16 %v784
        %v997 = vunpack.c.h.b16 %v784
        %v998 = vunpack.c.l.b16 %v785
        %v999 = vunpack.c.h.b16 %v785
        %v1000 = vunpack.c.l.b16 %v786
        %v1001 = vunpack.c.h.b16 %v786
        %v1002 = vunpack.c.l.b16 %v787
        %v1003 = vunpack.c.h.b16 %v787
        %v1004 = vunpack.c.l.b16 %v788
        %v1005 = vunpack.c.h.b16 %v788
        %v1006 = vunpack.c.l.b16 %v789
        %v1007 = vunpack.c.h.b16 %v789
        %v1008 = vunpack.c.l.b16 %v790
        %v1009 = vunpack.c.h.b16 %v790
        %v1010 = vunpack.c.l.b16 %v791
        %v1011 = vunpack.c.h.b16 %v791
        %v1012 = vunpack.c.l.b16 %v792
        %v1013 = vunpack.c.h.b16 %v792
        %v1014 = vunpack.c.l.b16 %v793
        %v1015 = vunpack.c.h.b16 %v793
        %v1016 = vunpack.c.l.b16 %v794
        %v1017 = vunpack.c.h.b16 %v794
        %v1018 = vunpack.c.l.b16 %v795
        %v1019 = vunpack.c.h.b16 %v795
        %v1020 = vunpack.c.l.b16 %v796
        %v1021 = vunpack.c.h.b16 %v796
        %v1022 = vunpack.c.l.b16 %v797
        %v1023 = vunpack.c.h.b16 %v797
        %v1024 = vunpack.c.l.b16 %v798
        %v1025 = vunpack.c.h.b16 %v798
        %v1026 = vunpack.c.l.b16 %v799
        %v1027 = vunpack.c.h.b16 %v799
        %v1028 = vunpack.c.l.b16 %v800
        %v1029 = vunpack.c.h.b16 %v800
        %v1030 = vunpack.c.l.b16 %v801
        %v1031 = vunpack.c.h.b16 %v801
        %v1032 = vunpack.c.l.b16 %v802
        %v1033 = vunpack.c.h.b16 %v802
        %v1034 = vunpack.c.l.b16 %v803
        %v1035 = vunpack.c.h.b16 %v803
        %v1036 = vunpack.c.l.b16 %v804
        %v1037 = vunpack.c.h.b16 %v804
        %v1038 = vunpack.c.l.b16 %v805
        %v1039 = vunpack.c.h.b16 %v805
        %v1040 = vunpack.c.l.b16 %v806
        %v1041 = vunpack.c.h.b16 %v806
        %v1042 = vunpack.c.l.b16 %v807
        %v1043 = vunpack.c.h.b16 %v807
        %v1044 = vunpack.c.l.b16 %v808
        %v1045 = vunpack.c.h.b16 %v808
        %v1046 = vunpack.c.l.b16 %v809
        %v1047 = vunpack.c.h.b16 %v809
        %v1048 = vunpack.c.l.b16 %v810
        %v1049 = vunpack.c.h.b16 %v810
        %v1050 = vunpack.c.l.b16 %v811
        %v1051 = vunpack.c.h.b16 %v811
        %v1052 = vunpack.c.l.b16 %v812
        %v1053 = vunpack.c.h.b16 %v812
        %v1054 = vunpack.c.l.b16 %v813
        %v1055 = vunpack.c.h.b16 %v813
        %v1056 = vunpack.c.l.b16 %v814
        %v1057 = vunpack.c.h.b16 %v814
        %v1058 = vunpack.c.l.b16 %v815
        %v1059 = vunpack.c.h.b16 %v815
        %v1060 = vunpack.c.l.b16 %v816
        %v1061 = vunpack.c.h.b16 %v816
        %v1062 = vunpack.c.l.b16 %v817
        %v1063 = vunpack.c.h.b16 %v817
        %v1064 = vunpack.c.l.b16 %v818
        %v1065 = vunpack.c.h.b16 %v818
        %v1066 = vunpack.c.l.b16 %v819
        %v1067 = vunpack.c.h.b16 %v819
        %v1068 = vunpack.c.l.b16 %v820
        %v1069 = vunpack.c.h.b16 %v820
        %v1070 = vunpack.c.l.b16 %v821
        %v1071 = vunpack.c.h.b16 %v821
        %v1072 = vunpack.c.l.b16 %v822
        %v1073 = vunpack.c.h.b16 %v822
        %v1074 = vunpack.c.l.b16 %v823
        %v1075 = vunpack.c.h.b16 %v823
        %v1076 = vunpack.c.l.b16 %v824
        %v1077 = vunpack.c.h.b16 %v824
        %v1078 = vunpack.c.l.b16 %v825
        %v1079 = vunpack.c.h.b16 %v825
        %v1080 = vunpack.c.l.b16 %v826
        %v1081 = vunpack.c.h.b16 %v826
        %v1082 = vunpack.c.l.b16 %v827
        %v1083 = vunpack.c.h.b16 %v827
        %v1084 = vunpack.c.l.b16 %v828
        %v1085 = vunpack.c.h.b16 %v828
        %v1086 = vunpack.c.l.b16 %v829
        %v1087 = vunpack.c.h.b16 %v829
        %v1088 = vunpack.c.l.b16 %v830
        %v1089 = vunpack.c.h.b16 %v830
        %v1090 = vunpack.c.l.b16 %v831
        %v1091 = vunpack.c.h.b16 %v831
        %v1092 = vunpack.c.l.b16 %v832
        %v1093 = vunpack.c.h.b16 %v832
        %v1094 = vunpack.c.l.b16 %v833
        %v1095 = vunpack.c.h.b16 %v833
        %v1096 = vunpack.c.l.b16 %v834
        %v1097 = vunpack.c.h.b16 %v834
        %v1098 = vunpack.c.l.b16 %v835
        %v1099 = vunpack.c.h.b16 %v835
        %v1100 = vunpack.c.l.b16 %v836
        %v1101 = vunpack.c.h.b16 %v836
        %v1102 = vunpack.c.l.b16 %v837
        %v1103 = vunpack.c.h.b16 %v837
        %v1104 = vunpack.c.l.b16 %v838
        %v1105 = vunpack.c.h.b16 %v838
        %v1106 = vunpack.c.l.b16 %v839
        %v1107 = vunpack.c.h.b16 %v839
        %v1108 = vunpack.c.l.b16 %v840
        %v1109 = vunpack.c.h.b16 %v840
        %v1110 = vunpack.c.l.b16 %v841
        %v1111 = vunpack.c.h.b16 %v841
        %v1112 = vunpack.c.l.b16 %v842
        %v1113 = vunpack.c.h.b16 %v842
        %v1114 = vunpack.c.l.b16 %v843
        %v1115 = vunpack.c.h.b16 %v843
        %v1116 = vunpack.c.l.b16 %v844
        %v1117 = vunpack.c.h.b16 %v844
        %v1118 = vunpack.c.l.b16 %v845
        %v1119 = vunpack.c.h.b16 %v845
        %v1120 = vunpack.c.l.b16 %v846
        %v1121 = vunpack.c.h.b16 %v846
        %v1122 = vunpack.c.l.b16 %v847
        %v1123 = vunpack.c.h.b16 %v847
        %v1124 = vunpack.c.l.b16 %v848
        %v1125 = vunpack.c.h.b16 %v848
        %v1126 = vunpack.c.l.b16 %v849
        %v1127 = vunpack.c.h.b16 %v849
        %v1128 = vunpack.c.l.b16 %v850
        %v1129 = vunpack.c.h.b16 %v850
        %v1130 = vunpack.c.l.b16 %v851
        %v1131 = vunpack.c.h.b16 %v851
        %v1132 = vunpack.c.l.b16 %v852
        %v1133 = vunpack.c.h.b16 %v852
        %v1134 = vunpack.c.l.b16 %v853
        %v1135 = vunpack.c.h.b16 %v853
        %v1136 = vunpack.c.l.b16 %v854
        %v1137 = vunpack.c.h.b16 %v854
        %v1138 = vunpack.c.l.b16 %v855
        %v1139 = vunpack.c.h.b16 %v855
        %v1140 = vunpack.c.l.b16 %v856
        %v1141 = vunpack.c.h.b16 %v856
        %v1142 = vunpack.c.l.b16 %v857
        %v1143 = vunpack.c.h.b16 %v857
        %v1144 = vunpack.c.l.b16 %v858
        %v1145 = vunpack.c.h.b16 %v858
        %v1146 = vunpack.c.l.b16 %v859
        %v1147 = vunpack.c.h.b16 %v859
        %v1148 = vpack.c.b16 %v962, %v956
        %v1149 = vpack.c.b16 %v963, %v957
        %v1150 = vpack.c.b16 %v964, %v958
        %v1151 = vpack.c.b16 %v965, %v959
        %v1152 = vpack.c.b16 %v966, %v960
        %v1153 = vpack.c.b16 %v967, %v961
        %v1154 = vpack.c.b16 %v974, %v968
        %v1155 = vpack.c.b16 %v975, %v969
        %v1156 = vpack.c.b16 %v976, %v970
        %v1157 = vpack.c.b16 %v977, %v971
        %v1158 = vpack.c.b16 %v978, %v972
        %v1159 = vpack.c.b16 %v979, %v973
        %v1160 = vpack.c.b16 %v986, %v980
        %v1161 = vpack.c.b16 %v987, %v981
        %v1162 = vpack.c.b16 %v988, %v982
        %v1163 = vpack.c.b16 %v989, %v983
        %v1164 = vpack.c.b16 %v990, %v984
        %v1165 = vpack.c.b16 %v991, %v985
        %v1166 = vpack.c.b16 %v998, %v992
        %v1167 = vpack.c.b16 %v999, %v993
        %v1168 = vpack.c.b16 %v1000, %v994
        %v1169 = vpack.c.b16 %v1001, %v995
        %v1170 = vpack.c.b16 %v1002, %v996
        %v1171 = vpack.c.b16 %v1003, %v997
        %v1172 = vpack.c.b16 %v1010, %v1004
        %v1173 = vpack.c.b16 %v1011, %v1005
        %v1174 = vpack.c.b16 %v1012, %v1006
        %v1175 = vpack.c.b16 %v1013, %v1007
        %v1176 = vpack.c.b16 %v1014, %v1008
        %v1177 = vpack.c.b16 %v1015, %v1009
        %v1178 = vpack.c.b16 %v1022, %v1016
        %v1179 = vpack.c.b16 %v1023, %v1017
        %v1180 = vpack.c.b16 %v1024, %v1018
        %v1181 = vpack.c.b16 %v1025, %v1019
        %v1182 = vpack.c.b16 %v1026, %v1020
        %v1183 = vpack.c.b16 %v1027, %v1021
        %v1184 = vpack.c.b16 %v1034, %v1028
        %v1185 = vpack.c.b16 %v1035, %v1029
        %v1186 = vpack.c.b16 %v1036, %v1030
        %v1187 = vpack.c.b16 %v1037, %v1031
        %v1188 = vpack.c.b16 %v1038, %v1032
        %v1189 = vpack.c.b16 %v1039, %v1033
        %v1190 = vpack.c.b16 %v1046, %v1040
        %v1191 = vpack.c.b16 %v1047, %v1041
        %v1192 = vpack.c.b16 %v1048, %v1042
        %v1193 = vpack.c.b16 %v1049, %v1043
        %v1194 = vpack.c.b16 %v1050, %v1044
        %v1195 = vpack.c.b16 %v1051, %v1045
        %v1196 = vpack.c.b16 %v1058, %v1052
        %v1197 = vpack.c.b16 %v1059, %v1053
        %v1198 = vpack.c.b16 %v1060, %v1054
        %v1199 = vpack.c.b16 %v1061, %v1055
        %v1200 = vpack.c.b16 %v1062, %v1056
        %v1201 = vpack.c.b16 %v1063, %v1057
        %v1202 = vpack.c.b16 %v1070, %v1064
        %v1203 = vpack.c.b16 %v1071, %v1065
        %v1204 = vpack.c.b16 %v1072, %v1066
        %v1205 = vpack.c.b16 %v1073, %v1067
        %v1206 = vpack.c.b16 %v1074, %v1068
        %v1207 = vpack.c.b16 %v1075, %v1069
        %v1208 = vpack.c.b16 %v1082, %v1076
        %v1209 = vpack.c.b16 %v1083, %v1077
        %v1210 = vpack.c.b16 %v1084, %v1078
        %v1211 = vpack.c.b16 %v1085, %v1079
        %v1212 = vpack.c.b16 %v1086, %v1080
        %v1213 = vpack.c.b16 %v1087, %v1081
        %v1214 = vpack.c.b16 %v1094, %v1088
        %v1215 = vpack.c.b16 %v1095, %v1089
        %v1216 = vpack.c.b16 %v1096, %v1090
        %v1217 = vpack.c.b16 %v1097, %v1091
        %v1218 = vpack.c.b16 %v1098, %v1092
        %v1219 = vpack.c.b16 %v1099, %v1093
        %v1220 = vpack.c.b16 %v1106, %v1100
        %v1221 = vpack.c.b16 %v1107, %v1101
        %v1222 = vpack.c.b16 %v1108, %v1102
        %v1223 = vpack.c.b16 %v1109, %v1103
        %v1224 = vpack.c.b16 %v1110, %v1104
        %v1225 = vpack.c.b16 %v1111, %v1105
        %v1226 = vpack.c.b16 %v1118, %v1112
        %v1227 = vpack.c.b16 %v1119, %v1113
        %v1228 = vpack.c.b16 %v1120, %v1114
        %v1229 = vpack.c.b16 %v1121, %v1115
        %v1230 = vpack.c.b16 %v1122, %v1116
        %v1231 = vpack.c.b16 %v1123, %v1117
        %v1232 = vpack.c.b16 %v1130, %v1124
        %v1233 = vpack.c.b16 %v1131, %v1125
        %v1234 = vpack.c.b16 %v1132, %v1126
        %v1235 = vpack.c.b16 %v1133, %v1127
        %v1236 = vpack.c.b16 %v1134, %v1128
        %v1237 = vpack.c.b16 %v1135, %v1129
        %v1238 = vpack.c.b16 %v1142, %v1136
        %v1239 = vpack.c.b16 %v1143, %v1137
        %v1240 = vpack.c.b16 %v1144, %v1138
        %v1241 = vpack.c.b16 %v1145, %v1139
        %v1242 = vpack.c.b16 %v1146, %v1140
        %v1243 = vpack.c.b16 %v1147, %v1141
        %1340 = vmatprep.subr.bf16.mxu0 %v1191
        %1341 = vmatpush1.bf16.msra.mxu0 %v1190
        %1342 = vmatprep.subr.bf16.mxu0 %v1185
        %1343 = vmatpush1.bf16.msra.mxu0 %v1184
        %1344 = vmatprep.subr.bf16.mxu0 %v1179
        %1345 = vmatpush1.bf16.msra.mxu0 %v1178
        %1346 = vmatprep.subr.bf16.mxu0 %v1173
        %1347 = vmatpush1.bf16.msra.mxu0 %v1172
        %1348 = vmatprep.subr.bf16.mxu0 %v1167
        %1349 = vmatpush1.bf16.msra.mxu0 %v1166
        %1350 = vmatprep.subr.bf16.mxu0 %v1161
        %1351 = vmatpush1.bf16.msra.mxu0 %v1160
        %1352 = vmatprep.subr.bf16.mxu0 %v1155
        %1353 = vmatpush1.bf16.msra.mxu0 %v1154
        %1354 = vmatprep.subr.bf16.mxu0 %v1149
        %1355 = vmatpush1.bf16.msra.mxu0 %v1148
        %1356 = vmatprep.subr.bf16.mxu0 %v1239
        %1357 = vmatpush2.bf16.msra.mxu0 %v1238
        %1358 = vmatprep.subr.bf16.mxu0 %v1233
        %1359 = vmatpush2.bf16.msra.mxu0 %v1232
        %1360 = vmatprep.subr.bf16.mxu0 %v1227
        %1361 = vmatpush2.bf16.msra.mxu0 %v1226
        %1362 = vmatprep.subr.bf16.mxu0 %v1221
        %1363 = vmatpush2.bf16.msra.mxu0 %v1220
        %1364 = vmatprep.subr.bf16.mxu0 %v1215
        %1365 = vmatpush2.bf16.msra.mxu0 %v1214
        %1366 = vmatprep.subr.bf16.mxu0 %v1209
        %1367 = vmatpush2.bf16.msra.mxu0 %v1208
        %1368 = vmatprep.subr.bf16.mxu0 %v1203
        %1369 = vmatpush2.bf16.msra.mxu0 %v1202
        %1370 = vmatprep.subr.bf16.mxu0 %v1197
        %1371 = vmatpush2.bf16.msra.mxu0 %v1196
        %1372 = vmatprep.mubr.bf16.mxu0 %v763
        %1373 = vmatmul.mubr.bf16.gmra.mxu0 %v762
        %v1374 = vpop.f32.mrf.mxu0
        %v1375 = vadd.f32 0.0, %v1374
        %v1376 = vpop.f32.mrf.mxu0
        %v1377 = vadd.f32 0.0, %v1376
        %v1378 = vpop.f32.mrf.mxu0
        %v1379 = vadd.f32 0.0, %v1378
        %v1380 = vpop.f32.mrf.mxu0
        %v1381 = vadd.f32 0.0, %v1380
        %1382 = vdwg.mxu0
        %1383 = vmatprep.subr.bf16.mxu0 %v1193
        %1384 = vmatpush1.bf16.msra.mxu0 %v1192
        %1385 = vmatprep.subr.bf16.mxu0 %v1187
        %1386 = vmatpush1.bf16.msra.mxu0 %v1186
        %1387 = vmatprep.subr.bf16.mxu0 %v1181
        %1388 = vmatpush1.bf16.msra.mxu0 %v1180
        %1389 = vmatprep.subr.bf16.mxu0 %v1175
        %1390 = vmatpush1.bf16.msra.mxu0 %v1174
        %1391 = vmatprep.subr.bf16.mxu0 %v1169
        %1392 = vmatpush1.bf16.msra.mxu0 %v1168
        %1393 = vmatprep.subr.bf16.mxu0 %v1163
        %1394 = vmatpush1.bf16.msra.mxu0 %v1162
        %1395 = vmatprep.subr.bf16.mxu0 %v1157
        %1396 = vmatpush1.bf16.msra.mxu0 %v1156
        %1397 = vmatprep.subr.bf16.mxu0 %v1151
        %1398 = vmatpush1.bf16.msra.mxu0 %v1150
        %1399 = vmatprep.subr.bf16.mxu0 %v1241
        %1400 = vmatpush2.bf16.msra.mxu0 %v1240
        %1401 = vmatprep.subr.bf16.mxu0 %v1235
        %1402 = vmatpush2.bf16.msra.mxu0 %v1234
        %1403 = vmatprep.subr.bf16.mxu0 %v1229
        %1404 = vmatpush2.bf16.msra.mxu0 %v1228
        %1405 = vmatprep.subr.bf16.mxu0 %v1223
        %1406 = vmatpush2.bf16.msra.mxu0 %v1222
        %1407 = vmatprep.subr.bf16.mxu0 %v1217
        %1408 = vmatpush2.bf16.msra.mxu0 %v1216
        %1409 = vmatprep.subr.bf16.mxu0 %v1211
        %1410 = vmatpush2.bf16.msra.mxu0 %v1210
        %1411 = vmatprep.subr.bf16.mxu0 %v1205
        %1412 = vmatpush2.bf16.msra.mxu0 %v1204
        %1413 = vmatprep.subr.bf16.mxu0 %v1199
        %1414 = vmatpush2.bf16.msra.mxu0 %v1198
        %1415 = vmatprep.mubr.bf16.mxu0 %v763
        %1416 = vmatmul.mubr.bf16.gmra.mxu0 %v762
        %v1417 = vpop.f32.mrf.mxu0
        %v1418 = vadd.f32 0.0, %v1417
        %v1419 = vpop.f32.mrf.mxu0
        %v1420 = vadd.f32 0.0, %v1419
        %v1421 = vpop.f32.mrf.mxu0
        %v1422 = vadd.f32 0.0, %v1421
        %v1423 = vpop.f32.mrf.mxu0
        %v1424 = vadd.f32 0.0, %v1423
        %1425 = vdwg.mxu0
        %1426 = vmatprep.subr.bf16.mxu0 %v1195
        %1427 = vmatpush1.bf16.msra.mxu0 %v1194
        %1428 = vmatprep.subr.bf16.mxu0 %v1189
        %1429 = vmatpush1.bf16.msra.mxu0 %v1188
        %1430 = vmatprep.subr.bf16.mxu0 %v1183
        %1431 = vmatpush1.bf16.msra.mxu0 %v1182
        %1432 = vmatprep.subr.bf16.mxu0 %v1177
        %1433 = vmatpush1.bf16.msra.mxu0 %v1176
        %1434 = vmatprep.subr.bf16.mxu0 %v1171
        %1435 = vmatpush1.bf16.msra.mxu0 %v1170
        %1436 = vmatprep.subr.bf16.mxu0 %v1165
        %1437 = vmatpush1.bf16.msra.mxu0 %v1164
        %1438 = vmatprep.subr.bf16.mxu0 %v1159
        %1439 = vmatpush1.bf16.msra.mxu0 %v1158
        %1440 = vmatprep.subr.bf16.mxu0 %v1153
        %1441 = vmatpush1.bf16.msra.mxu0 %v1152
        %1442 = vmatprep.subr.bf16.mxu0 %v1243
        %1443 = vmatpush2.bf16.msra.mxu0 %v1242
        %1444 = vmatprep.subr.bf16.mxu0 %v1237
        %1445 = vmatpush2.bf16.msra.mxu0 %v1236
        %1446 = vmatprep.subr.bf16.mxu0 %v1231
        %1447 = vmatpush2.bf16.msra.mxu0 %v1230
        %1448 = vmatprep.subr.bf16.mxu0 %v1225
        %1449 = vmatpush2.bf16.msra.mxu0 %v1224
        %1450 = vmatprep.subr.bf16.mxu0 %v1219
        %1451 = vmatpush2.bf16.msra.mxu0 %v1218
        %1452 = vmatprep.subr.bf16.mxu0 %v1213
        %1453 = vmatpush2.bf16.msra.mxu0 %v1212
        %1454 = vmatprep.subr.bf16.mxu0 %v1207
        %1455 = vmatpush2.bf16.msra.mxu0 %v1206
        %1456 = vmatprep.subr.bf16.mxu0 %v1201
        %1457 = vmatpush2.bf16.msra.mxu0 %v1200
        %1458 = vmatprep.mubr.bf16.mxu0 %v763
        %1459 = vmatmul.mubr.bf16.gmra.mxu0 %v762
        %v1460 = vpop.f32.mrf.mxu0
        %v1461 = vadd.f32 0.0, %v1460
        %v1462 = vpop.f32.mrf.mxu0
        %v1463 = vadd.f32 0.0, %v1462
        %v1464 = vpop.f32.mrf.mxu0
        %v1465 = vadd.f32 0.0, %v1464
        %v1466 = vpop.f32.mrf.mxu0
        %v1467 = vadd.f32 0.0, %v1466
        %1468 = vdwg.mxu0
        %1469 = vrot.lane.b32.xlu0 %v1375, 64
        %v1470 = vpop.permute.xlu0 %1469
        %1471 = vrot.lane.b32.xlu0 %v1379, 64
        %v1472 = vpop.permute.xlu0 %1471
        %1473 = vrot.lane.b32.xlu0 %v1377, 64
        %v1474 = vpop.permute.xlu0 %1473
        %1475 = vrot.lane.b32.xlu0 %v1381, 64
        %v1476 = vpop.permute.xlu0 %1475
        %v1477 = vmul.f32 %v1375, %v710
        %v1478 = vmul.f32 %v1379, %v710
        %v1479 = vmul.f32 %v1377, %v710
        %v1480 = vmul.f32 %v1381, %v710
        %v1481 = vmul.f32 %v1470, %v711
        %v1482 = vmul.f32 %v1472, %v711
        %v1483 = vmul.f32 %v1474, %v711
        %v1484 = vmul.f32 %v1476, %v711
        %v1485 = vadd.f32 %v1477, %v1481
        %v1486 = vadd.f32 %v1478, %v1482
        %v1487 = vadd.f32 %v1479, %v1483
        %v1488 = vadd.f32 %v1480, %v1484
        %1489 = vrot.lane.b32.xlu0 %v1418, 64
        %v1490 = vpop.permute.xlu0 %1489
        %1491 = vrot.lane.b32.xlu0 %v1422, 64
        %v1492 = vpop.permute.xlu0 %1491
        %1493 = vrot.lane.b32.xlu0 %v1420, 64
        %v1494 = vpop.permute.xlu0 %1493
        %1495 = vrot.lane.b32.xlu0 %v1424, 64
        %v1496 = vpop.permute.xlu0 %1495
        %v1497 = vmul.f32 %v1418, %v710
        %v1498 = vmul.f32 %v1422, %v710
        %v1499 = vmul.f32 %v1420, %v710
        %v1500 = vmul.f32 %v1424, %v710
        %v1501 = vmul.f32 %v1490, %v711
        %v1502 = vmul.f32 %v1492, %v711
        %v1503 = vmul.f32 %v1494, %v711
        %v1504 = vmul.f32 %v1496, %v711
        %v1505 = vadd.f32 %v1497, %v1501
        %v1506 = vadd.f32 %v1498, %v1502
        %v1507 = vadd.f32 %v1499, %v1503
        %v1508 = vadd.f32 %v1500, %v1504
        %v1509 = vpack.c.bf16 %v1485, %v1485
        %v1510 = vpack.c.bf16 %v1486, %v1486
        %v1511 = vpack.c.bf16 %v1487, %v1487
        %v1512 = vpack.c.bf16 %v1488, %v1488
        %v1513 = vpack.c.bf16 %v1505, %v1505
        %v1514 = vpack.c.bf16 %v1506, %v1506
        %v1515 = vpack.c.bf16 %v1507, %v1507
        %v1516 = vpack.c.bf16 %v1508, %v1508
        %1517 = vmatprep.subr.bf16.mxu0 0
        %1518 = vmatpush1.bf16.xpose.msra.mxu0 0
        %1519 = vmatprep.subr.bf16.mxu0 0
        %1520 = vmatpush1.bf16.xpose.msra.mxu0 0
        %1521 = vmatprep.subr.bf16.mxu0 0
        %1522 = vmatpush1.bf16.xpose.msra.mxu0 0
        %1523 = vmatprep.subr.bf16.mxu0 0
        %1524 = vmatpush1.bf16.xpose.msra.mxu0 0
        %1525 = vmatprep.subr.bf16.mxu0 0
        %1526 = vmatpush1.bf16.xpose.msra.mxu0 0
        %1527 = vmatprep.subr.bf16.mxu0 0
        %1528 = vmatpush1.bf16.xpose.msra.mxu0 0
        %1529 = vmatprep.subr.bf16.mxu0 0
        %1530 = vmatpush1.bf16.xpose.msra.mxu0 0
        %1531 = vmatprep.subr.bf16.mxu0 0
        %1532 = vmatpush1.bf16.xpose.msra.mxu0 %v1513
        %1533 = vmatprep.subr.bf16.mxu0 0
        %1534 = vmatpush2.bf16.xpose.msra.mxu0 0
        %1535 = vmatprep.subr.bf16.mxu0 0
        %1536 = vmatpush2.bf16.xpose.msra.mxu0 0
        %1537 = vmatprep.subr.bf16.mxu0 0
        %1538 = vmatpush2.bf16.xpose.msra.mxu0 0
        %1539 = vmatprep.subr.bf16.mxu0 0
        %1540 = vmatpush2.bf16.xpose.msra.mxu0 0
        %1541 = vmatprep.subr.bf16.mxu0 0
        %1542 = vmatpush2.bf16.xpose.msra.mxu0 0
        %1543 = vmatprep.subr.bf16.mxu0 0
        %1544 = vmatpush2.bf16.xpose.msra.mxu0 0
        %1545 = vmatprep.subr.bf16.mxu0 0
        %1546 = vmatpush2.bf16.xpose.msra.mxu0 0
        %1547 = vmatprep.subr.bf16.mxu0 0
        %1548 = vmatpush2.bf16.xpose.msra.mxu0 0
        %1549 = vmatprep.mubr.bf16.mxu0 0
        %1550 = vmatmul.mubr.bf16.gmra.mxu0 %v1509
        %v1551 = vpop.f32.mrf.mxu0
        %v1552 = vadd.f32 %v712, %v1551
        %v1553 = vpop.f32.mrf.mxu0
        %v1554 = vpop.f32.mrf.mxu0
        %v1555 = vpop.f32.mrf.mxu0
        %1556 = vdwg.mxu0
        %1557 = vmatprep.subr.bf16.mxu0 0
        %1558 = vmatpush1.bf16.xpose.msra.mxu0 0
        %1559 = vmatprep.subr.bf16.mxu0 0
        %1560 = vmatpush1.bf16.xpose.msra.mxu0 0
        %1561 = vmatprep.subr.bf16.mxu0 0
        %1562 = vmatpush1.bf16.xpose.msra.mxu0 0
        %1563 = vmatprep.subr.bf16.mxu0 0
        %1564 = vmatpush1.bf16.xpose.msra.mxu0 0
        %1565 = vmatprep.subr.bf16.mxu0 0
        %1566 = vmatpush1.bf16.xpose.msra.mxu0 0
        %1567 = vmatprep.subr.bf16.mxu0 0
        %1568 = vmatpush1.bf16.xpose.msra.mxu0 0
        %1569 = vmatprep.subr.bf16.mxu0 0
        %1570 = vmatpush1.bf16.xpose.msra.mxu0 0
        %1571 = vmatprep.subr.bf16.mxu0 0
        %1572 = vmatpush1.bf16.xpose.msra.mxu0 %v1514
        %1573 = vmatprep.subr.bf16.mxu0 0
        %1574 = vmatpush2.bf16.xpose.msra.mxu0 0
        %1575 = vmatprep.subr.bf16.mxu0 0
        %1576 = vmatpush2.bf16.xpose.msra.mxu0 0
        %1577 = vmatprep.subr.bf16.mxu0 0
        %1578 = vmatpush2.bf16.xpose.msra.mxu0 0
        %1579 = vmatprep.subr.bf16.mxu0 0
        %1580 = vmatpush2.bf16.xpose.msra.mxu0 0
        %1581 = vmatprep.subr.bf16.mxu0 0
        %1582 = vmatpush2.bf16.xpose.msra.mxu0 0
        %1583 = vmatprep.subr.bf16.mxu0 0
        %1584 = vmatpush2.bf16.xpose.msra.mxu0 0
        %1585 = vmatprep.subr.bf16.mxu0 0
        %1586 = vmatpush2.bf16.xpose.msra.mxu0 0
        %1587 = vmatprep.subr.bf16.mxu0 0
        %1588 = vmatpush2.bf16.xpose.msra.mxu0 0
        %1589 = vmatprep.mubr.bf16.mxu0 0
        %1590 = vmatmul.mubr.bf16.gmra.mxu0 %v1510
        %v1591 = vpop.f32.mrf.mxu0
        %v1592 = vadd.f32 %v712, %v1591
        %v1593 = vpop.f32.mrf.mxu0
        %v1594 = vpop.f32.mrf.mxu0
        %v1595 = vpop.f32.mrf.mxu0
        %1596 = vdwg.mxu0
        %1597 = vmatprep.subr.bf16.mxu0 0
        %1598 = vmatpush1.bf16.xpose.msra.mxu0 0
        %1599 = vmatprep.subr.bf16.mxu0 0
        %1600 = vmatpush1.bf16.xpose.msra.mxu0 0
        %1601 = vmatprep.subr.bf16.mxu0 0
        %1602 = vmatpush1.bf16.xpose.msra.mxu0 0
        %1603 = vmatprep.subr.bf16.mxu0 0
        %1604 = vmatpush1.bf16.xpose.msra.mxu0 0
        %1605 = vmatprep.subr.bf16.mxu0 0
        %1606 = vmatpush1.bf16.xpose.msra.mxu0 0
        %1607 = vmatprep.subr.bf16.mxu0 0
        %1608 = vmatpush1.bf16.xpose.msra.mxu0 0
        %1609 = vmatprep.subr.bf16.mxu0 0
        %1610 = vmatpush1.bf16.xpose.msra.mxu0 0
        %1611 = vmatprep.subr.bf16.mxu0 0
        %1612 = vmatpush1.bf16.xpose.msra.mxu0 %v1515
        %1613 = vmatprep.subr.bf16.mxu0 0
        %1614 = vmatpush2.bf16.xpose.msra.mxu0 0
        %1615 = vmatprep.subr.bf16.mxu0 0
        %1616 = vmatpush2.bf16.xpose.msra.mxu0 0
        %1617 = vmatprep.subr.bf16.mxu0 0
        %1618 = vmatpush2.bf16.xpose.msra.mxu0 0
        %1619 = vmatprep.subr.bf16.mxu0 0
        %1620 = vmatpush2.bf16.xpose.msra.mxu0 0
        %1621 = vmatprep.subr.bf16.mxu0 0
        %1622 = vmatpush2.bf16.xpose.msra.mxu0 0
        %1623 = vmatprep.subr.bf16.mxu0 0
        %1624 = vmatpush2.bf16.xpose.msra.mxu0 0
        %1625 = vmatprep.subr.bf16.mxu0 0
        %1626 = vmatpush2.bf16.xpose.msra.mxu0 0
        %1627 = vmatprep.subr.bf16.mxu0 0
        %1628 = vmatpush2.bf16.xpose.msra.mxu0 0
        %1629 = vmatprep.mubr.bf16.mxu0 0
        %1630 = vmatmul.mubr.bf16.gmra.mxu0 %v1511
        %v1631 = vpop.f32.mrf.mxu0
        %v1632 = vadd.f32 %v712, %v1631
        %v1633 = vpop.f32.mrf.mxu0
        %v1634 = vpop.f32.mrf.mxu0
        %v1635 = vpop.f32.mrf.mxu0
        %1636 = vdwg.mxu0
        %1637 = vmatprep.subr.bf16.mxu0 0
        %1638 = vmatpush1.bf16.xpose.msra.mxu0 0
        %1639 = vmatprep.subr.bf16.mxu0 0
        %1640 = vmatpush1.bf16.xpose.msra.mxu0 0
        %1641 = vmatprep.subr.bf16.mxu0 0
        %1642 = vmatpush1.bf16.xpose.msra.mxu0 0
        %1643 = vmatprep.subr.bf16.mxu0 0
        %1644 = vmatpush1.bf16.xpose.msra.mxu0 0
        %1645 = vmatprep.subr.bf16.mxu0 0
        %1646 = vmatpush1.bf16.xpose.msra.mxu0 0
        %1647 = vmatprep.subr.bf16.mxu0 0
        %1648 = vmatpush1.bf16.xpose.msra.mxu0 0
        %1649 = vmatprep.subr.bf16.mxu0 0
        %1650 = vmatpush1.bf16.xpose.msra.mxu0 0
        %1651 = vmatprep.subr.bf16.mxu0 0
        %1652 = vmatpush1.bf16.xpose.msra.mxu0 %v1516
        %1653 = vmatprep.subr.bf16.mxu0 0
        %1654 = vmatpush2.bf16.xpose.msra.mxu0 0
        %1655 = vmatprep.subr.bf16.mxu0 0
        %1656 = vmatpush2.bf16.xpose.msra.mxu0 0
        %1657 = vmatprep.subr.bf16.mxu0 0
        %1658 = vmatpush2.bf16.xpose.msra.mxu0 0
        %1659 = vmatprep.subr.bf16.mxu0 0
        %1660 = vmatpush2.bf16.xpose.msra.mxu0 0
        %1661 = vmatprep.subr.bf16.mxu0 0
        %1662 = vmatpush2.bf16.xpose.msra.mxu0 0
        %1663 = vmatprep.subr.bf16.mxu0 0
        %1664 = vmatpush2.bf16.xpose.msra.mxu0 0
        %1665 = vmatprep.subr.bf16.mxu0 0
        %1666 = vmatpush2.bf16.xpose.msra.mxu0 0
        %1667 = vmatprep.subr.bf16.mxu0 0
        %1668 = vmatpush2.bf16.xpose.msra.mxu0 0
        %1669 = vmatprep.mubr.bf16.mxu0 0
        %1670 = vmatmul.mubr.bf16.gmra.mxu0 %v1512
        %v1671 = vpop.f32.mrf.mxu0
        %v1672 = vadd.f32 %v712, %v1671
        %v1673 = vpop.f32.mrf.mxu0
        %v1674 = vpop.f32.mrf.mxu0
        %v1675 = vpop.f32.mrf.mxu0
        %1676 = vdwg.mxu0
        %vm1677 = vcmask 64512
        %v1678 = vsel %vm1677, %v1552, -inf
        %1679 = vmax.xlane.f32.xlu0 %v1678
        %v1680 = vpop.xlane.xlu0 %1679
        %v1681 = vsel %vm1677, %v1592, -inf
        %1682 = vmax.xlane.f32.xlu0 %v1681
        %v1683 = vpop.xlane.xlu0 %1682
        %v1684 = vsel %vm1677, %v1632, -inf
        %1685 = vmax.xlane.f32.xlu0 %v1684
        %v1686 = vpop.xlane.xlu0 %1685
        %v1687 = vsel %vm1677, %v1672, -inf
        %1688 = vmax.xlane.f32.xlu0 %v1687
        %v1689 = vpop.xlane.xlu0 %1688
        %v1690 = vsub.f32 %v1552, %v1680
        %v1691 = vsub.f32 %v1592, %v1683
        %v1692 = vsub.f32 %v1632, %v1686
        %v1693 = vsub.f32 %v1672, %v1689
        %v1694 = vmul.f32 %v1690, 1.442695
        %v1695 = vpow.pop %v1694
        %v1696 = vmul.f32 %v1691, 1.442695
        %v1697 = vpow.pop %v1696
        %v1698 = vmul.f32 %v1692, 1.442695
        %v1699 = vpow.pop %v1698
        %v1700 = vmul.f32 %v1693, 1.442695
        %v1701 = vpow.pop %v1700
        %v1702 = vsel %vm1677, %v1695, 0.0
        %1703 = vadd.xlane.f32.xlu0 %v1702
        %v1704 = vpop.xlane.xlu0 %1703
        %v1705 = vsel %vm1677, %v1697, 0.0
        %1706 = vadd.xlane.f32.xlu0 %v1705
        %v1707 = vpop.xlane.xlu0 %1706
        %v1708 = vsel %vm1677, %v1699, 0.0
        %1709 = vadd.xlane.f32.xlu0 %v1708
        %v1710 = vpop.xlane.xlu0 %1709
        %v1711 = vsel %vm1677, %v1701, 0.0
        %1712 = vadd.xlane.f32.xlu0 %v1711
        %v1713 = vpop.xlane.xlu0 %1712
        %v1714 = vrcp.pop %v1704
        %v1715 = vrcp.pop %v1707
        %v1716 = vrcp.pop %v1710
        %v1717 = vrcp.pop %v1713
        %v1718 = vmul.f32 %v1695, %v1714
        %v1719 = vmul.f32 %v1697, %v1715
        %v1720 = vmul.f32 %v1699, %v1716
        %v1721 = vmul.f32 %v1701, %v1717
        %v1722 = vpack.c.bf16 %v1718, %v1718
        %v1723 = vpack.c.bf16 %v1719, %v1719
        %v1724 = vpack.c.bf16 %v1720, %v1720
        %v1725 = vpack.c.bf16 %v1721, %v1721
        %v1726 = vpack.c.bf16 %v1461, %v1461
        %v1727 = vpack.c.bf16 %v1465, %v1465
        %v1728 = vpack.c.bf16 %v1463, %v1463
        %v1729 = vpack.c.bf16 %v1467, %v1467
        %v1731 = vsel %vm1677, %v1722, 0
        %vm1733 = vcmask 1043456
        %v1735 = vsel %vm1733, %v1726, 0
        %1737 = vmatprep.subr.bf16.mxu0 0
        %1738 = vmatpush1.bf16.msra.mxu0 0
        %1739 = vmatprep.subr.bf16.mxu0 0
        %1740 = vmatpush1.bf16.msra.mxu0 0
        %1741 = vmatprep.subr.bf16.mxu0 0
        %1742 = vmatpush1.bf16.msra.mxu0 0
        %1743 = vmatprep.subr.bf16.mxu0 0
        %1744 = vmatpush1.bf16.msra.mxu0 0
        %1745 = vmatprep.subr.bf16.mxu0 0
        %1746 = vmatpush1.bf16.msra.mxu0 0
        %1747 = vmatprep.subr.bf16.mxu0 0
        %1748 = vmatpush1.bf16.msra.mxu0 0
        %1749 = vmatprep.subr.bf16.mxu0 0
        %1750 = vmatpush1.bf16.msra.mxu0 0
        %1751 = vmatprep.subr.bf16.mxu0 0
        %1752 = vmatpush1.bf16.msra.mxu0 %v1735
        %1753 = vmatprep.subr.bf16.mxu0 0
        %1754 = vmatpush2.bf16.msra.mxu0 0
        %1755 = vmatprep.subr.bf16.mxu0 0
        %1756 = vmatpush2.bf16.msra.mxu0 0
        %1757 = vmatprep.subr.bf16.mxu0 0
        %1758 = vmatpush2.bf16.msra.mxu0 0
        %1759 = vmatprep.subr.bf16.mxu0 0
        %1760 = vmatpush2.bf16.msra.mxu0 0
        %1761 = vmatprep.subr.bf16.mxu0 0
        %1762 = vmatpush2.bf16.msra.mxu0 0
        %1763 = vmatprep.subr.bf16.mxu0 0
        %1764 = vmatpush2.bf16.msra.mxu0 0
        %1765 = vmatprep.subr.bf16.mxu0 0
        %1766 = vmatpush2.bf16.msra.mxu0 0
        %1767 = vmatprep.subr.bf16.mxu0 0
        %1768 = vmatpush2.bf16.msra.mxu0 0
        %1769 = vmatprep.mubr.bf16.mxu0 0
        %1770 = vmatmul.mubr.bf16.gmra.mxu0 %v1731
        %v1771 = vpop.f32.mrf.mxu0
        %v1772 = vadd.f32 0.0, %v1771
        %v1773 = vpop.f32.mrf.mxu0
        %v1774 = vpop.f32.mrf.mxu0
        %v1775 = vpop.f32.mrf.mxu0
        %1776 = vdwg.mxu0
        %v1778 = vsel %vm1677, %v1723, 0
        %v1781 = vsel %vm1733, %v1727, 0
        %1783 = vmatprep.subr.bf16.mxu0 0
        %1784 = vmatpush1.bf16.msra.mxu0 0
        %1785 = vmatprep.subr.bf16.mxu0 0
        %1786 = vmatpush1.bf16.msra.mxu0 0
        %1787 = vmatprep.subr.bf16.mxu0 0
        %1788 = vmatpush1.bf16.msra.mxu0 0
        %1789 = vmatprep.subr.bf16.mxu0 0
        %1790 = vmatpush1.bf16.msra.mxu0 0
        %1791 = vmatprep.subr.bf16.mxu0 0
        %1792 = vmatpush1.bf16.msra.mxu0 0
        %1793 = vmatprep.subr.bf16.mxu0 0
        %1794 = vmatpush1.bf16.msra.mxu0 0
        %1795 = vmatprep.subr.bf16.mxu0 0
        %1796 = vmatpush1.bf16.msra.mxu0 0
        %1797 = vmatprep.subr.bf16.mxu0 0
        %1798 = vmatpush1.bf16.msra.mxu0 %v1781
        %1799 = vmatprep.subr.bf16.mxu0 0
        %1800 = vmatpush2.bf16.msra.mxu0 0
        %1801 = vmatprep.subr.bf16.mxu0 0
        %1802 = vmatpush2.bf16.msra.mxu0 0
        %1803 = vmatprep.subr.bf16.mxu0 0
        %1804 = vmatpush2.bf16.msra.mxu0 0
        %1805 = vmatprep.subr.bf16.mxu0 0
        %1806 = vmatpush2.bf16.msra.mxu0 0
        %1807 = vmatprep.subr.bf16.mxu0 0
        %1808 = vmatpush2.bf16.msra.mxu0 0
        %1809 = vmatprep.subr.bf16.mxu0 0
        %1810 = vmatpush2.bf16.msra.mxu0 0
        %1811 = vmatprep.subr.bf16.mxu0 0
        %1812 = vmatpush2.bf16.msra.mxu0 0
        %1813 = vmatprep.subr.bf16.mxu0 0
        %1814 = vmatpush2.bf16.msra.mxu0 0
        %1815 = vmatprep.mubr.bf16.mxu0 0
        %1816 = vmatmul.mubr.bf16.gmra.mxu0 %v1778
        %v1817 = vpop.f32.mrf.mxu0
        %v1818 = vadd.f32 0.0, %v1817
        %v1819 = vpop.f32.mrf.mxu0
        %v1820 = vpop.f32.mrf.mxu0
        %v1821 = vpop.f32.mrf.mxu0
        %1822 = vdwg.mxu0
        %v1824 = vsel %vm1677, %v1724, 0
        %v1827 = vsel %vm1733, %v1728, 0
        %1829 = vmatprep.subr.bf16.mxu0 0
        %1830 = vmatpush1.bf16.msra.mxu0 0
        %1831 = vmatprep.subr.bf16.mxu0 0
        %1832 = vmatpush1.bf16.msra.mxu0 0
        %1833 = vmatprep.subr.bf16.mxu0 0
        %1834 = vmatpush1.bf16.msra.mxu0 0
        %1835 = vmatprep.subr.bf16.mxu0 0
        %1836 = vmatpush1.bf16.msra.mxu0 0
        %1837 = vmatprep.subr.bf16.mxu0 0
        %1838 = vmatpush1.bf16.msra.mxu0 0
        %1839 = vmatprep.subr.bf16.mxu0 0
        %1840 = vmatpush1.bf16.msra.mxu0 0
        %1841 = vmatprep.subr.bf16.mxu0 0
        %1842 = vmatpush1.bf16.msra.mxu0 0
        %1843 = vmatprep.subr.bf16.mxu0 0
        %1844 = vmatpush1.bf16.msra.mxu0 %v1827
        %1845 = vmatprep.subr.bf16.mxu0 0
        %1846 = vmatpush2.bf16.msra.mxu0 0
        %1847 = vmatprep.subr.bf16.mxu0 0
        %1848 = vmatpush2.bf16.msra.mxu0 0
        %1849 = vmatprep.subr.bf16.mxu0 0
        %1850 = vmatpush2.bf16.msra.mxu0 0
        %1851 = vmatprep.subr.bf16.mxu0 0
        %1852 = vmatpush2.bf16.msra.mxu0 0
        %1853 = vmatprep.subr.bf16.mxu0 0
        %1854 = vmatpush2.bf16.msra.mxu0 0
        %1855 = vmatprep.subr.bf16.mxu0 0
        %1856 = vmatpush2.bf16.msra.mxu0 0
        %1857 = vmatprep.subr.bf16.mxu0 0
        %1858 = vmatpush2.bf16.msra.mxu0 0
        %1859 = vmatprep.subr.bf16.mxu0 0
        %1860 = vmatpush2.bf16.msra.mxu0 0
        %1861 = vmatprep.mubr.bf16.mxu0 0
        %1862 = vmatmul.mubr.bf16.gmra.mxu0 %v1824
        %v1863 = vpop.f32.mrf.mxu0
        %v1864 = vadd.f32 0.0, %v1863
        %v1865 = vpop.f32.mrf.mxu0
        %v1866 = vpop.f32.mrf.mxu0
        %v1867 = vpop.f32.mrf.mxu0
        %1868 = vdwg.mxu0
        %v1870 = vsel %vm1677, %v1725, 0
        %v1873 = vsel %vm1733, %v1729, 0
        %1875 = vmatprep.subr.bf16.mxu0 0
        %1876 = vmatpush1.bf16.msra.mxu0 0
        %1877 = vmatprep.subr.bf16.mxu0 0
        %1878 = vmatpush1.bf16.msra.mxu0 0
        %1879 = vmatprep.subr.bf16.mxu0 0
        %1880 = vmatpush1.bf16.msra.mxu0 0
        %1881 = vmatprep.subr.bf16.mxu0 0
        %1882 = vmatpush1.bf16.msra.mxu0 0
        %1883 = vmatprep.subr.bf16.mxu0 0
        %1884 = vmatpush1.bf16.msra.mxu0 0
        %1885 = vmatprep.subr.bf16.mxu0 0
        %1886 = vmatpush1.bf16.msra.mxu0 0
        %1887 = vmatprep.subr.bf16.mxu0 0
        %1888 = vmatpush1.bf16.msra.mxu0 0
        %1889 = vmatprep.subr.bf16.mxu0 0
        %1890 = vmatpush1.bf16.msra.mxu0 %v1873
        %1891 = vmatprep.subr.bf16.mxu0 0
        %1892 = vmatpush2.bf16.msra.mxu0 0
        %1893 = vmatprep.subr.bf16.mxu0 0
        %1894 = vmatpush2.bf16.msra.mxu0 0
        %1895 = vmatprep.subr.bf16.mxu0 0
        %1896 = vmatpush2.bf16.msra.mxu0 0
        %1897 = vmatprep.subr.bf16.mxu0 0
        %1898 = vmatpush2.bf16.msra.mxu0 0
        %1899 = vmatprep.subr.bf16.mxu0 0
        %1900 = vmatpush2.bf16.msra.mxu0 0
        %1901 = vmatprep.subr.bf16.mxu0 0
        %1902 = vmatpush2.bf16.msra.mxu0 0
        %1903 = vmatprep.subr.bf16.mxu0 0
        %1904 = vmatpush2.bf16.msra.mxu0 0
        %1905 = vmatprep.subr.bf16.mxu0 0
        %1906 = vmatpush2.bf16.msra.mxu0 0
        %1907 = vmatprep.mubr.bf16.mxu0 0
        %1908 = vmatmul.mubr.bf16.gmra.mxu0 %v1870
        %v1909 = vpop.f32.mrf.mxu0
        %v1910 = vadd.f32 0.0, %v1909
        %v1911 = vpop.f32.mrf.mxu0
        %v1912 = vpop.f32.mrf.mxu0
        %v1913 = vpop.f32.mrf.mxu0
        %1914 = vdwg.mxu0
        %v1915 = vpack.c.bf16 %v1818, %v1772
        %v1916 = vld [vmem:[#allocation13] sm:$0xff]
        %v1917 = vld [vmem:[#allocation13 + $0x8] sm:$0xff]
        %v1918 = vld [vmem:[#allocation13 + $0x10] sm:$0xff]
        %v1919 = vld [vmem:[#allocation13 + $0x18] sm:$0xff]
        %v1920 = vld [vmem:[#allocation13 + $0x20] sm:$0xff]
        %v1921 = vld [vmem:[#allocation13 + $0x28] sm:$0xff]
        %v1922 = vld [vmem:[#allocation13 + $0x30] sm:$0xff]
        %v1923 = vld [vmem:[#allocation13 + $0x38] sm:$0xff]
        %v1924 = vld [vmem:[#allocation13 + $0x40] sm:$0xff]
        %v1925 = vld [vmem:[#allocation13 + $0x48] sm:$0xff]
        %v1926 = vld [vmem:[#allocation13 + $0x50] sm:$0xff]
        %v1927 = vld [vmem:[#allocation13 + $0x58] sm:$0xff]
        %v1928 = vld [vmem:[#allocation13 + $0x60] sm:$0xff]
        %v1929 = vld [vmem:[#allocation13 + $0x68] sm:$0xff]
        %v1930 = vld [vmem:[#allocation13 + $0x70] sm:$0xff]
        %v1931 = vld [vmem:[#allocation13 + $0x78] sm:$0xff]
        %v1932 = vpack.c.bf16 %v1910, %v1864
        %s1933 = scalar_lea.vmem [#allocation13], 128
        %v1934 = vld [vmem:[%s1933] sm:$0xff]
        %v1935 = vld [vmem:[%s1933 + $0x8] sm:$0xff]
        %v1936 = vld [vmem:[%s1933 + $0x10] sm:$0xff]
        %v1937 = vld [vmem:[%s1933 + $0x18] sm:$0xff]
        %v1938 = vld [vmem:[%s1933 + $0x20] sm:$0xff]
        %v1939 = vld [vmem:[%s1933 + $0x28] sm:$0xff]
        %v1940 = vld [vmem:[%s1933 + $0x30] sm:$0xff]
        %v1941 = vld [vmem:[%s1933 + $0x38] sm:$0xff]
        %v1942 = vld [vmem:[%s1933 + $0x40] sm:$0xff]
        %v1943 = vld [vmem:[%s1933 + $0x48] sm:$0xff]
        %v1944 = vld [vmem:[%s1933 + $0x50] sm:$0xff]
        %v1945 = vld [vmem:[%s1933 + $0x58] sm:$0xff]
        %v1946 = vld [vmem:[%s1933 + $0x60] sm:$0xff]
        %v1947 = vld [vmem:[%s1933 + $0x68] sm:$0xff]
        %v1948 = vld [vmem:[%s1933 + $0x70] sm:$0xff]
        %v1949 = vld [vmem:[%s1933 + $0x78] sm:$0xff]
        %v1966 = vunpack.c.l.b16 %v1934
        %v1967 = vunpack.c.h.b16 %v1934
        %v1968 = vunpack.c.l.b16 %v1935
        %v1969 = vunpack.c.h.b16 %v1935
        %v1970 = vunpack.c.l.b16 %v1936
        %v1971 = vunpack.c.h.b16 %v1936
        %v1972 = vunpack.c.l.b16 %v1937
        %v1973 = vunpack.c.h.b16 %v1937
        %v1974 = vunpack.c.l.b16 %v1938
        %v1975 = vunpack.c.h.b16 %v1938
        %v1976 = vunpack.c.l.b16 %v1939
        %v1977 = vunpack.c.h.b16 %v1939
        %v1978 = vunpack.c.l.b16 %v1940
        %v1979 = vunpack.c.h.b16 %v1940
        %v1980 = vunpack.c.l.b16 %v1941
        %v1981 = vunpack.c.h.b16 %v1941
        %v1982 = vunpack.c.l.b16 %v1942
        %v1983 = vunpack.c.h.b16 %v1942
        %v1984 = vunpack.c.l.b16 %v1943
        %v1985 = vunpack.c.h.b16 %v1943
        %v1986 = vunpack.c.l.b16 %v1944
        %v1987 = vunpack.c.h.b16 %v1944
        %v1988 = vunpack.c.l.b16 %v1945
        %v1989 = vunpack.c.h.b16 %v1945
        %v1990 = vunpack.c.l.b16 %v1946
        %v1991 = vunpack.c.h.b16 %v1946
        %v1992 = vunpack.c.l.b16 %v1947
        %v1993 = vunpack.c.h.b16 %v1947
        %v1994 = vunpack.c.l.b16 %v1948
        %v1995 = vunpack.c.h.b16 %v1948
        %v1996 = vunpack.c.l.b16 %v1949
        %v1997 = vunpack.c.h.b16 %v1949
        %v1998 = vpack.c.b16 %v1968, %v1966
        %v1999 = vpack.c.b16 %v1969, %v1967
        %v2000 = vpack.c.b16 %v1972, %v1970
        %v2001 = vpack.c.b16 %v1973, %v1971
        %v2002 = vpack.c.b16 %v1976, %v1974
        %v2003 = vpack.c.b16 %v1977, %v1975
        %v2004 = vpack.c.b16 %v1980, %v1978
        %v2005 = vpack.c.b16 %v1981, %v1979
        %v2006 = vpack.c.b16 %v1984, %v1982
        %v2007 = vpack.c.b16 %v1985, %v1983
        %v2008 = vpack.c.b16 %v1988, %v1986
        %v2009 = vpack.c.b16 %v1989, %v1987
        %v2010 = vpack.c.b16 %v1992, %v1990
        %v2011 = vpack.c.b16 %v1993, %v1991
        %v2012 = vpack.c.b16 %v1996, %v1994
        %v2013 = vpack.c.b16 %v1997, %v1995
        %2030 = vmatprep.subr.bf16.mxu0 %v2013
        %2031 = vmatpush1.bf16.msra.mxu0 %v2012
        %2032 = vmatprep.subr.bf16.mxu0 %v2011
        %2033 = vmatpush1.bf16.msra.mxu0 %v2010
        %2034 = vmatprep.subr.bf16.mxu0 %v2009
        %2035 = vmatpush1.bf16.msra.mxu0 %v2008
        %2036 = vmatprep.subr.bf16.mxu0 %v2007
        %2037 = vmatpush1.bf16.msra.mxu0 %v2006
        %2038 = vmatprep.subr.bf16.mxu0 %v2005
        %2039 = vmatpush1.bf16.msra.mxu0 %v2004
        %2040 = vmatprep.subr.bf16.mxu0 %v2003
        %2041 = vmatpush1.bf16.msra.mxu0 %v2002
        %2042 = vmatprep.subr.bf16.mxu0 %v2001
        %2043 = vmatpush1.bf16.msra.mxu0 %v2000
        %2044 = vmatprep.subr.bf16.mxu0 %v1999
        %2045 = vmatpush1.bf16.msra.mxu0 %v1998
        %2046 = vmatprep.subr.bf16.mxu0 0
        %2047 = vmatpush2.bf16.msra.mxu0 0
        %2048 = vmatprep.subr.bf16.mxu0 0
        %2049 = vmatpush2.bf16.msra.mxu0 0
        %2050 = vmatprep.subr.bf16.mxu0 0
        %2051 = vmatpush2.bf16.msra.mxu0 0
        %2052 = vmatprep.subr.bf16.mxu0 0
        %2053 = vmatpush2.bf16.msra.mxu0 0
        %2054 = vmatprep.subr.bf16.mxu0 0
        %2055 = vmatpush2.bf16.msra.mxu0 0
        %2056 = vmatprep.subr.bf16.mxu0 0
        %2057 = vmatpush2.bf16.msra.mxu0 0
        %2058 = vmatprep.subr.bf16.mxu0 0
        %2059 = vmatpush2.bf16.msra.mxu0 0
        %2060 = vmatprep.subr.bf16.mxu0 0
        %2061 = vmatpush2.bf16.msra.mxu0 0
        %2062 = vmatprep.mubr.bf16.mxu0 0
        %2063 = vmatmul.mubr.bf16.gmra.mxu0 %v1932
        %v2064 = vpop.f32.mrf.mxu0
        %v2065 = vadd.f32 0.0, %v2064
        %v2066 = vpop.f32.mrf.mxu0
        %v2067 = vadd.f32 0.0, %v2066
        %v2068 = vpop.f32.mrf.mxu0
        %v2069 = vadd.f32 0.0, %v2068
        %v2070 = vpop.f32.mrf.mxu0
        %v2071 = vadd.f32 0.0, %v2070
        %2072 = vdwg.mxu0
        %v2089 = vunpack.c.l.b16 %v1916
        %v2090 = vunpack.c.h.b16 %v1916
        %v2091 = vunpack.c.l.b16 %v1917
        %v2092 = vunpack.c.h.b16 %v1917
        %v2093 = vunpack.c.l.b16 %v1918
        %v2094 = vunpack.c.h.b16 %v1918
        %v2095 = vunpack.c.l.b16 %v1919
        %v2096 = vunpack.c.h.b16 %v1919
        %v2097 = vunpack.c.l.b16 %v1920
        %v2098 = vunpack.c.h.b16 %v1920
        %v2099 = vunpack.c.l.b16 %v1921
        %v2100 = vunpack.c.h.b16 %v1921
        %v2101 = vunpack.c.l.b16 %v1922
        %v2102 = vunpack.c.h.b16 %v1922
        %v2103 = vunpack.c.l.b16 %v1923
        %v2104 = vunpack.c.h.b16 %v1923
        %v2105 = vunpack.c.l.b16 %v1924
        %v2106 = vunpack.c.h.b16 %v1924
        %v2107 = vunpack.c.l.b16 %v1925
        %v2108 = vunpack.c.h.b16 %v1925
        %v2109 = vunpack.c.l.b16 %v1926
        %v2110 = vunpack.c.h.b16 %v1926
        %v2111 = vunpack.c.l.b16 %v1927
        %v2112 = vunpack.c.h.b16 %v1927
        %v2113 = vunpack.c.l.b16 %v1928
        %v2114 = vunpack.c.h.b16 %v1928
        %v2115 = vunpack.c.l.b16 %v1929
        %v2116 = vunpack.c.h.b16 %v1929
        %v2117 = vunpack.c.l.b16 %v1930
        %v2118 = vunpack.c.h.b16 %v1930
        %v2119 = vunpack.c.l.b16 %v1931
        %v2120 = vunpack.c.h.b16 %v1931
        %v2121 = vpack.c.b16 %v2091, %v2089
        %v2122 = vpack.c.b16 %v2092, %v2090
        %v2123 = vpack.c.b16 %v2095, %v2093
        %v2124 = vpack.c.b16 %v2096, %v2094
        %v2125 = vpack.c.b16 %v2099, %v2097
        %v2126 = vpack.c.b16 %v2100, %v2098
        %v2127 = vpack.c.b16 %v2103, %v2101
        %v2128 = vpack.c.b16 %v2104, %v2102
        %v2129 = vpack.c.b16 %v2107, %v2105
        %v2130 = vpack.c.b16 %v2108, %v2106
        %v2131 = vpack.c.b16 %v2111, %v2109
        %v2132 = vpack.c.b16 %v2112, %v2110
        %v2133 = vpack.c.b16 %v2115, %v2113
        %v2134 = vpack.c.b16 %v2116, %v2114
        %v2135 = vpack.c.b16 %v2119, %v2117
        %v2136 = vpack.c.b16 %v2120, %v2118
        %2153 = vmatprep.subr.bf16.mxu0 %v2136
        %2154 = vmatpush1.bf16.msra.mxu0 %v2135
        %2155 = vmatprep.subr.bf16.mxu0 %v2134
        %2156 = vmatpush1.bf16.msra.mxu0 %v2133
        %2157 = vmatprep.subr.bf16.mxu0 %v2132
        %2158 = vmatpush1.bf16.msra.mxu0 %v2131
        %2159 = vmatprep.subr.bf16.mxu0 %v2130
        %2160 = vmatpush1.bf16.msra.mxu0 %v2129
        %2161 = vmatprep.subr.bf16.mxu0 %v2128
        %2162 = vmatpush1.bf16.msra.mxu0 %v2127
        %2163 = vmatprep.subr.bf16.mxu0 %v2126
        %2164 = vmatpush1.bf16.msra.mxu0 %v2125
        %2165 = vmatprep.subr.bf16.mxu0 %v2124
        %2166 = vmatpush1.bf16.msra.mxu0 %v2123
        %2167 = vmatprep.subr.bf16.mxu0 %v2122
        %2168 = vmatpush1.bf16.msra.mxu0 %v2121
        %2169 = vmatprep.subr.bf16.mxu0 0
        %2170 = vmatpush2.bf16.msra.mxu0 0
        %2171 = vmatprep.subr.bf16.mxu0 0
        %2172 = vmatpush2.bf16.msra.mxu0 0
        %2173 = vmatprep.subr.bf16.mxu0 0
        %2174 = vmatpush2.bf16.msra.mxu0 0
        %2175 = vmatprep.subr.bf16.mxu0 0
        %2176 = vmatpush2.bf16.msra.mxu0 0
        %2177 = vmatprep.subr.bf16.mxu0 0
        %2178 = vmatpush2.bf16.msra.mxu0 0
        %2179 = vmatprep.subr.bf16.mxu0 0
        %2180 = vmatpush2.bf16.msra.mxu0 0
        %2181 = vmatprep.subr.bf16.mxu0 0
        %2182 = vmatpush2.bf16.msra.mxu0 0
        %2183 = vmatprep.subr.bf16.mxu0 0
        %2184 = vmatpush2.bf16.msra.mxu0 0
        %2185 = vmatprep.mubr.bf16.mxu0 0
        %2186 = vmatmul.mubr.bf16.gmra.mxu0 %v1915
        %v2187 = vpop.f32.mrf.mxu0
        %v2188 = vadd.f32 %v2065, %v2187
        %v2189 = vpop.f32.mrf.mxu0
        %v2190 = vadd.f32 %v2067, %v2189
        %v2191 = vpop.f32.mrf.mxu0
        %v2192 = vadd.f32 %v2069, %v2191
        %v2193 = vpop.f32.mrf.mxu0
        %v2194 = vadd.f32 %v2071, %v2193
        %2195 = vdwg.mxu0
        %v2196 = vadd.f32 %v698, %v2188
        %v2197 = vadd.f32 %v699, %v2190
        %v2198 = vadd.f32 %v700, %v2192
        %v2199 = vadd.f32 %v701, %v2194
        %v2200 = vadd.f32 %v2196, %v2197
        %2201 = vadd.xlane.f32.xlu0 %v2200
        %v2202 = vpop.xlane.xlu0 %2201
        %v2203 = vadd.f32 %v2198, %v2199
        %2204 = vadd.xlane.f32.xlu0 %v2203
        %v2205 = vpop.xlane.xlu0 %2204
        %v2206 = vmul.f32 %v2202, %v719
        %v2207 = vmul.f32 %v2205, %v719
        %v2208 = vsub.f32 %v2196, %v2206
        %v2209 = vsub.f32 %v2197, %v2206
        %v2210 = vsub.f32 %v2198, %v2207
        %v2211 = vsub.f32 %v2199, %v2207
        %v2212 = vmul.f32 %v2208, %v2208
        %v2213 = vmul.f32 %v2209, %v2209
        %v2214 = vmul.f32 %v2210, %v2210
        %v2215 = vmul.f32 %v2211, %v2211
        %v2216 = vadd.f32 %v2212, %v2213
        %2217 = vadd.xlane.f32.xlu0 %v2216
        %v2218 = vpop.xlane.xlu0 %2217
        %v2219 = vadd.f32 %v2214, %v2215
        %2220 = vadd.xlane.f32.xlu0 %v2219
        %v2221 = vpop.xlane.xlu0 %2220
        %v2222 = vmul.f32 %v2218, %v719
        %v2223 = vmul.f32 %v2221, %v719
        %v2224 = vadd.f32 %v2222, 1e-05
        %v2225 = vadd.f32 %v2223, 1e-05
        %v2226 = vrsqrt.pop %v2224
        %v2227 = vrsqrt.pop %v2225
        %v2228 = vmul.f32 %v2208, %v2226
        %v2229 = vmul.f32 %v2209, %v2226
        %v2230 = vmul.f32 %v2210, %v2227
        %v2231 = vmul.f32 %v2211, %v2227
        %v2232 = vld [vmem:[%s6] sm:$0x3]
        %v2234 = vlaneseq
        %v2235 = vshrl.u32 %v2234, 7
        %v2236 = vsub.s32 0, %v2235
        %v2237 = vrot.slane %v2232, %v2236
        %v2238 = vlaneseq
        %v2239 = vshrl.u32 %v2238, 7
        %v2240 = vsub.s32 1, %v2239
        %v2241 = vrot.slane %v2232, %v2240
        %v2244 = vmul.f32 %v2228, %v2237
        %v2245 = vmul.f32 %v2229, %v2241
        %v2246 = vmul.f32 %v2230, %v2237
        %v2247 = vmul.f32 %v2231, %v2241
        %v2248 = vpack.c.bf16 %v2246, %v2244
        %v2249 = vpack.c.bf16 %v2247, %v2245
        %v2250 = vld [vmem:[#allocation14] sm:$0xff]
        %v2251 = vld [vmem:[#allocation14 + $0x8] sm:$0xff]
        %v2252 = vld [vmem:[#allocation14 + $0x10] sm:$0xff]
        %v2253 = vld [vmem:[#allocation14 + $0x18] sm:$0xff]
        %v2254 = vld [vmem:[#allocation14 + $0x20] sm:$0xff]
        %v2255 = vld [vmem:[#allocation14 + $0x28] sm:$0xff]
        %v2256 = vld [vmem:[#allocation14 + $0x30] sm:$0xff]
        %v2257 = vld [vmem:[#allocation14 + $0x38] sm:$0xff]
        %v2258 = vld [vmem:[#allocation14 + $0x40] sm:$0xff]
        %v2259 = vld [vmem:[#allocation14 + $0x48] sm:$0xff]
        %v2260 = vld [vmem:[#allocation14 + $0x50] sm:$0xff]
        %v2261 = vld [vmem:[#allocation14 + $0x58] sm:$0xff]
        %v2262 = vld [vmem:[#allocation14 + $0x60] sm:$0xff]
        %v2263 = vld [vmem:[#allocation14 + $0x68] sm:$0xff]
        %v2264 = vld [vmem:[#allocation14 + $0x70] sm:$0xff]
        %v2265 = vld [vmem:[#allocation14 + $0x78] sm:$0xff]
        %v2266 = vld [vmem:[#allocation14 + $0x80] sm:$0xff]
        %v2267 = vld [vmem:[#allocation14 + $0x88] sm:$0xff]
        %v2268 = vld [vmem:[#allocation14 + $0x90] sm:$0xff]
        %v2269 = vld [vmem:[#allocation14 + $0x98] sm:$0xff]
        %v2270 = vld [vmem:[#allocation14 + $0xa0] sm:$0xff]
        %v2271 = vld [vmem:[#allocation14 + $0xa8] sm:$0xff]
        %v2272 = vld [vmem:[#allocation14 + $0xb0] sm:$0xff]
        %v2273 = vld [vmem:[#allocation14 + $0xb8] sm:$0xff]
        %v2274 = vld [vmem:[#allocation14 + $0xc0] sm:$0xff]
        %v2275 = vld [vmem:[#allocation14 + $0xc8] sm:$0xff]
        %v2276 = vld [vmem:[#allocation14 + $0xd0] sm:$0xff]
        %v2277 = vld [vmem:[#allocation14 + $0xd8] sm:$0xff]
        %v2278 = vld [vmem:[#allocation14 + $0xe0] sm:$0xff]
        %v2279 = vld [vmem:[#allocation14 + $0xe8] sm:$0xff]
        %v2280 = vld [vmem:[#allocation14 + $0xf0] sm:$0xff]
        %v2281 = vld [vmem:[#allocation14 + $0xf8] sm:$0xff]
        %v2314 = vunpack.c.l.b16 %v2250
        %v2315 = vunpack.c.h.b16 %v2250
        %v2316 = vunpack.c.l.b16 %v2251
        %v2317 = vunpack.c.h.b16 %v2251
        %v2318 = vunpack.c.l.b16 %v2252
        %v2319 = vunpack.c.h.b16 %v2252
        %v2320 = vunpack.c.l.b16 %v2253
        %v2321 = vunpack.c.h.b16 %v2253
        %v2322 = vunpack.c.l.b16 %v2254
        %v2323 = vunpack.c.h.b16 %v2254
        %v2324 = vunpack.c.l.b16 %v2255
        %v2325 = vunpack.c.h.b16 %v2255
        %v2326 = vunpack.c.l.b16 %v2256
        %v2327 = vunpack.c.h.b16 %v2256
        %v2328 = vunpack.c.l.b16 %v2257
        %v2329 = vunpack.c.h.b16 %v2257
        %v2330 = vunpack.c.l.b16 %v2258
        %v2331 = vunpack.c.h.b16 %v2258
        %v2332 = vunpack.c.l.b16 %v2259
        %v2333 = vunpack.c.h.b16 %v2259
        %v2334 = vunpack.c.l.b16 %v2260
        %v2335 = vunpack.c.h.b16 %v2260
        %v2336 = vunpack.c.l.b16 %v2261
        %v2337 = vunpack.c.h.b16 %v2261
        %v2338 = vunpack.c.l.b16 %v2262
        %v2339 = vunpack.c.h.b16 %v2262
        %v2340 = vunpack.c.l.b16 %v2263
        %v2341 = vunpack.c.h.b16 %v2263
        %v2342 = vunpack.c.l.b16 %v2264
        %v2343 = vunpack.c.h.b16 %v2264
        %v2344 = vunpack.c.l.b16 %v2265
        %v2345 = vunpack.c.h.b16 %v2265
        %v2346 = vunpack.c.l.b16 %v2266
        %v2347 = vunpack.c.h.b16 %v2266
        %v2348 = vunpack.c.l.b16 %v2267
        %v2349 = vunpack.c.h.b16 %v2267
        %v2350 = vunpack.c.l.b16 %v2268
        %v2351 = vunpack.c.h.b16 %v2268
        %v2352 = vunpack.c.l.b16 %v2269
        %v2353 = vunpack.c.h.b16 %v2269
        %v2354 = vunpack.c.l.b16 %v2270
        %v2355 = vunpack.c.h.b16 %v2270
        %v2356 = vunpack.c.l.b16 %v2271
        %v2357 = vunpack.c.h.b16 %v2271
        %v2358 = vunpack.c.l.b16 %v2272
        %v2359 = vunpack.c.h.b16 %v2272
        %v2360 = vunpack.c.l.b16 %v2273
        %v2361 = vunpack.c.h.b16 %v2273
        %v2362 = vunpack.c.l.b16 %v2274
        %v2363 = vunpack.c.h.b16 %v2274
        %v2364 = vunpack.c.l.b16 %v2275
        %v2365 = vunpack.c.h.b16 %v2275
        %v2366 = vunpack.c.l.b16 %v2276
        %v2367 = vunpack.c.h.b16 %v2276
        %v2368 = vunpack.c.l.b16 %v2277
        %v2369 = vunpack.c.h.b16 %v2277
        %v2370 = vunpack.c.l.b16 %v2278
        %v2371 = vunpack.c.h.b16 %v2278
        %v2372 = vunpack.c.l.b16 %v2279
        %v2373 = vunpack.c.h.b16 %v2279
        %v2374 = vunpack.c.l.b16 %v2280
        %v2375 = vunpack.c.h.b16 %v2280
        %v2376 = vunpack.c.l.b16 %v2281
        %v2377 = vunpack.c.h.b16 %v2281
        %v2378 = vpack.c.b16 %v2316, %v2314
        %v2379 = vpack.c.b16 %v2317, %v2315
        %v2380 = vpack.c.b16 %v2320, %v2318
        %v2381 = vpack.c.b16 %v2321, %v2319
        %v2382 = vpack.c.b16 %v2324, %v2322
        %v2383 = vpack.c.b16 %v2325, %v2323
        %v2384 = vpack.c.b16 %v2328, %v2326
        %v2385 = vpack.c.b16 %v2329, %v2327
        %v2386 = vpack.c.b16 %v2332, %v2330
        %v2387 = vpack.c.b16 %v2333, %v2331
        %v2388 = vpack.c.b16 %v2336, %v2334
        %v2389 = vpack.c.b16 %v2337, %v2335
        %v2390 = vpack.c.b16 %v2340, %v2338
        %v2391 = vpack.c.b16 %v2341, %v2339
        %v2392 = vpack.c.b16 %v2344, %v2342
        %v2393 = vpack.c.b16 %v2345, %v2343
        %v2394 = vpack.c.b16 %v2348, %v2346
        %v2395 = vpack.c.b16 %v2349, %v2347
        %v2396 = vpack.c.b16 %v2352, %v2350
        %v2397 = vpack.c.b16 %v2353, %v2351
        %v2398 = vpack.c.b16 %v2356, %v2354
        %v2399 = vpack.c.b16 %v2357, %v2355
        %v2400 = vpack.c.b16 %v2360, %v2358
        %v2401 = vpack.c.b16 %v2361, %v2359
        %v2402 = vpack.c.b16 %v2364, %v2362
        %v2403 = vpack.c.b16 %v2365, %v2363
        %v2404 = vpack.c.b16 %v2368, %v2366
        %v2405 = vpack.c.b16 %v2369, %v2367
        %v2406 = vpack.c.b16 %v2372, %v2370
        %v2407 = vpack.c.b16 %v2373, %v2371
        %v2408 = vpack.c.b16 %v2376, %v2374
        %v2409 = vpack.c.b16 %v2377, %v2375
        %2442 = vmatprep.subr.bf16.mxu0 %v2393
        %2443 = vmatpush1.bf16.msra.mxu0 %v2392
        %2444 = vmatprep.subr.bf16.mxu0 %v2391
        %2445 = vmatpush1.bf16.msra.mxu0 %v2390
        %2446 = vmatprep.subr.bf16.mxu0 %v2389
        %2447 = vmatpush1.bf16.msra.mxu0 %v2388
        %2448 = vmatprep.subr.bf16.mxu0 %v2387
        %2449 = vmatpush1.bf16.msra.mxu0 %v2386
        %2450 = vmatprep.subr.bf16.mxu0 %v2385
        %2451 = vmatpush1.bf16.msra.mxu0 %v2384
        %2452 = vmatprep.subr.bf16.mxu0 %v2383
        %2453 = vmatpush1.bf16.msra.mxu0 %v2382
        %2454 = vmatprep.subr.bf16.mxu0 %v2381
        %2455 = vmatpush1.bf16.msra.mxu0 %v2380
        %2456 = vmatprep.subr.bf16.mxu0 %v2379
        %2457 = vmatpush1.bf16.msra.mxu0 %v2378
        %2458 = vmatprep.subr.bf16.mxu0 %v2409
        %2459 = vmatpush2.bf16.msra.mxu0 %v2408
        %2460 = vmatprep.subr.bf16.mxu0 %v2407
        %2461 = vmatpush2.bf16.msra.mxu0 %v2406
        %2462 = vmatprep.subr.bf16.mxu0 %v2405
        %2463 = vmatpush2.bf16.msra.mxu0 %v2404
        %2464 = vmatprep.subr.bf16.mxu0 %v2403
        %2465 = vmatpush2.bf16.msra.mxu0 %v2402
        %2466 = vmatprep.subr.bf16.mxu0 %v2401
        %2467 = vmatpush2.bf16.msra.mxu0 %v2400
        %2468 = vmatprep.subr.bf16.mxu0 %v2399
        %2469 = vmatpush2.bf16.msra.mxu0 %v2398
        %2470 = vmatprep.subr.bf16.mxu0 %v2397
        %2471 = vmatpush2.bf16.msra.mxu0 %v2396
        %2472 = vmatprep.subr.bf16.mxu0 %v2395
        %2473 = vmatpush2.bf16.msra.mxu0 %v2394
        %2474 = vmatprep.mubr.bf16.mxu0 %v2249
        %2475 = vmatmul.mubr.bf16.gmra.mxu0 %v2248
        %v2476 = vpop.f32.mrf.mxu0
        %v2477 = vadd.f32 0.0, %v2476
        %v2478 = vpop.f32.mrf.mxu0
        %v2479 = vadd.f32 0.0, %v2478
        %v2480 = vpop.f32.mrf.mxu0
        %v2481 = vadd.f32 0.0, %v2480
        %v2482 = vpop.f32.mrf.mxu0
        %v2483 = vadd.f32 0.0, %v2482
        %2484 = vdwg.mxu0
        %v2485 = vpack.c.bf16 %v704, %v702
        %v2486 = vpack.c.bf16 %v705, %v703
        %v2487 = vpack.c.bf16 %v708, %v706
        %v2488 = vpack.c.bf16 %v709, %v707
        %v2489 = vld [vmem:[#allocation16] sm:$0xff]
        %v2490 = vld [vmem:[#allocation16 + $0x8] sm:$0xff]
        %v2491 = vld [vmem:[#allocation16 + $0x10] sm:$0xff]
        %v2492 = vld [vmem:[#allocation16 + $0x18] sm:$0xff]
        %v2493 = vld [vmem:[#allocation16 + $0x20] sm:$0xff]
        %v2494 = vld [vmem:[#allocation16 + $0x28] sm:$0xff]
        %v2495 = vld [vmem:[#allocation16 + $0x30] sm:$0xff]
        %v2496 = vld [vmem:[#allocation16 + $0x38] sm:$0xff]
        %v2497 = vld [vmem:[#allocation16 + $0x40] sm:$0xff]
        %v2498 = vld [vmem:[#allocation16 + $0x48] sm:$0xff]
        %v2499 = vld [vmem:[#allocation16 + $0x50] sm:$0xff]
        %v2500 = vld [vmem:[#allocation16 + $0x58] sm:$0xff]
        %v2501 = vld [vmem:[#allocation16 + $0x60] sm:$0xff]
        %v2502 = vld [vmem:[#allocation16 + $0x68] sm:$0xff]
        %v2503 = vld [vmem:[#allocation16 + $0x70] sm:$0xff]
        %v2504 = vld [vmem:[#allocation16 + $0x78] sm:$0xff]
        %v2505 = vld [vmem:[#allocation16 + $0x80] sm:$0xff]
        %v2506 = vld [vmem:[#allocation16 + $0x88] sm:$0xff]
        %v2507 = vld [vmem:[#allocation16 + $0x90] sm:$0xff]
        %v2508 = vld [vmem:[#allocation16 + $0x98] sm:$0xff]
        %v2509 = vld [vmem:[#allocation16 + $0xa0] sm:$0xff]
        %v2510 = vld [vmem:[#allocation16 + $0xa8] sm:$0xff]
        %v2511 = vld [vmem:[#allocation16 + $0xb0] sm:$0xff]
        %v2512 = vld [vmem:[#allocation16 + $0xb8] sm:$0xff]
        %v2513 = vld [vmem:[#allocation16 + $0xc0] sm:$0xff]
        %v2514 = vld [vmem:[#allocation16 + $0xc8] sm:$0xff]
        %v2515 = vld [vmem:[#allocation16 + $0xd0] sm:$0xff]
        %v2516 = vld [vmem:[#allocation16 + $0xd8] sm:$0xff]
        %v2517 = vld [vmem:[#allocation16 + $0xe0] sm:$0xff]
        %v2518 = vld [vmem:[#allocation16 + $0xe8] sm:$0xff]
        %v2519 = vld [vmem:[#allocation16 + $0xf0] sm:$0xff]
        %v2520 = vld [vmem:[#allocation16 + $0xf8] sm:$0xff]
        %v2521 = vld [vmem:[#allocation16 + $0x100] sm:$0xff]
        %v2522 = vld [vmem:[#allocation16 + $0x108] sm:$0xff]
        %v2523 = vld [vmem:[#allocation16 + $0x110] sm:$0xff]
        %v2524 = vld [vmem:[#allocation16 + $0x118] sm:$0xff]
        %v2525 = vld [vmem:[#allocation16 + $0x120] sm:$0xff]
        %v2526 = vld [vmem:[#allocation16 + $0x128] sm:$0xff]
        %v2527 = vld [vmem:[#allocation16 + $0x130] sm:$0xff]
        %v2528 = vld [vmem:[#allocation16 + $0x138] sm:$0xff]
        %v2529 = vld [vmem:[#allocation16 + $0x140] sm:$0xff]
        %v2530 = vld [vmem:[#allocation16 + $0x148] sm:$0xff]
        %v2531 = vld [vmem:[#allocation16 + $0x150] sm:$0xff]
        %v2532 = vld [vmem:[#allocation16 + $0x158] sm:$0xff]
        %v2533 = vld [vmem:[#allocation16 + $0x160] sm:$0xff]
        %v2534 = vld [vmem:[#allocation16 + $0x168] sm:$0xff]
        %v2535 = vld [vmem:[#allocation16 + $0x170] sm:$0xff]
        %v2536 = vld [vmem:[#allocation16 + $0x178] sm:$0xff]
        %v2537 = vld [vmem:[#allocation16 + $0x180] sm:$0xff]
        %v2538 = vld [vmem:[#allocation16 + $0x188] sm:$0xff]
        %v2539 = vld [vmem:[#allocation16 + $0x190] sm:$0xff]
        %v2540 = vld [vmem:[#allocation16 + $0x198] sm:$0xff]
        %v2541 = vld [vmem:[#allocation16 + $0x1a0] sm:$0xff]
        %v2542 = vld [vmem:[#allocation16 + $0x1a8] sm:$0xff]
        %v2543 = vld [vmem:[#allocation16 + $0x1b0] sm:$0xff]
        %v2544 = vld [vmem:[#allocation16 + $0x1b8] sm:$0xff]
        %v2545 = vld [vmem:[#allocation16 + $0x1c0] sm:$0xff]
        %v2546 = vld [vmem:[#allocation16 + $0x1c8] sm:$0xff]
        %v2547 = vld [vmem:[#allocation16 + $0x1d0] sm:$0xff]
        %v2548 = vld [vmem:[#allocation16 + $0x1d8] sm:$0xff]
        %v2549 = vld [vmem:[#allocation16 + $0x1e0] sm:$0xff]
        %v2550 = vld [vmem:[#allocation16 + $0x1e8] sm:$0xff]
        %v2551 = vld [vmem:[#allocation16 + $0x1f0] sm:$0xff]
        %v2552 = vld [vmem:[#allocation16 + $0x1f8] sm:$0xff]
        %v2617 = vunpack.c.l.b16 %v2489
        %v2618 = vunpack.c.h.b16 %v2489
        %v2619 = vunpack.c.l.b16 %v2490
        %v2620 = vunpack.c.h.b16 %v2490
        %v2621 = vunpack.c.l.b16 %v2491
        %v2622 = vunpack.c.h.b16 %v2491
        %v2623 = vunpack.c.l.b16 %v2492
        %v2624 = vunpack.c.h.b16 %v2492
        %v2625 = vunpack.c.l.b16 %v2493
        %v2626 = vunpack.c.h.b16 %v2493
        %v2627 = vunpack.c.l.b16 %v2494
        %v2628 = vunpack.c.h.b16 %v2494
        %v2629 = vunpack.c.l.b16 %v2495
        %v2630 = vunpack.c.h.b16 %v2495
        %v2631 = vunpack.c.l.b16 %v2496
        %v2632 = vunpack.c.h.b16 %v2496
        %v2633 = vunpack.c.l.b16 %v2497
        %v2634 = vunpack.c.h.b16 %v2497
        %v2635 = vunpack.c.l.b16 %v2498
        %v2636 = vunpack.c.h.b16 %v2498
        %v2637 = vunpack.c.l.b16 %v2499
        %v2638 = vunpack.c.h.b16 %v2499
        %v2639 = vunpack.c.l.b16 %v2500
        %v2640 = vunpack.c.h.b16 %v2500
        %v2641 = vunpack.c.l.b16 %v2501
        %v2642 = vunpack.c.h.b16 %v2501
        %v2643 = vunpack.c.l.b16 %v2502
        %v2644 = vunpack.c.h.b16 %v2502
        %v2645 = vunpack.c.l.b16 %v2503
        %v2646 = vunpack.c.h.b16 %v2503
        %v2647 = vunpack.c.l.b16 %v2504
        %v2648 = vunpack.c.h.b16 %v2504
        %v2649 = vunpack.c.l.b16 %v2505
        %v2650 = vunpack.c.h.b16 %v2505
        %v2651 = vunpack.c.l.b16 %v2506
        %v2652 = vunpack.c.h.b16 %v2506
        %v2653 = vunpack.c.l.b16 %v2507
        %v2654 = vunpack.c.h.b16 %v2507
        %v2655 = vunpack.c.l.b16 %v2508
        %v2656 = vunpack.c.h.b16 %v2508
        %v2657 = vunpack.c.l.b16 %v2509
        %v2658 = vunpack.c.h.b16 %v2509
        %v2659 = vunpack.c.l.b16 %v2510
        %v2660 = vunpack.c.h.b16 %v2510
        %v2661 = vunpack.c.l.b16 %v2511
        %v2662 = vunpack.c.h.b16 %v2511
        %v2663 = vunpack.c.l.b16 %v2512
        %v2664 = vunpack.c.h.b16 %v2512
        %v2665 = vunpack.c.l.b16 %v2513
        %v2666 = vunpack.c.h.b16 %v2513
        %v2667 = vunpack.c.l.b16 %v2514
        %v2668 = vunpack.c.h.b16 %v2514
        %v2669 = vunpack.c.l.b16 %v2515
        %v2670 = vunpack.c.h.b16 %v2515
        %v2671 = vunpack.c.l.b16 %v2516
        %v2672 = vunpack.c.h.b16 %v2516
        %v2673 = vunpack.c.l.b16 %v2517
        %v2674 = vunpack.c.h.b16 %v2517
        %v2675 = vunpack.c.l.b16 %v2518
        %v2676 = vunpack.c.h.b16 %v2518
        %v2677 = vunpack.c.l.b16 %v2519
        %v2678 = vunpack.c.h.b16 %v2519
        %v2679 = vunpack.c.l.b16 %v2520
        %v2680 = vunpack.c.h.b16 %v2520
        %v2681 = vunpack.c.l.b16 %v2521
        %v2682 = vunpack.c.h.b16 %v2521
        %v2683 = vunpack.c.l.b16 %v2522
        %v2684 = vunpack.c.h.b16 %v2522
        %v2685 = vunpack.c.l.b16 %v2523
        %v2686 = vunpack.c.h.b16 %v2523
        %v2687 = vunpack.c.l.b16 %v2524
        %v2688 = vunpack.c.h.b16 %v2524
        %v2689 = vunpack.c.l.b16 %v2525
        %v2690 = vunpack.c.h.b16 %v2525
        %v2691 = vunpack.c.l.b16 %v2526
        %v2692 = vunpack.c.h.b16 %v2526
        %v2693 = vunpack.c.l.b16 %v2527
        %v2694 = vunpack.c.h.b16 %v2527
        %v2695 = vunpack.c.l.b16 %v2528
        %v2696 = vunpack.c.h.b16 %v2528
        %v2697 = vunpack.c.l.b16 %v2529
        %v2698 = vunpack.c.h.b16 %v2529
        %v2699 = vunpack.c.l.b16 %v2530
        %v2700 = vunpack.c.h.b16 %v2530
        %v2701 = vunpack.c.l.b16 %v2531
        %v2702 = vunpack.c.h.b16 %v2531
        %v2703 = vunpack.c.l.b16 %v2532
        %v2704 = vunpack.c.h.b16 %v2532
        %v2705 = vunpack.c.l.b16 %v2533
        %v2706 = vunpack.c.h.b16 %v2533
        %v2707 = vunpack.c.l.b16 %v2534
        %v2708 = vunpack.c.h.b16 %v2534
        %v2709 = vunpack.c.l.b16 %v2535
        %v2710 = vunpack.c.h.b16 %v2535
        %v2711 = vunpack.c.l.b16 %v2536
        %v2712 = vunpack.c.h.b16 %v2536
        %v2713 = vunpack.c.l.b16 %v2537
        %v2714 = vunpack.c.h.b16 %v2537
        %v2715 = vunpack.c.l.b16 %v2538
        %v2716 = vunpack.c.h.b16 %v2538
        %v2717 = vunpack.c.l.b16 %v2539
        %v2718 = vunpack.c.h.b16 %v2539
        %v2719 = vunpack.c.l.b16 %v2540
        %v2720 = vunpack.c.h.b16 %v2540
        %v2721 = vunpack.c.l.b16 %v2541
        %v2722 = vunpack.c.h.b16 %v2541
        %v2723 = vunpack.c.l.b16 %v2542
        %v2724 = vunpack.c.h.b16 %v2542
        %v2725 = vunpack.c.l.b16 %v2543
        %v2726 = vunpack.c.h.b16 %v2543
        %v2727 = vunpack.c.l.b16 %v2544
        %v2728 = vunpack.c.h.b16 %v2544
        %v2729 = vunpack.c.l.b16 %v2545
        %v2730 = vunpack.c.h.b16 %v2545
        %v2731 = vunpack.c.l.b16 %v2546
        %v2732 = vunpack.c.h.b16 %v2546
        %v2733 = vunpack.c.l.b16 %v2547
        %v2734 = vunpack.c.h.b16 %v2547
        %v2735 = vunpack.c.l.b16 %v2548
        %v2736 = vunpack.c.h.b16 %v2548
        %v2737 = vunpack.c.l.b16 %v2549
        %v2738 = vunpack.c.h.b16 %v2549
        %v2739 = vunpack.c.l.b16 %v2550
        %v2740 = vunpack.c.h.b16 %v2550
        %v2741 = vunpack.c.l.b16 %v2551
        %v2742 = vunpack.c.h.b16 %v2551
        %v2743 = vunpack.c.l.b16 %v2552
        %v2744 = vunpack.c.h.b16 %v2552
        %v2745 = vpack.c.b16 %v2621, %v2617
        %v2746 = vpack.c.b16 %v2622, %v2618
        %v2747 = vpack.c.b16 %v2623, %v2619
        %v2748 = vpack.c.b16 %v2624, %v2620
        %v2749 = vpack.c.b16 %v2629, %v2625
        %v2750 = vpack.c.b16 %v2630, %v2626
        %v2751 = vpack.c.b16 %v2631, %v2627
        %v2752 = vpack.c.b16 %v2632, %v2628
        %v2753 = vpack.c.b16 %v2637, %v2633
        %v2754 = vpack.c.b16 %v2638, %v2634
        %v2755 = vpack.c.b16 %v2639, %v2635
        %v2756 = vpack.c.b16 %v2640, %v2636
        %v2757 = vpack.c.b16 %v2645, %v2641
        %v2758 = vpack.c.b16 %v2646, %v2642
        %v2759 = vpack.c.b16 %v2647, %v2643
        %v2760 = vpack.c.b16 %v2648, %v2644
        %v2761 = vpack.c.b16 %v2653, %v2649
        %v2762 = vpack.c.b16 %v2654, %v2650
        %v2763 = vpack.c.b16 %v2655, %v2651
        %v2764 = vpack.c.b16 %v2656, %v2652
        %v2765 = vpack.c.b16 %v2661, %v2657
        %v2766 = vpack.c.b16 %v2662, %v2658
        %v2767 = vpack.c.b16 %v2663, %v2659
        %v2768 = vpack.c.b16 %v2664, %v2660
        %v2769 = vpack.c.b16 %v2669, %v2665
        %v2770 = vpack.c.b16 %v2670, %v2666
        %v2771 = vpack.c.b16 %v2671, %v2667
        %v2772 = vpack.c.b16 %v2672, %v2668
        %v2773 = vpack.c.b16 %v2677, %v2673
        %v2774 = vpack.c.b16 %v2678, %v2674
        %v2775 = vpack.c.b16 %v2679, %v2675
        %v2776 = vpack.c.b16 %v2680, %v2676
        %v2777 = vpack.c.b16 %v2685, %v2681
        %v2778 = vpack.c.b16 %v2686, %v2682
        %v2779 = vpack.c.b16 %v2687, %v2683
        %v2780 = vpack.c.b16 %v2688, %v2684
        %v2781 = vpack.c.b16 %v2693, %v2689
        %v2782 = vpack.c.b16 %v2694, %v2690
        %v2783 = vpack.c.b16 %v2695, %v2691
        %v2784 = vpack.c.b16 %v2696, %v2692
        %v2785 = vpack.c.b16 %v2701, %v2697
        %v2786 = vpack.c.b16 %v2702, %v2698
        %v2787 = vpack.c.b16 %v2703, %v2699
        %v2788 = vpack.c.b16 %v2704, %v2700
        %v2789 = vpack.c.b16 %v2709, %v2705
        %v2790 = vpack.c.b16 %v2710, %v2706
        %v2791 = vpack.c.b16 %v2711, %v2707
        %v2792 = vpack.c.b16 %v2712, %v2708
        %v2793 = vpack.c.b16 %v2717, %v2713
        %v2794 = vpack.c.b16 %v2718, %v2714
        %v2795 = vpack.c.b16 %v2719, %v2715
        %v2796 = vpack.c.b16 %v2720, %v2716
        %v2797 = vpack.c.b16 %v2725, %v2721
        %v2798 = vpack.c.b16 %v2726, %v2722
        %v2799 = vpack.c.b16 %v2727, %v2723
        %v2800 = vpack.c.b16 %v2728, %v2724
        %v2801 = vpack.c.b16 %v2733, %v2729
        %v2802 = vpack.c.b16 %v2734, %v2730
        %v2803 = vpack.c.b16 %v2735, %v2731
        %v2804 = vpack.c.b16 %v2736, %v2732
        %v2805 = vpack.c.b16 %v2741, %v2737
        %v2806 = vpack.c.b16 %v2742, %v2738
        %v2807 = vpack.c.b16 %v2743, %v2739
        %v2808 = vpack.c.b16 %v2744, %v2740
        %2873 = vmatprep.subr.bf16.mxu0 %v2774
        %2874 = vmatpush1.bf16.msra.mxu0 %v2773
        %2875 = vmatprep.subr.bf16.mxu0 %v2770
        %2876 = vmatpush1.bf16.msra.mxu0 %v2769
        %2877 = vmatprep.subr.bf16.mxu0 %v2766
        %2878 = vmatpush1.bf16.msra.mxu0 %v2765
        %2879 = vmatprep.subr.bf16.mxu0 %v2762
        %2880 = vmatpush1.bf16.msra.mxu0 %v2761
        %2881 = vmatprep.subr.bf16.mxu0 %v2758
        %2882 = vmatpush1.bf16.msra.mxu0 %v2757
        %2883 = vmatprep.subr.bf16.mxu0 %v2754
        %2884 = vmatpush1.bf16.msra.mxu0 %v2753
        %2885 = vmatprep.subr.bf16.mxu0 %v2750
        %2886 = vmatpush1.bf16.msra.mxu0 %v2749
        %2887 = vmatprep.subr.bf16.mxu0 %v2746
        %2888 = vmatpush1.bf16.msra.mxu0 %v2745
        %2889 = vmatprep.subr.bf16.mxu0 %v2806
        %2890 = vmatpush2.bf16.msra.mxu0 %v2805
        %2891 = vmatprep.subr.bf16.mxu0 %v2802
        %2892 = vmatpush2.bf16.msra.mxu0 %v2801
        %2893 = vmatprep.subr.bf16.mxu0 %v2798
        %2894 = vmatpush2.bf16.msra.mxu0 %v2797
        %2895 = vmatprep.subr.bf16.mxu0 %v2794
        %2896 = vmatpush2.bf16.msra.mxu0 %v2793
        %2897 = vmatprep.subr.bf16.mxu0 %v2790
        %2898 = vmatpush2.bf16.msra.mxu0 %v2789
        %2899 = vmatprep.subr.bf16.mxu0 %v2786
        %2900 = vmatpush2.bf16.msra.mxu0 %v2785
        %2901 = vmatprep.subr.bf16.mxu0 %v2782
        %2902 = vmatpush2.bf16.msra.mxu0 %v2781
        %2903 = vmatprep.subr.bf16.mxu0 %v2778
        %2904 = vmatpush2.bf16.msra.mxu0 %v2777
        %2905 = vmatprep.mubr.bf16.mxu0 %v2486
        %2906 = vmatmul.mubr.bf16.gmra.mxu0 %v2485
        %v2907 = vpop.f32.mrf.mxu0
        %v2908 = vadd.f32 0.0, %v2907
        %v2909 = vpop.f32.mrf.mxu0
        %v2910 = vadd.f32 0.0, %v2909
        %v2911 = vpop.f32.mrf.mxu0
        %v2912 = vadd.f32 0.0, %v2911
        %v2913 = vpop.f32.mrf.mxu0
        %v2914 = vadd.f32 0.0, %v2913
        %2915 = vmatprep.mubr.bf16.mxu0 %v2488
        %2916 = vmatmul.mubr.bf16.gmra.mxu0 %v2487
        %v2917 = vpop.f32.mrf.mxu0
        %v2918 = vadd.f32 0.0, %v2917
        %v2919 = vpop.f32.mrf.mxu0
        %v2920 = vadd.f32 0.0, %v2919
        %v2921 = vpop.f32.mrf.mxu0
        %v2922 = vadd.f32 0.0, %v2921
        %v2923 = vpop.f32.mrf.mxu0
        %v2924 = vadd.f32 0.0, %v2923
        %2925 = vdwg.mxu0
        %2926 = vmatprep.subr.bf16.mxu0 %v2776
        %2927 = vmatpush1.bf16.msra.mxu0 %v2775
        %2928 = vmatprep.subr.bf16.mxu0 %v2772
        %2929 = vmatpush1.bf16.msra.mxu0 %v2771
        %2930 = vmatprep.subr.bf16.mxu0 %v2768
        %2931 = vmatpush1.bf16.msra.mxu0 %v2767
        %2932 = vmatprep.subr.bf16.mxu0 %v2764
        %2933 = vmatpush1.bf16.msra.mxu0 %v2763
        %2934 = vmatprep.subr.bf16.mxu0 %v2760
        %2935 = vmatpush1.bf16.msra.mxu0 %v2759
        %2936 = vmatprep.subr.bf16.mxu0 %v2756
        %2937 = vmatpush1.bf16.msra.mxu0 %v2755
        %2938 = vmatprep.subr.bf16.mxu0 %v2752
        %2939 = vmatpush1.bf16.msra.mxu0 %v2751
        %2940 = vmatprep.subr.bf16.mxu0 %v2748
        %2941 = vmatpush1.bf16.msra.mxu0 %v2747
        %2942 = vmatprep.subr.bf16.mxu0 %v2808
        %2943 = vmatpush2.bf16.msra.mxu0 %v2807
        %2944 = vmatprep.subr.bf16.mxu0 %v2804
        %2945 = vmatpush2.bf16.msra.mxu0 %v2803
        %2946 = vmatprep.subr.bf16.mxu0 %v2800
        %2947 = vmatpush2.bf16.msra.mxu0 %v2799
        %2948 = vmatprep.subr.bf16.mxu0 %v2796
        %2949 = vmatpush2.bf16.msra.mxu0 %v2795
        %2950 = vmatprep.subr.bf16.mxu0 %v2792
        %2951 = vmatpush2.bf16.msra.mxu0 %v2791
        %2952 = vmatprep.subr.bf16.mxu0 %v2788
        %2953 = vmatpush2.bf16.msra.mxu0 %v2787
        %2954 = vmatprep.subr.bf16.mxu0 %v2784
        %2955 = vmatpush2.bf16.msra.mxu0 %v2783
        %2956 = vmatprep.subr.bf16.mxu0 %v2780
        %2957 = vmatpush2.bf16.msra.mxu0 %v2779
        %2958 = vmatprep.mubr.bf16.mxu0 %v2486
        %2959 = vmatmul.mubr.bf16.gmra.mxu0 %v2485
        %v2960 = vpop.f32.mrf.mxu0
        %v2961 = vadd.f32 0.0, %v2960
        %v2962 = vpop.f32.mrf.mxu0
        %v2963 = vadd.f32 0.0, %v2962
        %v2964 = vpop.f32.mrf.mxu0
        %v2965 = vadd.f32 0.0, %v2964
        %v2966 = vpop.f32.mrf.mxu0
        %v2967 = vadd.f32 0.0, %v2966
        %2968 = vmatprep.mubr.bf16.mxu0 %v2488
        %2969 = vmatmul.mubr.bf16.gmra.mxu0 %v2487
        %v2970 = vpop.f32.mrf.mxu0
        %v2971 = vadd.f32 0.0, %v2970
        %v2972 = vpop.f32.mrf.mxu0
        %v2973 = vadd.f32 0.0, %v2972
        %v2974 = vpop.f32.mrf.mxu0
        %v2975 = vadd.f32 0.0, %v2974
        %v2976 = vpop.f32.mrf.mxu0
        %v2977 = vadd.f32 0.0, %v2976
        %2978 = vdwg.mxu0
        %v2979 = vpack.c.bf16 %v2477, %v2477
        %v2980 = vpack.c.bf16 %v2481, %v2481
        %v2981 = vpack.c.bf16 %v2479, %v2479
        %v2982 = vpack.c.bf16 %v2483, %v2483
        %v2983 = vpack.c.bf16 %v2912, %v2908
        %v2984 = vpack.c.bf16 %v2922, %v2918
        %v2985 = vpack.c.bf16 %v2914, %v2910
        %v2986 = vpack.c.bf16 %v2924, %v2920
        %2987 = vmatprep.subr.bf16.mxu0 0
        %2988 = vmatpush1.bf16.xpose.msra.mxu0 0
        %2989 = vmatprep.subr.bf16.mxu0 0
        %2990 = vmatpush1.bf16.xpose.msra.mxu0 0
        %2991 = vmatprep.subr.bf16.mxu0 0
        %2992 = vmatpush1.bf16.xpose.msra.mxu0 0
        %2993 = vmatprep.subr.bf16.mxu0 0
        %2994 = vmatpush1.bf16.xpose.msra.mxu0 0
        %2995 = vmatprep.subr.bf16.mxu0 0
        %2996 = vmatpush1.bf16.xpose.msra.mxu0 0
        %2997 = vmatprep.subr.bf16.mxu0 0
        %2998 = vmatpush1.bf16.xpose.msra.mxu0 0
        %2999 = vmatprep.subr.bf16.mxu0 0
        %3000 = vmatpush1.bf16.xpose.msra.mxu0 0
        %3001 = vmatprep.subr.bf16.mxu0 0
        %3002 = vmatpush1.bf16.xpose.msra.mxu0 %v2983
        %3003 = vmatprep.subr.bf16.mxu0 0
        %3004 = vmatpush2.bf16.xpose.msra.mxu0 0
        %3005 = vmatprep.subr.bf16.mxu0 0
        %3006 = vmatpush2.bf16.xpose.msra.mxu0 0
        %3007 = vmatprep.subr.bf16.mxu0 0
        %3008 = vmatpush2.bf16.xpose.msra.mxu0 0
        %3009 = vmatprep.subr.bf16.mxu0 0
        %3010 = vmatpush2.bf16.xpose.msra.mxu0 0
        %3011 = vmatprep.subr.bf16.mxu0 0
        %3012 = vmatpush2.bf16.xpose.msra.mxu0 0
        %3013 = vmatprep.subr.bf16.mxu0 0
        %3014 = vmatpush2.bf16.xpose.msra.mxu0 0
        %3015 = vmatprep.subr.bf16.mxu0 0
        %3016 = vmatpush2.bf16.xpose.msra.mxu0 0
        %3017 = vmatprep.subr.bf16.mxu0 0
        %3018 = vmatpush2.bf16.xpose.msra.mxu0 0
        %3019 = vmatprep.mubr.bf16.mxu0 0
        %3020 = vmatmul.mubr.bf16.gmra.mxu0 %v2979
        %v3021 = vpop.f32.mrf.mxu0
        %v3022 = vadd.f32 0.0, %v3021
        %v3023 = vpop.f32.mrf.mxu0
        %v3024 = vpop.f32.mrf.mxu0
        %v3025 = vpop.f32.mrf.mxu0
        %3026 = vdwg.mxu0
        %3027 = vmatprep.subr.bf16.mxu0 0
        %3028 = vmatpush1.bf16.xpose.msra.mxu0 0
        %3029 = vmatprep.subr.bf16.mxu0 0
        %3030 = vmatpush1.bf16.xpose.msra.mxu0 0
        %3031 = vmatprep.subr.bf16.mxu0 0
        %3032 = vmatpush1.bf16.xpose.msra.mxu0 0
        %3033 = vmatprep.subr.bf16.mxu0 0
        %3034 = vmatpush1.bf16.xpose.msra.mxu0 0
        %3035 = vmatprep.subr.bf16.mxu0 0
        %3036 = vmatpush1.bf16.xpose.msra.mxu0 0
        %3037 = vmatprep.subr.bf16.mxu0 0
        %3038 = vmatpush1.bf16.xpose.msra.mxu0 0
        %3039 = vmatprep.subr.bf16.mxu0 0
        %3040 = vmatpush1.bf16.xpose.msra.mxu0 0
        %3041 = vmatprep.subr.bf16.mxu0 0
        %3042 = vmatpush1.bf16.xpose.msra.mxu0 %v2984
        %3043 = vmatprep.subr.bf16.mxu0 0
        %3044 = vmatpush2.bf16.xpose.msra.mxu0 0
        %3045 = vmatprep.subr.bf16.mxu0 0
        %3046 = vmatpush2.bf16.xpose.msra.mxu0 0
        %3047 = vmatprep.subr.bf16.mxu0 0
        %3048 = vmatpush2.bf16.xpose.msra.mxu0 0
        %3049 = vmatprep.subr.bf16.mxu0 0
        %3050 = vmatpush2.bf16.xpose.msra.mxu0 0
        %3051 = vmatprep.subr.bf16.mxu0 0
        %3052 = vmatpush2.bf16.xpose.msra.mxu0 0
        %3053 = vmatprep.subr.bf16.mxu0 0
        %3054 = vmatpush2.bf16.xpose.msra.mxu0 0
        %3055 = vmatprep.subr.bf16.mxu0 0
        %3056 = vmatpush2.bf16.xpose.msra.mxu0 0
        %3057 = vmatprep.subr.bf16.mxu0 0
        %3058 = vmatpush2.bf16.xpose.msra.mxu0 0
        %3059 = vmatprep.mubr.bf16.mxu0 0
        %3060 = vmatmul.mubr.bf16.gmra.mxu0 %v2980
        %v3061 = vpop.f32.mrf.mxu0
        %v3062 = vadd.f32 0.0, %v3061
        %v3063 = vpop.f32.mrf.mxu0
        %v3064 = vpop.f32.mrf.mxu0
        %v3065 = vpop.f32.mrf.mxu0
        %3066 = vdwg.mxu0
        %3067 = vmatprep.subr.bf16.mxu0 0
        %3068 = vmatpush1.bf16.xpose.msra.mxu0 0
        %3069 = vmatprep.subr.bf16.mxu0 0
        %3070 = vmatpush1.bf16.xpose.msra.mxu0 0
        %3071 = vmatprep.subr.bf16.mxu0 0
        %3072 = vmatpush1.bf16.xpose.msra.mxu0 0
        %3073 = vmatprep.subr.bf16.mxu0 0
        %3074 = vmatpush1.bf16.xpose.msra.mxu0 0
        %3075 = vmatprep.subr.bf16.mxu0 0
        %3076 = vmatpush1.bf16.xpose.msra.mxu0 0
        %3077 = vmatprep.subr.bf16.mxu0 0
        %3078 = vmatpush1.bf16.xpose.msra.mxu0 0
        %3079 = vmatprep.subr.bf16.mxu0 0
        %3080 = vmatpush1.bf16.xpose.msra.mxu0 0
        %3081 = vmatprep.subr.bf16.mxu0 0
        %3082 = vmatpush1.bf16.xpose.msra.mxu0 %v2985
        %3083 = vmatprep.subr.bf16.mxu0 0
        %3084 = vmatpush2.bf16.xpose.msra.mxu0 0
        %3085 = vmatprep.subr.bf16.mxu0 0
        %3086 = vmatpush2.bf16.xpose.msra.mxu0 0
        %3087 = vmatprep.subr.bf16.mxu0 0
        %3088 = vmatpush2.bf16.xpose.msra.mxu0 0
        %3089 = vmatprep.subr.bf16.mxu0 0
        %3090 = vmatpush2.bf16.xpose.msra.mxu0 0
        %3091 = vmatprep.subr.bf16.mxu0 0
        %3092 = vmatpush2.bf16.xpose.msra.mxu0 0
        %3093 = vmatprep.subr.bf16.mxu0 0
        %3094 = vmatpush2.bf16.xpose.msra.mxu0 0
        %3095 = vmatprep.subr.bf16.mxu0 0
        %3096 = vmatpush2.bf16.xpose.msra.mxu0 0
        %3097 = vmatprep.subr.bf16.mxu0 0
        %3098 = vmatpush2.bf16.xpose.msra.mxu0 0
        %3099 = vmatprep.mubr.bf16.mxu0 0
        %3100 = vmatmul.mubr.bf16.gmra.mxu0 %v2981
        %v3101 = vpop.f32.mrf.mxu0
        %v3102 = vadd.f32 0.0, %v3101
        %v3103 = vpop.f32.mrf.mxu0
        %v3104 = vpop.f32.mrf.mxu0
        %v3105 = vpop.f32.mrf.mxu0
        %3106 = vdwg.mxu0
        %3107 = vmatprep.subr.bf16.mxu0 0
        %3108 = vmatpush1.bf16.xpose.msra.mxu0 0
        %3109 = vmatprep.subr.bf16.mxu0 0
        %3110 = vmatpush1.bf16.xpose.msra.mxu0 0
        %3111 = vmatprep.subr.bf16.mxu0 0
        %3112 = vmatpush1.bf16.xpose.msra.mxu0 0
        %3113 = vmatprep.subr.bf16.mxu0 0
        %3114 = vmatpush1.bf16.xpose.msra.mxu0 0
        %3115 = vmatprep.subr.bf16.mxu0 0
        %3116 = vmatpush1.bf16.xpose.msra.mxu0 0
        %3117 = vmatprep.subr.bf16.mxu0 0
        %3118 = vmatpush1.bf16.xpose.msra.mxu0 0
        %3119 = vmatprep.subr.bf16.mxu0 0
        %3120 = vmatpush1.bf16.xpose.msra.mxu0 0
        %3121 = vmatprep.subr.bf16.mxu0 0
        %3122 = vmatpush1.bf16.xpose.msra.mxu0 %v2986
        %3123 = vmatprep.subr.bf16.mxu0 0
        %3124 = vmatpush2.bf16.xpose.msra.mxu0 0
        %3125 = vmatprep.subr.bf16.mxu0 0
        %3126 = vmatpush2.bf16.xpose.msra.mxu0 0
        %3127 = vmatprep.subr.bf16.mxu0 0
        %3128 = vmatpush2.bf16.xpose.msra.mxu0 0
        %3129 = vmatprep.subr.bf16.mxu0 0
        %3130 = vmatpush2.bf16.xpose.msra.mxu0 0
        %3131 = vmatprep.subr.bf16.mxu0 0
        %3132 = vmatpush2.bf16.xpose.msra.mxu0 0
        %3133 = vmatprep.subr.bf16.mxu0 0
        %3134 = vmatpush2.bf16.xpose.msra.mxu0 0
        %3135 = vmatprep.subr.bf16.mxu0 0
        %3136 = vmatpush2.bf16.xpose.msra.mxu0 0
        %3137 = vmatprep.subr.bf16.mxu0 0
        %3138 = vmatpush2.bf16.xpose.msra.mxu0 0
        %3139 = vmatprep.mubr.bf16.mxu0 0
        %3140 = vmatmul.mubr.bf16.gmra.mxu0 %v2982
        %v3141 = vpop.f32.mrf.mxu0
        %v3142 = vadd.f32 0.0, %v3141
        %v3143 = vpop.f32.mrf.mxu0
        %v3144 = vpop.f32.mrf.mxu0
        %v3145 = vpop.f32.mrf.mxu0
        %3146 = vdwg.mxu0
        %vm3147 = vcmask 130048
        %v3148 = vsel %vm3147, %v3022, -inf
        %3149 = vmax.xlane.f32.xlu0 %v3148
        %v3150 = vpop.xlane.xlu0 %3149
        %v3151 = vsel %vm3147, %v3062, -inf
        %3152 = vmax.xlane.f32.xlu0 %v3151
        %v3153 = vpop.xlane.xlu0 %3152
        %v3154 = vsel %vm3147, %v3102, -inf
        %3155 = vmax.xlane.f32.xlu0 %v3154
        %v3156 = vpop.xlane.xlu0 %3155
        %v3157 = vsel %vm3147, %v3142, -inf
        %3158 = vmax.xlane.f32.xlu0 %v3157
        %v3159 = vpop.xlane.xlu0 %3158
        %v3160 = vsub.f32 %v3022, %v3150
        %v3161 = vsub.f32 %v3062, %v3153
        %v3162 = vsub.f32 %v3102, %v3156
        %v3163 = vsub.f32 %v3142, %v3159
        %v3164 = vmul.f32 %v3160, 1.442695
        %v3165 = vpow.pop %v3164
        %v3166 = vmul.f32 %v3161, 1.442695
        %v3167 = vpow.pop %v3166
        %v3168 = vmul.f32 %v3162, 1.442695
        %v3169 = vpow.pop %v3168
        %v3170 = vmul.f32 %v3163, 1.442695
        %v3171 = vpow.pop %v3170
        %v3172 = vsel %vm3147, %v3165, 0.0
        %3173 = vadd.xlane.f32.xlu0 %v3172
        %v3174 = vpop.xlane.xlu0 %3173
        %v3175 = vsel %vm3147, %v3167, 0.0
        %3176 = vadd.xlane.f32.xlu0 %v3175
        %v3177 = vpop.xlane.xlu0 %3176
        %v3178 = vsel %vm3147, %v3169, 0.0
        %3179 = vadd.xlane.f32.xlu0 %v3178
        %v3180 = vpop.xlane.xlu0 %3179
        %v3181 = vsel %vm3147, %v3171, 0.0
        %3182 = vadd.xlane.f32.xlu0 %v3181
        %v3183 = vpop.xlane.xlu0 %3182
        %v3184 = vrcp.pop %v3174
        %v3185 = vrcp.pop %v3177
        %v3186 = vrcp.pop %v3180
        %v3187 = vrcp.pop %v3183
        %v3188 = vmul.f32 %v3165, %v3184
        %v3189 = vmul.f32 %v3167, %v3185
        %v3190 = vmul.f32 %v3169, %v3186
        %v3191 = vmul.f32 %v3171, %v3187
        %v3192 = vpack.c.bf16 %v3188, %v3188
        %v3193 = vpack.c.bf16 %v3189, %v3189
        %v3194 = vpack.c.bf16 %v3190, %v3190
        %v3195 = vpack.c.bf16 %v3191, %v3191
        %v3196 = vpack.c.bf16 %v2965, %v2961
        %v3197 = vpack.c.bf16 %v2975, %v2971
        %v3198 = vpack.c.bf16 %v2967, %v2963
        %v3199 = vpack.c.bf16 %v2977, %v2973
        %v3201 = vsel %vm3147, %v3192, 0
        %3203 = vmatprep.subr.bf16.mxu0 0
        %3204 = vmatpush1.bf16.msra.mxu0 0
        %3205 = vmatprep.subr.bf16.mxu0 0
        %3206 = vmatpush1.bf16.msra.mxu0 0
        %3207 = vmatprep.subr.bf16.mxu0 0
        %3208 = vmatpush1.bf16.msra.mxu0 0
        %3209 = vmatprep.subr.bf16.mxu0 0
        %3210 = vmatpush1.bf16.msra.mxu0 0
        %3211 = vmatprep.subr.bf16.mxu0 0
        %3212 = vmatpush1.bf16.msra.mxu0 0
        %3213 = vmatprep.subr.bf16.mxu0 0
        %3214 = vmatpush1.bf16.msra.mxu0 0
        %3215 = vmatprep.subr.bf16.mxu0 0
        %3216 = vmatpush1.bf16.msra.mxu0 0
        %3217 = vmatprep.subr.bf16.mxu0 0
        %3218 = vmatpush1.bf16.msra.mxu0 %v3196
        %3219 = vmatprep.subr.bf16.mxu0 0
        %3220 = vmatpush2.bf16.msra.mxu0 0
        %3221 = vmatprep.subr.bf16.mxu0 0
        %3222 = vmatpush2.bf16.msra.mxu0 0
        %3223 = vmatprep.subr.bf16.mxu0 0
        %3224 = vmatpush2.bf16.msra.mxu0 0
        %3225 = vmatprep.subr.bf16.mxu0 0
        %3226 = vmatpush2.bf16.msra.mxu0 0
        %3227 = vmatprep.subr.bf16.mxu0 0
        %3228 = vmatpush2.bf16.msra.mxu0 0
        %3229 = vmatprep.subr.bf16.mxu0 0
        %3230 = vmatpush2.bf16.msra.mxu0 0
        %3231 = vmatprep.subr.bf16.mxu0 0
        %3232 = vmatpush2.bf16.msra.mxu0 0
        %3233 = vmatprep.subr.bf16.mxu0 0
        %3234 = vmatpush2.bf16.msra.mxu0 0
        %3235 = vmatprep.mubr.bf16.mxu0 0
        %3236 = vmatmul.mubr.bf16.gmra.mxu0 %v3201
        %v3237 = vpop.f32.mrf.mxu0
        %v3238 = vadd.f32 0.0, %v3237
        %v3239 = vpop.f32.mrf.mxu0
        %v3240 = vpop.f32.mrf.mxu0
        %v3241 = vpop.f32.mrf.mxu0
        %3242 = vdwg.mxu0
        %v3244 = vsel %vm3147, %v3193, 0
        %3246 = vmatprep.subr.bf16.mxu0 0
        %3247 = vmatpush1.bf16.msra.mxu0 0
        %3248 = vmatprep.subr.bf16.mxu0 0
        %3249 = vmatpush1.bf16.msra.mxu0 0
        %3250 = vmatprep.subr.bf16.mxu0 0
        %3251 = vmatpush1.bf16.msra.mxu0 0
        %3252 = vmatprep.subr.bf16.mxu0 0
        %3253 = vmatpush1.bf16.msra.mxu0 0
        %3254 = vmatprep.subr.bf16.mxu0 0
        %3255 = vmatpush1.bf16.msra.mxu0 0
        %3256 = vmatprep.subr.bf16.mxu0 0
        %3257 = vmatpush1.bf16.msra.mxu0 0
        %3258 = vmatprep.subr.bf16.mxu0 0
        %3259 = vmatpush1.bf16.msra.mxu0 0
        %3260 = vmatprep.subr.bf16.mxu0 0
        %3261 = vmatpush1.bf16.msra.mxu0 %v3197
        %3262 = vmatprep.subr.bf16.mxu0 0
        %3263 = vmatpush2.bf16.msra.mxu0 0
        %3264 = vmatprep.subr.bf16.mxu0 0
        %3265 = vmatpush2.bf16.msra.mxu0 0
        %3266 = vmatprep.subr.bf16.mxu0 0
        %3267 = vmatpush2.bf16.msra.mxu0 0
        %3268 = vmatprep.subr.bf16.mxu0 0
        %3269 = vmatpush2.bf16.msra.mxu0 0
        %3270 = vmatprep.subr.bf16.mxu0 0
        %3271 = vmatpush2.bf16.msra.mxu0 0
        %3272 = vmatprep.subr.bf16.mxu0 0
        %3273 = vmatpush2.bf16.msra.mxu0 0
        %3274 = vmatprep.subr.bf16.mxu0 0
        %3275 = vmatpush2.bf16.msra.mxu0 0
        %3276 = vmatprep.subr.bf16.mxu0 0
        %3277 = vmatpush2.bf16.msra.mxu0 0
        %3278 = vmatprep.mubr.bf16.mxu0 0
        %3279 = vmatmul.mubr.bf16.gmra.mxu0 %v3244
        %v3280 = vpop.f32.mrf.mxu0
        %v3281 = vadd.f32 0.0, %v3280
        %v3282 = vpop.f32.mrf.mxu0
        %v3283 = vpop.f32.mrf.mxu0
        %v3284 = vpop.f32.mrf.mxu0
        %3285 = vdwg.mxu0
        %v3287 = vsel %vm3147, %v3194, 0
        %3289 = vmatprep.subr.bf16.mxu0 0
        %3290 = vmatpush1.bf16.msra.mxu0 0
        %3291 = vmatprep.subr.bf16.mxu0 0
        %3292 = vmatpush1.bf16.msra.mxu0 0
        %3293 = vmatprep.subr.bf16.mxu0 0
        %3294 = vmatpush1.bf16.msra.mxu0 0
        %3295 = vmatprep.subr.bf16.mxu0 0
        %3296 = vmatpush1.bf16.msra.mxu0 0
        %3297 = vmatprep.subr.bf16.mxu0 0
        %3298 = vmatpush1.bf16.msra.mxu0 0
        %3299 = vmatprep.subr.bf16.mxu0 0
        %3300 = vmatpush1.bf16.msra.mxu0 0
        %3301 = vmatprep.subr.bf16.mxu0 0
        %3302 = vmatpush1.bf16.msra.mxu0 0
        %3303 = vmatprep.subr.bf16.mxu0 0
        %3304 = vmatpush1.bf16.msra.mxu0 %v3198
        %3305 = vmatprep.subr.bf16.mxu0 0
        %3306 = vmatpush2.bf16.msra.mxu0 0
        %3307 = vmatprep.subr.bf16.mxu0 0
        %3308 = vmatpush2.bf16.msra.mxu0 0
        %3309 = vmatprep.subr.bf16.mxu0 0
        %3310 = vmatpush2.bf16.msra.mxu0 0
        %3311 = vmatprep.subr.bf16.mxu0 0
        %3312 = vmatpush2.bf16.msra.mxu0 0
        %3313 = vmatprep.subr.bf16.mxu0 0
        %3314 = vmatpush2.bf16.msra.mxu0 0
        %3315 = vmatprep.subr.bf16.mxu0 0
        %3316 = vmatpush2.bf16.msra.mxu0 0
        %3317 = vmatprep.subr.bf16.mxu0 0
        %3318 = vmatpush2.bf16.msra.mxu0 0
        %3319 = vmatprep.subr.bf16.mxu0 0
        %3320 = vmatpush2.bf16.msra.mxu0 0
        %3321 = vmatprep.mubr.bf16.mxu0 0
        %3322 = vmatmul.mubr.bf16.gmra.mxu0 %v3287
        %v3323 = vpop.f32.mrf.mxu0
        %v3324 = vadd.f32 0.0, %v3323
        %v3325 = vpop.f32.mrf.mxu0
        %v3326 = vpop.f32.mrf.mxu0
        %v3327 = vpop.f32.mrf.mxu0
        %3328 = vdwg.mxu0
        %v3330 = vsel %vm3147, %v3195, 0
        %3332 = vmatprep.subr.bf16.mxu0 0
        %3333 = vmatpush1.bf16.msra.mxu0 0
        %3334 = vmatprep.subr.bf16.mxu0 0
        %3335 = vmatpush1.bf16.msra.mxu0 0
        %3336 = vmatprep.subr.bf16.mxu0 0
        %3337 = vmatpush1.bf16.msra.mxu0 0
        %3338 = vmatprep.subr.bf16.mxu0 0
        %3339 = vmatpush1.bf16.msra.mxu0 0
        %3340 = vmatprep.subr.bf16.mxu0 0
        %3341 = vmatpush1.bf16.msra.mxu0 0
        %3342 = vmatprep.subr.bf16.mxu0 0
        %3343 = vmatpush1.bf16.msra.mxu0 0
        %3344 = vmatprep.subr.bf16.mxu0 0
        %3345 = vmatpush1.bf16.msra.mxu0 0
        %3346 = vmatprep.subr.bf16.mxu0 0
        %3347 = vmatpush1.bf16.msra.mxu0 %v3199
        %3348 = vmatprep.subr.bf16.mxu0 0
        %3349 = vmatpush2.bf16.msra.mxu0 0
        %3350 = vmatprep.subr.bf16.mxu0 0
        %3351 = vmatpush2.bf16.msra.mxu0 0
        %3352 = vmatprep.subr.bf16.mxu0 0
        %3353 = vmatpush2.bf16.msra.mxu0 0
        %3354 = vmatprep.subr.bf16.mxu0 0
        %3355 = vmatpush2.bf16.msra.mxu0 0
        %3356 = vmatprep.subr.bf16.mxu0 0
        %3357 = vmatpush2.bf16.msra.mxu0 0
        %3358 = vmatprep.subr.bf16.mxu0 0
        %3359 = vmatpush2.bf16.msra.mxu0 0
        %3360 = vmatprep.subr.bf16.mxu0 0
        %3361 = vmatpush2.bf16.msra.mxu0 0
        %3362 = vmatprep.subr.bf16.mxu0 0
        %3363 = vmatpush2.bf16.msra.mxu0 0
        %3364 = vmatprep.mubr.bf16.mxu0 0
        %3365 = vmatmul.mubr.bf16.gmra.mxu0 %v3330
        %v3366 = vpop.f32.mrf.mxu0
        %v3367 = vadd.f32 0.0, %v3366
        %v3368 = vpop.f32.mrf.mxu0
        %v3369 = vpop.f32.mrf.mxu0
        %v3370 = vpop.f32.mrf.mxu0
        %3371 = vdwg.mxu0
        %v3372 = vpack.c.bf16 %v3281, %v3238
        %v3373 = vld [vmem:[#allocation17] sm:$0xff]
        %v3374 = vld [vmem:[#allocation17 + $0x8] sm:$0xff]
        %v3375 = vld [vmem:[#allocation17 + $0x10] sm:$0xff]
        %v3376 = vld [vmem:[#allocation17 + $0x18] sm:$0xff]
        %v3377 = vld [vmem:[#allocation17 + $0x20] sm:$0xff]
        %v3378 = vld [vmem:[#allocation17 + $0x28] sm:$0xff]
        %v3379 = vld [vmem:[#allocation17 + $0x30] sm:$0xff]
        %v3380 = vld [vmem:[#allocation17 + $0x38] sm:$0xff]
        %v3381 = vld [vmem:[#allocation17 + $0x40] sm:$0xff]
        %v3382 = vld [vmem:[#allocation17 + $0x48] sm:$0xff]
        %v3383 = vld [vmem:[#allocation17 + $0x50] sm:$0xff]
        %v3384 = vld [vmem:[#allocation17 + $0x58] sm:$0xff]
        %v3385 = vld [vmem:[#allocation17 + $0x60] sm:$0xff]
        %v3386 = vld [vmem:[#allocation17 + $0x68] sm:$0xff]
        %v3387 = vld [vmem:[#allocation17 + $0x70] sm:$0xff]
        %v3388 = vld [vmem:[#allocation17 + $0x78] sm:$0xff]
        %v3389 = vpack.c.bf16 %v3367, %v3324
        %s3390 = scalar_lea.vmem [#allocation17], 128
        %v3391 = vld [vmem:[%s3390] sm:$0xff]
        %v3392 = vld [vmem:[%s3390 + $0x8] sm:$0xff]
        %v3393 = vld [vmem:[%s3390 + $0x10] sm:$0xff]
        %v3394 = vld [vmem:[%s3390 + $0x18] sm:$0xff]
        %v3395 = vld [vmem:[%s3390 + $0x20] sm:$0xff]
        %v3396 = vld [vmem:[%s3390 + $0x28] sm:$0xff]
        %v3397 = vld [vmem:[%s3390 + $0x30] sm:$0xff]
        %v3398 = vld [vmem:[%s3390 + $0x38] sm:$0xff]
        %v3399 = vld [vmem:[%s3390 + $0x40] sm:$0xff]
        %v3400 = vld [vmem:[%s3390 + $0x48] sm:$0xff]
        %v3401 = vld [vmem:[%s3390 + $0x50] sm:$0xff]
        %v3402 = vld [vmem:[%s3390 + $0x58] sm:$0xff]
        %v3403 = vld [vmem:[%s3390 + $0x60] sm:$0xff]
        %v3404 = vld [vmem:[%s3390 + $0x68] sm:$0xff]
        %v3405 = vld [vmem:[%s3390 + $0x70] sm:$0xff]
        %v3406 = vld [vmem:[%s3390 + $0x78] sm:$0xff]
        %v3423 = vunpack.c.l.b16 %v3391
        %v3424 = vunpack.c.h.b16 %v3391
        %v3425 = vunpack.c.l.b16 %v3392
        %v3426 = vunpack.c.h.b16 %v3392
        %v3427 = vunpack.c.l.b16 %v3393
        %v3428 = vunpack.c.h.b16 %v3393
        %v3429 = vunpack.c.l.b16 %v3394
        %v3430 = vunpack.c.h.b16 %v3394
        %v3431 = vunpack.c.l.b16 %v3395
        %v3432 = vunpack.c.h.b16 %v3395
        %v3433 = vunpack.c.l.b16 %v3396
        %v3434 = vunpack.c.h.b16 %v3396
        %v3435 = vunpack.c.l.b16 %v3397
        %v3436 = vunpack.c.h.b16 %v3397
        %v3437 = vunpack.c.l.b16 %v3398
        %v3438 = vunpack.c.h.b16 %v3398
        %v3439 = vunpack.c.l.b16 %v3399
        %v3440 = vunpack.c.h.b16 %v3399
        %v3441 = vunpack.c.l.b16 %v3400
        %v3442 = vunpack.c.h.b16 %v3400
        %v3443 = vunpack.c.l.b16 %v3401
        %v3444 = vunpack.c.h.b16 %v3401
        %v3445 = vunpack.c.l.b16 %v3402
        %v3446 = vunpack.c.h.b16 %v3402
        %v3447 = vunpack.c.l.b16 %v3403
        %v3448 = vunpack.c.h.b16 %v3403
        %v3449 = vunpack.c.l.b16 %v3404
        %v3450 = vunpack.c.h.b16 %v3404
        %v3451 = vunpack.c.l.b16 %v3405
        %v3452 = vunpack.c.h.b16 %v3405
        %v3453 = vunpack.c.l.b16 %v3406
        %v3454 = vunpack.c.h.b16 %v3406
        %v3455 = vpack.c.b16 %v3425, %v3423
        %v3456 = vpack.c.b16 %v3426, %v3424
        %v3457 = vpack.c.b16 %v3429, %v3427
        %v3458 = vpack.c.b16 %v3430, %v3428
        %v3459 = vpack.c.b16 %v3433, %v3431
        %v3460 = vpack.c.b16 %v3434, %v3432
        %v3461 = vpack.c.b16 %v3437, %v3435
        %v3462 = vpack.c.b16 %v3438, %v3436
        %v3463 = vpack.c.b16 %v3441, %v3439
        %v3464 = vpack.c.b16 %v3442, %v3440
        %v3465 = vpack.c.b16 %v3445, %v3443
        %v3466 = vpack.c.b16 %v3446, %v3444
        %v3467 = vpack.c.b16 %v3449, %v3447
        %v3468 = vpack.c.b16 %v3450, %v3448
        %v3469 = vpack.c.b16 %v3453, %v3451
        %v3470 = vpack.c.b16 %v3454, %v3452
        %3487 = vmatprep.subr.bf16.mxu0 %v3470
        %3488 = vmatpush1.bf16.msra.mxu0 %v3469
        %3489 = vmatprep.subr.bf16.mxu0 %v3468
        %3490 = vmatpush1.bf16.msra.mxu0 %v3467
        %3491 = vmatprep.subr.bf16.mxu0 %v3466
        %3492 = vmatpush1.bf16.msra.mxu0 %v3465
        %3493 = vmatprep.subr.bf16.mxu0 %v3464
        %3494 = vmatpush1.bf16.msra.mxu0 %v3463
        %3495 = vmatprep.subr.bf16.mxu0 %v3462
        %3496 = vmatpush1.bf16.msra.mxu0 %v3461
        %3497 = vmatprep.subr.bf16.mxu0 %v3460
        %3498 = vmatpush1.bf16.msra.mxu0 %v3459
        %3499 = vmatprep.subr.bf16.mxu0 %v3458
        %3500 = vmatpush1.bf16.msra.mxu0 %v3457
        %3501 = vmatprep.subr.bf16.mxu0 %v3456
        %3502 = vmatpush1.bf16.msra.mxu0 %v3455
        %3503 = vmatprep.subr.bf16.mxu0 0
        %3504 = vmatpush2.bf16.msra.mxu0 0
        %3505 = vmatprep.subr.bf16.mxu0 0
        %3506 = vmatpush2.bf16.msra.mxu0 0
        %3507 = vmatprep.subr.bf16.mxu0 0
        %3508 = vmatpush2.bf16.msra.mxu0 0
        %3509 = vmatprep.subr.bf16.mxu0 0
        %3510 = vmatpush2.bf16.msra.mxu0 0
        %3511 = vmatprep.subr.bf16.mxu0 0
        %3512 = vmatpush2.bf16.msra.mxu0 0
        %3513 = vmatprep.subr.bf16.mxu0 0
        %3514 = vmatpush2.bf16.msra.mxu0 0
        %3515 = vmatprep.subr.bf16.mxu0 0
        %3516 = vmatpush2.bf16.msra.mxu0 0
        %3517 = vmatprep.subr.bf16.mxu0 0
        %3518 = vmatpush2.bf16.msra.mxu0 0
        %3519 = vmatprep.mubr.bf16.mxu0 0
        %3520 = vmatmul.mubr.bf16.gmra.mxu0 %v3389
        %v3521 = vpop.f32.mrf.mxu0
        %v3522 = vadd.f32 0.0, %v3521
        %v3523 = vpop.f32.mrf.mxu0
        %v3524 = vadd.f32 0.0, %v3523
        %v3525 = vpop.f32.mrf.mxu0
        %v3526 = vadd.f32 0.0, %v3525
        %v3527 = vpop.f32.mrf.mxu0
        %v3528 = vadd.f32 0.0, %v3527
        %3529 = vdwg.mxu0
        %v3546 = vunpack.c.l.b16 %v3373
        %v3547 = vunpack.c.h.b16 %v3373
        %v3548 = vunpack.c.l.b16 %v3374
        %v3549 = vunpack.c.h.b16 %v3374
        %v3550 = vunpack.c.l.b16 %v3375
        %v3551 = vunpack.c.h.b16 %v3375
        %v3552 = vunpack.c.l.b16 %v3376
        %v3553 = vunpack.c.h.b16 %v3376
        %v3554 = vunpack.c.l.b16 %v3377
        %v3555 = vunpack.c.h.b16 %v3377
        %v3556 = vunpack.c.l.b16 %v3378
        %v3557 = vunpack.c.h.b16 %v3378
        %v3558 = vunpack.c.l.b16 %v3379
        %v3559 = vunpack.c.h.b16 %v3379
        %v3560 = vunpack.c.l.b16 %v3380
        %v3561 = vunpack.c.h.b16 %v3380
        %v3562 = vunpack.c.l.b16 %v3381
        %v3563 = vunpack.c.h.b16 %v3381
        %v3564 = vunpack.c.l.b16 %v3382
        %v3565 = vunpack.c.h.b16 %v3382
        %v3566 = vunpack.c.l.b16 %v3383
        %v3567 = vunpack.c.h.b16 %v3383
        %v3568 = vunpack.c.l.b16 %v3384
        %v3569 = vunpack.c.h.b16 %v3384
        %v3570 = vunpack.c.l.b16 %v3385
        %v3571 = vunpack.c.h.b16 %v3385
        %v3572 = vunpack.c.l.b16 %v3386
        %v3573 = vunpack.c.h.b16 %v3386
        %v3574 = vunpack.c.l.b16 %v3387
        %v3575 = vunpack.c.h.b16 %v3387
        %v3576 = vunpack.c.l.b16 %v3388
        %v3577 = vunpack.c.h.b16 %v3388
        %v3578 = vpack.c.b16 %v3548, %v3546
        %v3579 = vpack.c.b16 %v3549, %v3547
        %v3580 = vpack.c.b16 %v3552, %v3550
        %v3581 = vpack.c.b16 %v3553, %v3551
        %v3582 = vpack.c.b16 %v3556, %v3554
        %v3583 = vpack.c.b16 %v3557, %v3555
        %v3584 = vpack.c.b16 %v3560, %v3558
        %v3585 = vpack.c.b16 %v3561, %v3559
        %v3586 = vpack.c.b16 %v3564, %v3562
        %v3587 = vpack.c.b16 %v3565, %v3563
        %v3588 = vpack.c.b16 %v3568, %v3566
        %v3589 = vpack.c.b16 %v3569, %v3567
        %v3590 = vpack.c.b16 %v3572, %v3570
        %v3591 = vpack.c.b16 %v3573, %v3571
        %v3592 = vpack.c.b16 %v3576, %v3574
        %v3593 = vpack.c.b16 %v3577, %v3575
        %3610 = vmatprep.subr.bf16.mxu0 %v3593
        %3611 = vmatpush1.bf16.msra.mxu0 %v3592
        %3612 = vmatprep.subr.bf16.mxu0 %v3591
        %3613 = vmatpush1.bf16.msra.mxu0 %v3590
        %3614 = vmatprep.subr.bf16.mxu0 %v3589
        %3615 = vmatpush1.bf16.msra.mxu0 %v3588
        %3616 = vmatprep.subr.bf16.mxu0 %v3587
        %3617 = vmatpush1.bf16.msra.mxu0 %v3586
        %3618 = vmatprep.subr.bf16.mxu0 %v3585
        %3619 = vmatpush1.bf16.msra.mxu0 %v3584
        %3620 = vmatprep.subr.bf16.mxu0 %v3583
        %3621 = vmatpush1.bf16.msra.mxu0 %v3582
        %3622 = vmatprep.subr.bf16.mxu0 %v3581
        %3623 = vmatpush1.bf16.msra.mxu0 %v3580
        %3624 = vmatprep.subr.bf16.mxu0 %v3579
        %3625 = vmatpush1.bf16.msra.mxu0 %v3578
        %3626 = vmatprep.subr.bf16.mxu0 0
        %3627 = vmatpush2.bf16.msra.mxu0 0
        %3628 = vmatprep.subr.bf16.mxu0 0
        %3629 = vmatpush2.bf16.msra.mxu0 0
        %3630 = vmatprep.subr.bf16.mxu0 0
        %3631 = vmatpush2.bf16.msra.mxu0 0
        %3632 = vmatprep.subr.bf16.mxu0 0
        %3633 = vmatpush2.bf16.msra.mxu0 0
        %3634 = vmatprep.subr.bf16.mxu0 0
        %3635 = vmatpush2.bf16.msra.mxu0 0
        %3636 = vmatprep.subr.bf16.mxu0 0
        %3637 = vmatpush2.bf16.msra.mxu0 0
        %3638 = vmatprep.subr.bf16.mxu0 0
        %3639 = vmatpush2.bf16.msra.mxu0 0
        %3640 = vmatprep.subr.bf16.mxu0 0
        %3641 = vmatpush2.bf16.msra.mxu0 0
        %3642 = vmatprep.mubr.bf16.mxu0 0
        %3643 = vmatmul.mubr.bf16.gmra.mxu0 %v3372
        %v3644 = vpop.f32.mrf.mxu0
        %v3645 = vadd.f32 %v3522, %v3644
        %v3646 = vpop.f32.mrf.mxu0
        %v3647 = vadd.f32 %v3524, %v3646
        %v3648 = vpop.f32.mrf.mxu0
        %v3649 = vadd.f32 %v3526, %v3648
        %v3650 = vpop.f32.mrf.mxu0
        %v3651 = vadd.f32 %v3528, %v3650
        %3652 = vdwg.mxu0
        %v3653 = vadd.f32 %v2196, %v3645
        %v3654 = vadd.f32 %v2197, %v3647
        %v3655 = vadd.f32 %v2198, %v3649
        %v3656 = vadd.f32 %v2199, %v3651
        %v3657 = vadd.f32 %v3653, %v3654
        %3658 = vadd.xlane.f32.xlu0 %v3657
        %v3659 = vpop.xlane.xlu0 %3658
        %v3660 = vadd.f32 %v3655, %v3656
        %3661 = vadd.xlane.f32.xlu0 %v3660
        %v3662 = vpop.xlane.xlu0 %3661
        %v3663 = vmul.f32 %v3659, %v719
        %v3664 = vmul.f32 %v3662, %v719
        %v3665 = vsub.f32 %v3653, %v3663
        %v3666 = vsub.f32 %v3654, %v3663
        %v3667 = vsub.f32 %v3655, %v3664
        %v3668 = vsub.f32 %v3656, %v3664
        %v3669 = vmul.f32 %v3665, %v3665
        %v3670 = vmul.f32 %v3666, %v3666
        %v3671 = vmul.f32 %v3667, %v3667
        %v3672 = vmul.f32 %v3668, %v3668
        %v3673 = vadd.f32 %v3669, %v3670
        %3674 = vadd.xlane.f32.xlu0 %v3673
        %v3675 = vpop.xlane.xlu0 %3674
        %v3676 = vadd.f32 %v3671, %v3672
        %3677 = vadd.xlane.f32.xlu0 %v3676
        %v3678 = vpop.xlane.xlu0 %3677
        %v3679 = vmul.f32 %v3675, %v719
        %v3680 = vmul.f32 %v3678, %v719
        %v3681 = vadd.f32 %v3679, 1e-05
        %v3682 = vadd.f32 %v3680, 1e-05
        %v3683 = vrsqrt.pop %v3681
        %v3684 = vrsqrt.pop %v3682
        %v3685 = vmul.f32 %v3665, %v3683
        %v3686 = vmul.f32 %v3666, %v3683
        %v3687 = vmul.f32 %v3667, %v3684
        %v3688 = vmul.f32 %v3668, %v3684
        %v3689 = vld [vmem:[%s7] sm:$0x3]
        %v3691 = vlaneseq
        %v3692 = vshrl.u32 %v3691, 7
        %v3693 = vsub.s32 0, %v3692
        %v3694 = vrot.slane %v3689, %v3693
        %v3695 = vlaneseq
        %v3696 = vshrl.u32 %v3695, 7
        %v3697 = vsub.s32 1, %v3696
        %v3698 = vrot.slane %v3689, %v3697
        %v3701 = vmul.f32 %v3685, %v3694
        %v3702 = vmul.f32 %v3686, %v3698
        %v3703 = vmul.f32 %v3687, %v3694
        %v3704 = vmul.f32 %v3688, %v3698
        %v3705 = vpack.c.bf16 %v3703, %v3701
        %v3706 = vpack.c.bf16 %v3704, %v3702
        %v3707 = vld [vmem:[#allocation19] sm:$0xff]
        %v3708 = vld [vmem:[#allocation19 + $0x8] sm:$0xff]
        %v3709 = vld [vmem:[#allocation19 + $0x10] sm:$0xff]
        %v3710 = vld [vmem:[#allocation19 + $0x18] sm:$0xff]
        %v3711 = vld [vmem:[#allocation19 + $0x20] sm:$0xff]
        %v3712 = vld [vmem:[#allocation19 + $0x28] sm:$0xff]
        %v3713 = vld [vmem:[#allocation19 + $0x30] sm:$0xff]
        %v3714 = vld [vmem:[#allocation19 + $0x38] sm:$0xff]
        %v3715 = vld [vmem:[#allocation19 + $0x40] sm:$0xff]
        %v3716 = vld [vmem:[#allocation19 + $0x48] sm:$0xff]
        %v3717 = vld [vmem:[#allocation19 + $0x50] sm:$0xff]
        %v3718 = vld [vmem:[#allocation19 + $0x58] sm:$0xff]
        %v3719 = vld [vmem:[#allocation19 + $0x60] sm:$0xff]
        %v3720 = vld [vmem:[#allocation19 + $0x68] sm:$0xff]
        %v3721 = vld [vmem:[#allocation19 + $0x70] sm:$0xff]
        %v3722 = vld [vmem:[#allocation19 + $0x78] sm:$0xff]
        %v3723 = vld [vmem:[#allocation19 + $0x80] sm:$0xff]
        %v3724 = vld [vmem:[#allocation19 + $0x88] sm:$0xff]
        %v3725 = vld [vmem:[#allocation19 + $0x90] sm:$0xff]
        %v3726 = vld [vmem:[#allocation19 + $0x98] sm:$0xff]
        %v3727 = vld [vmem:[#allocation19 + $0xa0] sm:$0xff]
        %v3728 = vld [vmem:[#allocation19 + $0xa8] sm:$0xff]
        %v3729 = vld [vmem:[#allocation19 + $0xb0] sm:$0xff]
        %v3730 = vld [vmem:[#allocation19 + $0xb8] sm:$0xff]
        %v3731 = vld [vmem:[#allocation19 + $0xc0] sm:$0xff]
        %v3732 = vld [vmem:[#allocation19 + $0xc8] sm:$0xff]
        %v3733 = vld [vmem:[#allocation19 + $0xd0] sm:$0xff]
        %v3734 = vld [vmem:[#allocation19 + $0xd8] sm:$0xff]
        %v3735 = vld [vmem:[#allocation19 + $0xe0] sm:$0xff]
        %v3736 = vld [vmem:[#allocation19 + $0xe8] sm:$0xff]
        %v3737 = vld [vmem:[#allocation19 + $0xf0] sm:$0xff]
        %v3738 = vld [vmem:[#allocation19 + $0xf8] sm:$0xff]
        %v3739 = vld [vmem:[#allocation19 + $0x100] sm:$0xff]
        %v3740 = vld [vmem:[#allocation19 + $0x108] sm:$0xff]
        %v3741 = vld [vmem:[#allocation19 + $0x110] sm:$0xff]
        %v3742 = vld [vmem:[#allocation19 + $0x118] sm:$0xff]
        %v3743 = vld [vmem:[#allocation19 + $0x120] sm:$0xff]
        %v3744 = vld [vmem:[#allocation19 + $0x128] sm:$0xff]
        %v3745 = vld [vmem:[#allocation19 + $0x130] sm:$0xff]
        %v3746 = vld [vmem:[#allocation19 + $0x138] sm:$0xff]
        %v3747 = vld [vmem:[#allocation19 + $0x140] sm:$0xff]
        %v3748 = vld [vmem:[#allocation19 + $0x148] sm:$0xff]
        %v3749 = vld [vmem:[#allocation19 + $0x150] sm:$0xff]
        %v3750 = vld [vmem:[#allocation19 + $0x158] sm:$0xff]
        %v3751 = vld [vmem:[#allocation19 + $0x160] sm:$0xff]
        %v3752 = vld [vmem:[#allocation19 + $0x168] sm:$0xff]
        %v3753 = vld [vmem:[#allocation19 + $0x170] sm:$0xff]
        %v3754 = vld [vmem:[#allocation19 + $0x178] sm:$0xff]
        %v3755 = vld [vmem:[#allocation19 + $0x180] sm:$0xff]
        %v3756 = vld [vmem:[#allocation19 + $0x188] sm:$0xff]
        %v3757 = vld [vmem:[#allocation19 + $0x190] sm:$0xff]
        %v3758 = vld [vmem:[#allocation19 + $0x198] sm:$0xff]
        %v3759 = vld [vmem:[#allocation19 + $0x1a0] sm:$0xff]
        %v3760 = vld [vmem:[#allocation19 + $0x1a8] sm:$0xff]
        %v3761 = vld [vmem:[#allocation19 + $0x1b0] sm:$0xff]
        %v3762 = vld [vmem:[#allocation19 + $0x1b8] sm:$0xff]
        %v3763 = vld [vmem:[#allocation19 + $0x1c0] sm:$0xff]
        %v3764 = vld [vmem:[#allocation19 + $0x1c8] sm:$0xff]
        %v3765 = vld [vmem:[#allocation19 + $0x1d0] sm:$0xff]
        %v3766 = vld [vmem:[#allocation19 + $0x1d8] sm:$0xff]
        %v3767 = vld [vmem:[#allocation19 + $0x1e0] sm:$0xff]
        %v3768 = vld [vmem:[#allocation19 + $0x1e8] sm:$0xff]
        %v3769 = vld [vmem:[#allocation19 + $0x1f0] sm:$0xff]
        %v3770 = vld [vmem:[#allocation19 + $0x1f8] sm:$0xff]
        %v3771 = vld [vmem:[#allocation19 + $0x200] sm:$0xff]
        %v3772 = vld [vmem:[#allocation19 + $0x208] sm:$0xff]
        %v3773 = vld [vmem:[#allocation19 + $0x210] sm:$0xff]
        %v3774 = vld [vmem:[#allocation19 + $0x218] sm:$0xff]
        %v3775 = vld [vmem:[#allocation19 + $0x220] sm:$0xff]
        %v3776 = vld [vmem:[#allocation19 + $0x228] sm:$0xff]
        %v3777 = vld [vmem:[#allocation19 + $0x230] sm:$0xff]
        %v3778 = vld [vmem:[#allocation19 + $0x238] sm:$0xff]
        %v3779 = vld [vmem:[#allocation19 + $0x240] sm:$0xff]
        %v3780 = vld [vmem:[#allocation19 + $0x248] sm:$0xff]
        %v3781 = vld [vmem:[#allocation19 + $0x250] sm:$0xff]
        %v3782 = vld [vmem:[#allocation19 + $0x258] sm:$0xff]
        %v3783 = vld [vmem:[#allocation19 + $0x260] sm:$0xff]
        %v3784 = vld [vmem:[#allocation19 + $0x268] sm:$0xff]
        %v3785 = vld [vmem:[#allocation19 + $0x270] sm:$0xff]
        %v3786 = vld [vmem:[#allocation19 + $0x278] sm:$0xff]
        %v3787 = vld [vmem:[#allocation19 + $0x280] sm:$0xff]
        %v3788 = vld [vmem:[#allocation19 + $0x288] sm:$0xff]
        %v3789 = vld [vmem:[#allocation19 + $0x290] sm:$0xff]
        %v3790 = vld [vmem:[#allocation19 + $0x298] sm:$0xff]
        %v3791 = vld [vmem:[#allocation19 + $0x2a0] sm:$0xff]
        %v3792 = vld [vmem:[#allocation19 + $0x2a8] sm:$0xff]
        %v3793 = vld [vmem:[#allocation19 + $0x2b0] sm:$0xff]
        %v3794 = vld [vmem:[#allocation19 + $0x2b8] sm:$0xff]
        %v3795 = vld [vmem:[#allocation19 + $0x2c0] sm:$0xff]
        %v3796 = vld [vmem:[#allocation19 + $0x2c8] sm:$0xff]
        %v3797 = vld [vmem:[#allocation19 + $0x2d0] sm:$0xff]
        %v3798 = vld [vmem:[#allocation19 + $0x2d8] sm:$0xff]
        %v3799 = vld [vmem:[#allocation19 + $0x2e0] sm:$0xff]
        %v3800 = vld [vmem:[#allocation19 + $0x2e8] sm:$0xff]
        %v3801 = vld [vmem:[#allocation19 + $0x2f0] sm:$0xff]
        %v3802 = vld [vmem:[#allocation19 + $0x2f8] sm:$0xff]
        %v3803 = vld [vmem:[#allocation19 + $0x300] sm:$0xff]
        %v3804 = vld [vmem:[#allocation19 + $0x308] sm:$0xff]
        %v3805 = vld [vmem:[#allocation19 + $0x310] sm:$0xff]
        %v3806 = vld [vmem:[#allocation19 + $0x318] sm:$0xff]
        %v3807 = vld [vmem:[#allocation19 + $0x320] sm:$0xff]
        %v3808 = vld [vmem:[#allocation19 + $0x328] sm:$0xff]
        %v3809 = vld [vmem:[#allocation19 + $0x330] sm:$0xff]
        %v3810 = vld [vmem:[#allocation19 + $0x338] sm:$0xff]
        %v3811 = vld [vmem:[#allocation19 + $0x340] sm:$0xff]
        %v3812 = vld [vmem:[#allocation19 + $0x348] sm:$0xff]
        %v3813 = vld [vmem:[#allocation19 + $0x350] sm:$0xff]
        %v3814 = vld [vmem:[#allocation19 + $0x358] sm:$0xff]
        %v3815 = vld [vmem:[#allocation19 + $0x360] sm:$0xff]
        %v3816 = vld [vmem:[#allocation19 + $0x368] sm:$0xff]
        %v3817 = vld [vmem:[#allocation19 + $0x370] sm:$0xff]
        %v3818 = vld [vmem:[#allocation19 + $0x378] sm:$0xff]
        %v3819 = vld [vmem:[#allocation19 + $0x380] sm:$0xff]
        %v3820 = vld [vmem:[#allocation19 + $0x388] sm:$0xff]
        %v3821 = vld [vmem:[#allocation19 + $0x390] sm:$0xff]
        %v3822 = vld [vmem:[#allocation19 + $0x398] sm:$0xff]
        %v3823 = vld [vmem:[#allocation19 + $0x3a0] sm:$0xff]
        %v3824 = vld [vmem:[#allocation19 + $0x3a8] sm:$0xff]
        %v3825 = vld [vmem:[#allocation19 + $0x3b0] sm:$0xff]
        %v3826 = vld [vmem:[#allocation19 + $0x3b8] sm:$0xff]
        %v3827 = vld [vmem:[#allocation19 + $0x3c0] sm:$0xff]
        %v3828 = vld [vmem:[#allocation19 + $0x3c8] sm:$0xff]
        %v3829 = vld [vmem:[#allocation19 + $0x3d0] sm:$0xff]
        %v3830 = vld [vmem:[#allocation19 + $0x3d8] sm:$0xff]
        %v3831 = vld [vmem:[#allocation19 + $0x3e0] sm:$0xff]
        %v3832 = vld [vmem:[#allocation19 + $0x3e8] sm:$0xff]
        %v3833 = vld [vmem:[#allocation19 + $0x3f0] sm:$0xff]
        %v3834 = vld [vmem:[#allocation19 + $0x3f8] sm:$0xff]
        %v3963 = vunpack.c.l.b16 %v3707
        %v3964 = vunpack.c.h.b16 %v3707
        %v3965 = vunpack.c.l.b16 %v3708
        %v3966 = vunpack.c.h.b16 %v3708
        %v3967 = vunpack.c.l.b16 %v3709
        %v3968 = vunpack.c.h.b16 %v3709
        %v3969 = vunpack.c.l.b16 %v3710
        %v3970 = vunpack.c.h.b16 %v3710
        %v3971 = vunpack.c.l.b16 %v3711
        %v3972 = vunpack.c.h.b16 %v3711
        %v3973 = vunpack.c.l.b16 %v3712
        %v3974 = vunpack.c.h.b16 %v3712
        %v3975 = vunpack.c.l.b16 %v3713
        %v3976 = vunpack.c.h.b16 %v3713
        %v3977 = vunpack.c.l.b16 %v3714
        %v3978 = vunpack.c.h.b16 %v3714
        %v3979 = vunpack.c.l.b16 %v3715
        %v3980 = vunpack.c.h.b16 %v3715
        %v3981 = vunpack.c.l.b16 %v3716
        %v3982 = vunpack.c.h.b16 %v3716
        %v3983 = vunpack.c.l.b16 %v3717
        %v3984 = vunpack.c.h.b16 %v3717
        %v3985 = vunpack.c.l.b16 %v3718
        %v3986 = vunpack.c.h.b16 %v3718
        %v3987 = vunpack.c.l.b16 %v3719
        %v3988 = vunpack.c.h.b16 %v3719
        %v3989 = vunpack.c.l.b16 %v3720
        %v3990 = vunpack.c.h.b16 %v3720
        %v3991 = vunpack.c.l.b16 %v3721
        %v3992 = vunpack.c.h.b16 %v3721
        %v3993 = vunpack.c.l.b16 %v3722
        %v3994 = vunpack.c.h.b16 %v3722
        %v3995 = vunpack.c.l.b16 %v3723
        %v3996 = vunpack.c.h.b16 %v3723
        %v3997 = vunpack.c.l.b16 %v3724
        %v3998 = vunpack.c.h.b16 %v3724
        %v3999 = vunpack.c.l.b16 %v3725
        %v4000 = vunpack.c.h.b16 %v3725
        %v4001 = vunpack.c.l.b16 %v3726
        %v4002 = vunpack.c.h.b16 %v3726
        %v4003 = vunpack.c.l.b16 %v3727
        %v4004 = vunpack.c.h.b16 %v3727
        %v4005 = vunpack.c.l.b16 %v3728
        %v4006 = vunpack.c.h.b16 %v3728
        %v4007 = vunpack.c.l.b16 %v3729
        %v4008 = vunpack.c.h.b16 %v3729
        %v4009 = vunpack.c.l.b16 %v3730
        %v4010 = vunpack.c.h.b16 %v3730
        %v4011 = vunpack.c.l.b16 %v3731
        %v4012 = vunpack.c.h.b16 %v3731
        %v4013 = vunpack.c.l.b16 %v3732
        %v4014 = vunpack.c.h.b16 %v3732
        %v4015 = vunpack.c.l.b16 %v3733
        %v4016 = vunpack.c.h.b16 %v3733
        %v4017 = vunpack.c.l.b16 %v3734
        %v4018 = vunpack.c.h.b16 %v3734
        %v4019 = vunpack.c.l.b16 %v3735
        %v4020 = vunpack.c.h.b16 %v3735
        %v4021 = vunpack.c.l.b16 %v3736
        %v4022 = vunpack.c.h.b16 %v3736
        %v4023 = vunpack.c.l.b16 %v3737
        %v4024 = vunpack.c.h.b16 %v3737
        %v4025 = vunpack.c.l.b16 %v3738
        %v4026 = vunpack.c.h.b16 %v3738
        %v4027 = vunpack.c.l.b16 %v3739
        %v4028 = vunpack.c.h.b16 %v3739
        %v4029 = vunpack.c.l.b16 %v3740
        %v4030 = vunpack.c.h.b16 %v3740
        %v4031 = vunpack.c.l.b16 %v3741
        %v4032 = vunpack.c.h.b16 %v3741
        %v4033 = vunpack.c.l.b16 %v3742
        %v4034 = vunpack.c.h.b16 %v3742
        %v4035 = vunpack.c.l.b16 %v3743
        %v4036 = vunpack.c.h.b16 %v3743
        %v4037 = vunpack.c.l.b16 %v3744
        %v4038 = vunpack.c.h.b16 %v3744
        %v4039 = vunpack.c.l.b16 %v3745
        %v4040 = vunpack.c.h.b16 %v3745
        %v4041 = vunpack.c.l.b16 %v3746
        %v4042 = vunpack.c.h.b16 %v3746
        %v4043 = vunpack.c.l.b16 %v3747
        %v4044 = vunpack.c.h.b16 %v3747
        %v4045 = vunpack.c.l.b16 %v3748
        %v4046 = vunpack.c.h.b16 %v3748
        %v4047 = vunpack.c.l.b16 %v3749
        %v4048 = vunpack.c.h.b16 %v3749
        %v4049 = vunpack.c.l.b16 %v3750
        %v4050 = vunpack.c.h.b16 %v3750
        %v4051 = vunpack.c.l.b16 %v3751
        %v4052 = vunpack.c.h.b16 %v3751
        %v4053 = vunpack.c.l.b16 %v3752
        %v4054 = vunpack.c.h.b16 %v3752
        %v4055 = vunpack.c.l.b16 %v3753
        %v4056 = vunpack.c.h.b16 %v3753
        %v4057 = vunpack.c.l.b16 %v3754
        %v4058 = vunpack.c.h.b16 %v3754
        %v4059 = vunpack.c.l.b16 %v3755
        %v4060 = vunpack.c.h.b16 %v3755
        %v4061 = vunpack.c.l.b16 %v3756
        %v4062 = vunpack.c.h.b16 %v3756
        %v4063 = vunpack.c.l.b16 %v3757
        %v4064 = vunpack.c.h.b16 %v3757
        %v4065 = vunpack.c.l.b16 %v3758
        %v4066 = vunpack.c.h.b16 %v3758
        %v4067 = vunpack.c.l.b16 %v3759
        %v4068 = vunpack.c.h.b16 %v3759
        %v4069 = vunpack.c.l.b16 %v3760
        %v4070 = vunpack.c.h.b16 %v3760
        %v4071 = vunpack.c.l.b16 %v3761
        %v4072 = vunpack.c.h.b16 %v3761
        %v4073 = vunpack.c.l.b16 %v3762
        %v4074 = vunpack.c.h.b16 %v3762
        %v4075 = vunpack.c.l.b16 %v3763
        %v4076 = vunpack.c.h.b16 %v3763
        %v4077 = vunpack.c.l.b16 %v3764
        %v4078 = vunpack.c.h.b16 %v3764
        %v4079 = vunpack.c.l.b16 %v3765
        %v4080 = vunpack.c.h.b16 %v3765
        %v4081 = vunpack.c.l.b16 %v3766
        %v4082 = vunpack.c.h.b16 %v3766
        %v4083 = vunpack.c.l.b16 %v3767
        %v4084 = vunpack.c.h.b16 %v3767
        %v4085 = vunpack.c.l.b16 %v3768
        %v4086 = vunpack.c.h.b16 %v3768
        %v4087 = vunpack.c.l.b16 %v3769
        %v4088 = vunpack.c.h.b16 %v3769
        %v4089 = vunpack.c.l.b16 %v3770
        %v4090 = vunpack.c.h.b16 %v3770
        %v4091 = vunpack.c.l.b16 %v3771
        %v4092 = vunpack.c.h.b16 %v3771
        %v4093 = vunpack.c.l.b16 %v3772
        %v4094 = vunpack.c.h.b16 %v3772
        %v4095 = vunpack.c.l.b16 %v3773
        %v4096 = vunpack.c.h.b16 %v3773
        %v4097 = vunpack.c.l.b16 %v3774
        %v4098 = vunpack.c.h.b16 %v3774
        %v4099 = vunpack.c.l.b16 %v3775
        %v4100 = vunpack.c.h.b16 %v3775
        %v4101 = vunpack.c.l.b16 %v3776
        %v4102 = vunpack.c.h.b16 %v3776
        %v4103 = vunpack.c.l.b16 %v3777
        %v4104 = vunpack.c.h.b16 %v3777
        %v4105 = vunpack.c.l.b16 %v3778
        %v4106 = vunpack.c.h.b16 %v3778
        %v4107 = vunpack.c.l.b16 %v3779
        %v4108 = vunpack.c.h.b16 %v3779
        %v4109 = vunpack.c.l.b16 %v3780
        %v4110 = vunpack.c.h.b16 %v3780
        %v4111 = vunpack.c.l.b16 %v3781
        %v4112 = vunpack.c.h.b16 %v3781
        %v4113 = vunpack.c.l.b16 %v3782
        %v4114 = vunpack.c.h.b16 %v3782
        %v4115 = vunpack.c.l.b16 %v3783
        %v4116 = vunpack.c.h.b16 %v3783
        %v4117 = vunpack.c.l.b16 %v3784
        %v4118 = vunpack.c.h.b16 %v3784
        %v4119 = vunpack.c.l.b16 %v3785
        %v4120 = vunpack.c.h.b16 %v3785
        %v4121 = vunpack.c.l.b16 %v3786
        %v4122 = vunpack.c.h.b16 %v3786
        %v4123 = vunpack.c.l.b16 %v3787
        %v4124 = vunpack.c.h.b16 %v3787
        %v4125 = vunpack.c.l.b16 %v3788
        %v4126 = vunpack.c.h.b16 %v3788
        %v4127 = vunpack.c.l.b16 %v3789
        %v4128 = vunpack.c.h.b16 %v3789
        %v4129 = vunpack.c.l.b16 %v3790
        %v4130 = vunpack.c.h.b16 %v3790
        %v4131 = vunpack.c.l.b16 %v3791
        %v4132 = vunpack.c.h.b16 %v3791
        %v4133 = vunpack.c.l.b16 %v3792
        %v4134 = vunpack.c.h.b16 %v3792
        %v4135 = vunpack.c.l.b16 %v3793
        %v4136 = vunpack.c.h.b16 %v3793
        %v4137 = vunpack.c.l.b16 %v3794
        %v4138 = vunpack.c.h.b16 %v3794
        %v4139 = vunpack.c.l.b16 %v3795
        %v4140 = vunpack.c.h.b16 %v3795
        %v4141 = vunpack.c.l.b16 %v3796
        %v4142 = vunpack.c.h.b16 %v3796
        %v4143 = vunpack.c.l.b16 %v3797
        %v4144 = vunpack.c.h.b16 %v3797
        %v4145 = vunpack.c.l.b16 %v3798
        %v4146 = vunpack.c.h.b16 %v3798
        %v4147 = vunpack.c.l.b16 %v3799
        %v4148 = vunpack.c.h.b16 %v3799
        %v4149 = vunpack.c.l.b16 %v3800
        %v4150 = vunpack.c.h.b16 %v3800
        %v4151 = vunpack.c.l.b16 %v3801
        %v4152 = vunpack.c.h.b16 %v3801
        %v4153 = vunpack.c.l.b16 %v3802
        %v4154 = vunpack.c.h.b16 %v3802
        %v4155 = vunpack.c.l.b16 %v3803
        %v4156 = vunpack.c.h.b16 %v3803
        %v4157 = vunpack.c.l.b16 %v3804
        %v4158 = vunpack.c.h.b16 %v3804
        %v4159 = vunpack.c.l.b16 %v3805
        %v4160 = vunpack.c.h.b16 %v3805
        %v4161 = vunpack.c.l.b16 %v3806
        %v4162 = vunpack.c.h.b16 %v3806
        %v4163 = vunpack.c.l.b16 %v3807
        %v4164 = vunpack.c.h.b16 %v3807
        %v4165 = vunpack.c.l.b16 %v3808
        %v4166 = vunpack.c.h.b16 %v3808
        %v4167 = vunpack.c.l.b16 %v3809
        %v4168 = vunpack.c.h.b16 %v3809
        %v4169 = vunpack.c.l.b16 %v3810
        %v4170 = vunpack.c.h.b16 %v3810
        %v4171 = vunpack.c.l.b16 %v3811
        %v4172 = vunpack.c.h.b16 %v3811
        %v4173 = vunpack.c.l.b16 %v3812
        %v4174 = vunpack.c.h.b16 %v3812
        %v4175 = vunpack.c.l.b16 %v3813
        %v4176 = vunpack.c.h.b16 %v3813
        %v4177 = vunpack.c.l.b16 %v3814
        %v4178 = vunpack.c.h.b16 %v3814
        %v4179 = vunpack.c.l.b16 %v3815
        %v4180 = vunpack.c.h.b16 %v3815
        %v4181 = vunpack.c.l.b16 %v3816
        %v4182 = vunpack.c.h.b16 %v3816
        %v4183 = vunpack.c.l.b16 %v3817
        %v4184 = vunpack.c.h.b16 %v3817
        %v4185 = vunpack.c.l.b16 %v3818
        %v4186 = vunpack.c.h.b16 %v3818
        %v4187 = vunpack.c.l.b16 %v3819
        %v4188 = vunpack.c.h.b16 %v3819
        %v4189 = vunpack.c.l.b16 %v3820
        %v4190 = vunpack.c.h.b16 %v3820
        %v4191 = vunpack.c.l.b16 %v3821
        %v4192 = vunpack.c.h.b16 %v3821
        %v4193 = vunpack.c.l.b16 %v3822
        %v4194 = vunpack.c.h.b16 %v3822
        %v4195 = vunpack.c.l.b16 %v3823
        %v4196 = vunpack.c.h.b16 %v3823
        %v4197 = vunpack.c.l.b16 %v3824
        %v4198 = vunpack.c.h.b16 %v3824
        %v4199 = vunpack.c.l.b16 %v3825
        %v4200 = vunpack.c.h.b16 %v3825
        %v4201 = vunpack.c.l.b16 %v3826
        %v4202 = vunpack.c.h.b16 %v3826
        %v4203 = vunpack.c.l.b16 %v3827
        %v4204 = vunpack.c.h.b16 %v3827
        %v4205 = vunpack.c.l.b16 %v3828
        %v4206 = vunpack.c.h.b16 %v3828
        %v4207 = vunpack.c.l.b16 %v3829
        %v4208 = vunpack.c.h.b16 %v3829
        %v4209 = vunpack.c.l.b16 %v3830
        %v4210 = vunpack.c.h.b16 %v3830
        %v4211 = vunpack.c.l.b16 %v3831
        %v4212 = vunpack.c.h.b16 %v3831
        %v4213 = vunpack.c.l.b16 %v3832
        %v4214 = vunpack.c.h.b16 %v3832
        %v4215 = vunpack.c.l.b16 %v3833
        %v4216 = vunpack.c.h.b16 %v3833
        %v4217 = vunpack.c.l.b16 %v3834
        %v4218 = vunpack.c.h.b16 %v3834
        %v4219 = vpack.c.b16 %v3971, %v3963
        %v4220 = vpack.c.b16 %v3972, %v3964
        %v4221 = vpack.c.b16 %v3973, %v3965
        %v4222 = vpack.c.b16 %v3974, %v3966
        %v4223 = vpack.c.b16 %v3975, %v3967
        %v4224 = vpack.c.b16 %v3976, %v3968
        %v4225 = vpack.c.b16 %v3977, %v3969
        %v4226 = vpack.c.b16 %v3978, %v3970
        %v4227 = vpack.c.b16 %v3987, %v3979
        %v4228 = vpack.c.b16 %v3988, %v3980
        %v4229 = vpack.c.b16 %v3989, %v3981
        %v4230 = vpack.c.b16 %v3990, %v3982
        %v4231 = vpack.c.b16 %v3991, %v3983
        %v4232 = vpack.c.b16 %v3992, %v3984
        %v4233 = vpack.c.b16 %v3993, %v3985
        %v4234 = vpack.c.b16 %v3994, %v3986
        %v4235 = vpack.c.b16 %v4003, %v3995
        %v4236 = vpack.c.b16 %v4004, %v3996
        %v4237 = vpack.c.b16 %v4005, %v3997
        %v4238 = vpack.c.b16 %v4006, %v3998
        %v4239 = vpack.c.b16 %v4007, %v3999
        %v4240 = vpack.c.b16 %v4008, %v4000
        %v4241 = vpack.c.b16 %v4009, %v4001
        %v4242 = vpack.c.b16 %v4010, %v4002
        %v4243 = vpack.c.b16 %v4019, %v4011
        %v4244 = vpack.c.b16 %v4020, %v4012
        %v4245 = vpack.c.b16 %v4021, %v4013
        %v4246 = vpack.c.b16 %v4022, %v4014
        %v4247 = vpack.c.b16 %v4023, %v4015
        %v4248 = vpack.c.b16 %v4024, %v4016
        %v4249 = vpack.c.b16 %v4025, %v4017
        %v4250 = vpack.c.b16 %v4026, %v4018
        %v4251 = vpack.c.b16 %v4035, %v4027
        %v4252 = vpack.c.b16 %v4036, %v4028
        %v4253 = vpack.c.b16 %v4037, %v4029
        %v4254 = vpack.c.b16 %v4038, %v4030
        %v4255 = vpack.c.b16 %v4039, %v4031
        %v4256 = vpack.c.b16 %v4040, %v4032
        %v4257 = vpack.c.b16 %v4041, %v4033
        %v4258 = vpack.c.b16 %v4042, %v4034
        %v4259 = vpack.c.b16 %v4051, %v4043
        %v4260 = vpack.c.b16 %v4052, %v4044
        %v4261 = vpack.c.b16 %v4053, %v4045
        %v4262 = vpack.c.b16 %v4054, %v4046
        %v4263 = vpack.c.b16 %v4055, %v4047
        %v4264 = vpack.c.b16 %v4056, %v4048
        %v4265 = vpack.c.b16 %v4057, %v4049
        %v4266 = vpack.c.b16 %v4058, %v4050
        %v4267 = vpack.c.b16 %v4067, %v4059
        %v4268 = vpack.c.b16 %v4068, %v4060
        %v4269 = vpack.c.b16 %v4069, %v4061
        %v4270 = vpack.c.b16 %v4070, %v4062
        %v4271 = vpack.c.b16 %v4071, %v4063
        %v4272 = vpack.c.b16 %v4072, %v4064
        %v4273 = vpack.c.b16 %v4073, %v4065
        %v4274 = vpack.c.b16 %v4074, %v4066
        %v4275 = vpack.c.b16 %v4083, %v4075
        %v4276 = vpack.c.b16 %v4084, %v4076
        %v4277 = vpack.c.b16 %v4085, %v4077
        %v4278 = vpack.c.b16 %v4086, %v4078
        %v4279 = vpack.c.b16 %v4087, %v4079
        %v4280 = vpack.c.b16 %v4088, %v4080
        %v4281 = vpack.c.b16 %v4089, %v4081
        %v4282 = vpack.c.b16 %v4090, %v4082
        %v4283 = vpack.c.b16 %v4099, %v4091
        %v4284 = vpack.c.b16 %v4100, %v4092
        %v4285 = vpack.c.b16 %v4101, %v4093
        %v4286 = vpack.c.b16 %v4102, %v4094
        %v4287 = vpack.c.b16 %v4103, %v4095
        %v4288 = vpack.c.b16 %v4104, %v4096
        %v4289 = vpack.c.b16 %v4105, %v4097
        %v4290 = vpack.c.b16 %v4106, %v4098
        %v4291 = vpack.c.b16 %v4115, %v4107
        %v4292 = vpack.c.b16 %v4116, %v4108
        %v4293 = vpack.c.b16 %v4117, %v4109
        %v4294 = vpack.c.b16 %v4118, %v4110
        %v4295 = vpack.c.b16 %v4119, %v4111
        %v4296 = vpack.c.b16 %v4120, %v4112
        %v4297 = vpack.c.b16 %v4121, %v4113
        %v4298 = vpack.c.b16 %v4122, %v4114
        %v4299 = vpack.c.b16 %v4131, %v4123
        %v4300 = vpack.c.b16 %v4132, %v4124
        %v4301 = vpack.c.b16 %v4133, %v4125
        %v4302 = vpack.c.b16 %v4134, %v4126
        %v4303 = vpack.c.b16 %v4135, %v4127
        %v4304 = vpack.c.b16 %v4136, %v4128
        %v4305 = vpack.c.b16 %v4137, %v4129
        %v4306 = vpack.c.b16 %v4138, %v4130
        %v4307 = vpack.c.b16 %v4147, %v4139
        %v4308 = vpack.c.b16 %v4148, %v4140
        %v4309 = vpack.c.b16 %v4149, %v4141
        %v4310 = vpack.c.b16 %v4150, %v4142
        %v4311 = vpack.c.b16 %v4151, %v4143
        %v4312 = vpack.c.b16 %v4152, %v4144
        %v4313 = vpack.c.b16 %v4153, %v4145
        %v4314 = vpack.c.b16 %v4154, %v4146
        %v4315 = vpack.c.b16 %v4163, %v4155
        %v4316 = vpack.c.b16 %v4164, %v4156
        %v4317 = vpack.c.b16 %v4165, %v4157
        %v4318 = vpack.c.b16 %v4166, %v4158
        %v4319 = vpack.c.b16 %v4167, %v4159
        %v4320 = vpack.c.b16 %v4168, %v4160
        %v4321 = vpack.c.b16 %v4169, %v4161
        %v4322 = vpack.c.b16 %v4170, %v4162
        %v4323 = vpack.c.b16 %v4179, %v4171
        %v4324 = vpack.c.b16 %v4180, %v4172
        %v4325 = vpack.c.b16 %v4181, %v4173
        %v4326 = vpack.c.b16 %v4182, %v4174
        %v4327 = vpack.c.b16 %v4183, %v4175
        %v4328 = vpack.c.b16 %v4184, %v4176
        %v4329 = vpack.c.b16 %v4185, %v4177
        %v4330 = vpack.c.b16 %v4186, %v4178
        %v4331 = vpack.c.b16 %v4195, %v4187
        %v4332 = vpack.c.b16 %v4196, %v4188
        %v4333 = vpack.c.b16 %v4197, %v4189
        %v4334 = vpack.c.b16 %v4198, %v4190
        %v4335 = vpack.c.b16 %v4199, %v4191
        %v4336 = vpack.c.b16 %v4200, %v4192
        %v4337 = vpack.c.b16 %v4201, %v4193
        %v4338 = vpack.c.b16 %v4202, %v4194
        %v4339 = vpack.c.b16 %v4211, %v4203
        %v4340 = vpack.c.b16 %v4212, %v4204
        %v4341 = vpack.c.b16 %v4213, %v4205
        %v4342 = vpack.c.b16 %v4214, %v4206
        %v4343 = vpack.c.b16 %v4215, %v4207
        %v4344 = vpack.c.b16 %v4216, %v4208
        %v4345 = vpack.c.b16 %v4217, %v4209
        %v4346 = vpack.c.b16 %v4218, %v4210
        %4475 = vmatprep.subr.bf16.mxu0 %v4276
        %4476 = vmatpush1.bf16.msra.mxu0 %v4275
        %4477 = vmatprep.subr.bf16.mxu0 %v4268
        %4478 = vmatpush1.bf16.msra.mxu0 %v4267
        %4479 = vmatprep.subr.bf16.mxu0 %v4260
        %4480 = vmatpush1.bf16.msra.mxu0 %v4259
        %4481 = vmatprep.subr.bf16.mxu0 %v4252
        %4482 = vmatpush1.bf16.msra.mxu0 %v4251
        %4483 = vmatprep.subr.bf16.mxu0 %v4244
        %4484 = vmatpush1.bf16.msra.mxu0 %v4243
        %4485 = vmatprep.subr.bf16.mxu0 %v4236
        %4486 = vmatpush1.bf16.msra.mxu0 %v4235
        %4487 = vmatprep.subr.bf16.mxu0 %v4228
        %4488 = vmatpush1.bf16.msra.mxu0 %v4227
        %4489 = vmatprep.subr.bf16.mxu0 %v4220
        %4490 = vmatpush1.bf16.msra.mxu0 %v4219
        %4491 = vmatprep.subr.bf16.mxu0 %v4340
        %4492 = vmatpush2.bf16.msra.mxu0 %v4339
        %4493 = vmatprep.subr.bf16.mxu0 %v4332
        %4494 = vmatpush2.bf16.msra.mxu0 %v4331
        %4495 = vmatprep.subr.bf16.mxu0 %v4324
        %4496 = vmatpush2.bf16.msra.mxu0 %v4323
        %4497 = vmatprep.subr.bf16.mxu0 %v4316
        %4498 = vmatpush2.bf16.msra.mxu0 %v4315
        %4499 = vmatprep.subr.bf16.mxu0 %v4308
        %4500 = vmatpush2.bf16.msra.mxu0 %v4307
        %4501 = vmatprep.subr.bf16.mxu0 %v4300
        %4502 = vmatpush2.bf16.msra.mxu0 %v4299
        %4503 = vmatprep.subr.bf16.mxu0 %v4292
        %4504 = vmatpush2.bf16.msra.mxu0 %v4291
        %4505 = vmatprep.subr.bf16.mxu0 %v4284
        %4506 = vmatpush2.bf16.msra.mxu0 %v4283
        %4507 = vmatprep.mubr.bf16.mxu0 %v3706
        %4508 = vmatmul.mubr.bf16.gmra.mxu0 %v3705
        %v4509 = vpop.f32.mrf.mxu0
        %v4510 = vadd.f32 0.0, %v4509
        %v4511 = vpop.f32.mrf.mxu0
        %v4512 = vadd.f32 0.0, %v4511
        %v4513 = vpop.f32.mrf.mxu0
        %v4514 = vadd.f32 0.0, %v4513
        %v4515 = vpop.f32.mrf.mxu0
        %v4516 = vadd.f32 0.0, %v4515
        %4517 = vdwg.mxu0
        %4518 = vmatprep.subr.bf16.mxu0 %v4278
        %4519 = vmatpush1.bf16.msra.mxu0 %v4277
        %4520 = vmatprep.subr.bf16.mxu0 %v4270
        %4521 = vmatpush1.bf16.msra.mxu0 %v4269
        %4522 = vmatprep.subr.bf16.mxu0 %v4262
        %4523 = vmatpush1.bf16.msra.mxu0 %v4261
        %4524 = vmatprep.subr.bf16.mxu0 %v4254
        %4525 = vmatpush1.bf16.msra.mxu0 %v4253
        %4526 = vmatprep.subr.bf16.mxu0 %v4246
        %4527 = vmatpush1.bf16.msra.mxu0 %v4245
        %4528 = vmatprep.subr.bf16.mxu0 %v4238
        %4529 = vmatpush1.bf16.msra.mxu0 %v4237
        %4530 = vmatprep.subr.bf16.mxu0 %v4230
        %4531 = vmatpush1.bf16.msra.mxu0 %v4229
        %4532 = vmatprep.subr.bf16.mxu0 %v4222
        %4533 = vmatpush1.bf16.msra.mxu0 %v4221
        %4534 = vmatprep.subr.bf16.mxu0 %v4342
        %4535 = vmatpush2.bf16.msra.mxu0 %v4341
        %4536 = vmatprep.subr.bf16.mxu0 %v4334
        %4537 = vmatpush2.bf16.msra.mxu0 %v4333
        %4538 = vmatprep.subr.bf16.mxu0 %v4326
        %4539 = vmatpush2.bf16.msra.mxu0 %v4325
        %4540 = vmatprep.subr.bf16.mxu0 %v4318
        %4541 = vmatpush2.bf16.msra.mxu0 %v4317
        %4542 = vmatprep.subr.bf16.mxu0 %v4310
        %4543 = vmatpush2.bf16.msra.mxu0 %v4309
        %4544 = vmatprep.subr.bf16.mxu0 %v4302
        %4545 = vmatpush2.bf16.msra.mxu0 %v4301
        %4546 = vmatprep.subr.bf16.mxu0 %v4294
        %4547 = vmatpush2.bf16.msra.mxu0 %v4293
        %4548 = vmatprep.subr.bf16.mxu0 %v4286
        %4549 = vmatpush2.bf16.msra.mxu0 %v4285
        %4550 = vmatprep.mubr.bf16.mxu0 %v3706
        %4551 = vmatmul.mubr.bf16.gmra.mxu0 %v3705
        %v4552 = vpop.f32.mrf.mxu0
        %v4553 = vadd.f32 0.0, %v4552
        %v4554 = vpop.f32.mrf.mxu0
        %v4555 = vadd.f32 0.0, %v4554
        %v4556 = vpop.f32.mrf.mxu0
        %v4557 = vadd.f32 0.0, %v4556
        %v4558 = vpop.f32.mrf.mxu0
        %v4559 = vadd.f32 0.0, %v4558
        %4560 = vdwg.mxu0
        %4561 = vmatprep.subr.bf16.mxu0 %v4280
        %4562 = vmatpush1.bf16.msra.mxu0 %v4279
        %4563 = vmatprep.subr.bf16.mxu0 %v4272
        %4564 = vmatpush1.bf16.msra.mxu0 %v4271
        %4565 = vmatprep.subr.bf16.mxu0 %v4264
        %4566 = vmatpush1.bf16.msra.mxu0 %v4263
        %4567 = vmatprep.subr.bf16.mxu0 %v4256
        %4568 = vmatpush1.bf16.msra.mxu0 %v4255
        %4569 = vmatprep.subr.bf16.mxu0 %v4248
        %4570 = vmatpush1.bf16.msra.mxu0 %v4247
        %4571 = vmatprep.subr.bf16.mxu0 %v4240
        %4572 = vmatpush1.bf16.msra.mxu0 %v4239
        %4573 = vmatprep.subr.bf16.mxu0 %v4232
        %4574 = vmatpush1.bf16.msra.mxu0 %v4231
        %4575 = vmatprep.subr.bf16.mxu0 %v4224
        %4576 = vmatpush1.bf16.msra.mxu0 %v4223
        %4577 = vmatprep.subr.bf16.mxu0 %v4344
        %4578 = vmatpush2.bf16.msra.mxu0 %v4343
        %4579 = vmatprep.subr.bf16.mxu0 %v4336
        %4580 = vmatpush2.bf16.msra.mxu0 %v4335
        %4581 = vmatprep.subr.bf16.mxu0 %v4328
        %4582 = vmatpush2.bf16.msra.mxu0 %v4327
        %4583 = vmatprep.subr.bf16.mxu0 %v4320
        %4584 = vmatpush2.bf16.msra.mxu0 %v4319
        %4585 = vmatprep.subr.bf16.mxu0 %v4312
        %4586 = vmatpush2.bf16.msra.mxu0 %v4311
        %4587 = vmatprep.subr.bf16.mxu0 %v4304
        %4588 = vmatpush2.bf16.msra.mxu0 %v4303
        %4589 = vmatprep.subr.bf16.mxu0 %v4296
        %4590 = vmatpush2.bf16.msra.mxu0 %v4295
        %4591 = vmatprep.subr.bf16.mxu0 %v4288
        %4592 = vmatpush2.bf16.msra.mxu0 %v4287
        %4593 = vmatprep.mubr.bf16.mxu0 %v3706
        %4594 = vmatmul.mubr.bf16.gmra.mxu0 %v3705
        %v4595 = vpop.f32.mrf.mxu0
        %v4596 = vadd.f32 0.0, %v4595
        %v4597 = vpop.f32.mrf.mxu0
        %v4598 = vadd.f32 0.0, %v4597
        %v4599 = vpop.f32.mrf.mxu0
        %v4600 = vadd.f32 0.0, %v4599
        %v4601 = vpop.f32.mrf.mxu0
        %v4602 = vadd.f32 0.0, %v4601
        %4603 = vdwg.mxu0
        %4604 = vmatprep.subr.bf16.mxu0 %v4282
        %4605 = vmatpush1.bf16.msra.mxu0 %v4281
        %4606 = vmatprep.subr.bf16.mxu0 %v4274
        %4607 = vmatpush1.bf16.msra.mxu0 %v4273
        %4608 = vmatprep.subr.bf16.mxu0 %v4266
        %4609 = vmatpush1.bf16.msra.mxu0 %v4265
        %4610 = vmatprep.subr.bf16.mxu0 %v4258
        %4611 = vmatpush1.bf16.msra.mxu0 %v4257
        %4612 = vmatprep.subr.bf16.mxu0 %v4250
        %4613 = vmatpush1.bf16.msra.mxu0 %v4249
        %4614 = vmatprep.subr.bf16.mxu0 %v4242
        %4615 = vmatpush1.bf16.msra.mxu0 %v4241
        %4616 = vmatprep.subr.bf16.mxu0 %v4234
        %4617 = vmatpush1.bf16.msra.mxu0 %v4233
        %4618 = vmatprep.subr.bf16.mxu0 %v4226
        %4619 = vmatpush1.bf16.msra.mxu0 %v4225
        %4620 = vmatprep.subr.bf16.mxu0 %v4346
        %4621 = vmatpush2.bf16.msra.mxu0 %v4345
        %4622 = vmatprep.subr.bf16.mxu0 %v4338
        %4623 = vmatpush2.bf16.msra.mxu0 %v4337
        %4624 = vmatprep.subr.bf16.mxu0 %v4330
        %4625 = vmatpush2.bf16.msra.mxu0 %v4329
        %4626 = vmatprep.subr.bf16.mxu0 %v4322
        %4627 = vmatpush2.bf16.msra.mxu0 %v4321
        %4628 = vmatprep.subr.bf16.mxu0 %v4314
        %4629 = vmatpush2.bf16.msra.mxu0 %v4313
        %4630 = vmatprep.subr.bf16.mxu0 %v4306
        %4631 = vmatpush2.bf16.msra.mxu0 %v4305
        %4632 = vmatprep.subr.bf16.mxu0 %v4298
        %4633 = vmatpush2.bf16.msra.mxu0 %v4297
        %4634 = vmatprep.subr.bf16.mxu0 %v4290
        %4635 = vmatpush2.bf16.msra.mxu0 %v4289
        %4636 = vmatprep.mubr.bf16.mxu0 %v3706
        %4637 = vmatmul.mubr.bf16.gmra.mxu0 %v3705
        %v4638 = vpop.f32.mrf.mxu0
        %v4639 = vadd.f32 0.0, %v4638
        %v4640 = vpop.f32.mrf.mxu0
        %v4641 = vadd.f32 0.0, %v4640
        %v4642 = vpop.f32.mrf.mxu0
        %v4643 = vadd.f32 0.0, %v4642
        %v4644 = vpop.f32.mrf.mxu0
        %v4645 = vadd.f32 0.0, %v4644
        %4646 = vdwg.mxu0
        %v4647 = vmul.f32 %v4510, 0.5
        %v4648 = vmul.f32 %v4512, 0.5
        %v4649 = vmul.f32 %v4553, 0.5
        %v4650 = vmul.f32 %v4555, 0.5
        %v4651 = vmul.f32 %v4596, 0.5
        %v4652 = vmul.f32 %v4598, 0.5
        %v4653 = vmul.f32 %v4639, 0.5
        %v4654 = vmul.f32 %v4641, 0.5
        %v4655 = vmul.f32 %v4514, 0.5
        %v4656 = vmul.f32 %v4516, 0.5
        %v4657 = vmul.f32 %v4557, 0.5
        %v4658 = vmul.f32 %v4559, 0.5
        %v4659 = vmul.f32 %v4600, 0.5
        %v4660 = vmul.f32 %v4602, 0.5
        %v4661 = vmul.f32 %v4643, 0.5
        %v4662 = vmul.f32 %v4645, 0.5
        %v4663 = vmul.f32 %v4510, 0.70710677
        %v4664 = vmul.f32 %v4512, 0.70710677
        %v4665 = vmul.f32 %v4553, 0.70710677
        %v4666 = vmul.f32 %v4555, 0.70710677
        %v4667 = vmul.f32 %v4596, 0.70710677
        %v4668 = vmul.f32 %v4598, 0.70710677
        %v4669 = vmul.f32 %v4639, 0.70710677
        %v4670 = vmul.f32 %v4641, 0.70710677
        %v4671 = vmul.f32 %v4514, 0.70710677
        %v4672 = vmul.f32 %v4516, 0.70710677
        %v4673 = vmul.f32 %v4557, 0.70710677
        %v4674 = vmul.f32 %v4559, 0.70710677
        %v4675 = vmul.f32 %v4600, 0.70710677
        %v4676 = vmul.f32 %v4602, 0.70710677
        %v4677 = vmul.f32 %v4643, 0.70710677
        %v4678 = vmul.f32 %v4645, 0.70710677
        %v4679 = verf.f32.pop %v4663
        %v4680 = verf.f32.pop %v4664
        %v4681 = verf.f32.pop %v4665
        %v4682 = verf.f32.pop %v4666
        %v4683 = verf.f32.pop %v4667
        %v4684 = verf.f32.pop %v4668
        %v4685 = verf.f32.pop %v4669
        %v4686 = verf.f32.pop %v4670
        %v4687 = verf.f32.pop %v4671
        %v4688 = verf.f32.pop %v4672
        %v4689 = verf.f32.pop %v4673
        %v4690 = verf.f32.pop %v4674
        %v4691 = verf.f32.pop %v4675
        %v4692 = verf.f32.pop %v4676
        %v4693 = verf.f32.pop %v4677
        %v4694 = verf.f32.pop %v4678
        %v4695 = vadd.f32 %v4679, 1.0
        %v4696 = vadd.f32 %v4680, 1.0
        %v4697 = vadd.f32 %v4681, 1.0
        %v4698 = vadd.f32 %v4682, 1.0
        %v4699 = vadd.f32 %v4683, 1.0
        %v4700 = vadd.f32 %v4684, 1.0
        %v4701 = vadd.f32 %v4685, 1.0
        %v4702 = vadd.f32 %v4686, 1.0
        %v4703 = vadd.f32 %v4687, 1.0
        %v4704 = vadd.f32 %v4688, 1.0
        %v4705 = vadd.f32 %v4689, 1.0
        %v4706 = vadd.f32 %v4690, 1.0
        %v4707 = vadd.f32 %v4691, 1.0
        %v4708 = vadd.f32 %v4692, 1.0
        %v4709 = vadd.f32 %v4693, 1.0
        %v4710 = vadd.f32 %v4694, 1.0
        %v4711 = vmul.f32 %v4647, %v4695
        %v4712 = vmul.f32 %v4648, %v4696
        %v4713 = vmul.f32 %v4649, %v4697
        %v4714 = vmul.f32 %v4650, %v4698
        %v4715 = vmul.f32 %v4651, %v4699
        %v4716 = vmul.f32 %v4652, %v4700
        %v4717 = vmul.f32 %v4653, %v4701
        %v4718 = vmul.f32 %v4654, %v4702
        %v4719 = vmul.f32 %v4655, %v4703
        %v4720 = vmul.f32 %v4656, %v4704
        %v4721 = vmul.f32 %v4657, %v4705
        %v4722 = vmul.f32 %v4658, %v4706
        %v4723 = vmul.f32 %v4659, %v4707
        %v4724 = vmul.f32 %v4660, %v4708
        %v4725 = vmul.f32 %v4661, %v4709
        %v4726 = vmul.f32 %v4662, %v4710
        %v4727 = vpack.c.bf16 %v4719, %v4711
        %v4728 = vpack.c.bf16 %v4720, %v4712
        %v4729 = vpack.c.bf16 %v4721, %v4713
        %v4730 = vpack.c.bf16 %v4722, %v4714
        %v4731 = vpack.c.bf16 %v4723, %v4715
        %v4732 = vpack.c.bf16 %v4724, %v4716
        %v4733 = vpack.c.bf16 %v4725, %v4717
        %v4734 = vpack.c.bf16 %v4726, %v4718
        %v4735 = vld [vmem:[#allocation20] sm:$0xff]
        %v4736 = vld [vmem:[#allocation20 + $0x8] sm:$0xff]
        %v4737 = vld [vmem:[#allocation20 + $0x10] sm:$0xff]
        %v4738 = vld [vmem:[#allocation20 + $0x18] sm:$0xff]
        %v4739 = vld [vmem:[#allocation20 + $0x20] sm:$0xff]
        %v4740 = vld [vmem:[#allocation20 + $0x28] sm:$0xff]
        %v4741 = vld [vmem:[#allocation20 + $0x30] sm:$0xff]
        %v4742 = vld [vmem:[#allocation20 + $0x38] sm:$0xff]
        %v4743 = vld [vmem:[#allocation20 + $0x40] sm:$0xff]
        %v4744 = vld [vmem:[#allocation20 + $0x48] sm:$0xff]
        %v4745 = vld [vmem:[#allocation20 + $0x50] sm:$0xff]
        %v4746 = vld [vmem:[#allocation20 + $0x58] sm:$0xff]
        %v4747 = vld [vmem:[#allocation20 + $0x60] sm:$0xff]
        %v4748 = vld [vmem:[#allocation20 + $0x68] sm:$0xff]
        %v4749 = vld [vmem:[#allocation20 + $0x70] sm:$0xff]
        %v4750 = vld [vmem:[#allocation20 + $0x78] sm:$0xff]
        %v4751 = vld [vmem:[#allocation20 + $0x80] sm:$0xff]
        %v4752 = vld [vmem:[#allocation20 + $0x88] sm:$0xff]
        %v4753 = vld [vmem:[#allocation20 + $0x90] sm:$0xff]
        %v4754 = vld [vmem:[#allocation20 + $0x98] sm:$0xff]
        %v4755 = vld [vmem:[#allocation20 + $0xa0] sm:$0xff]
        %v4756 = vld [vmem:[#allocation20 + $0xa8] sm:$0xff]
        %v4757 = vld [vmem:[#allocation20 + $0xb0] sm:$0xff]
        %v4758 = vld [vmem:[#allocation20 + $0xb8] sm:$0xff]
        %v4759 = vld [vmem:[#allocation20 + $0xc0] sm:$0xff]
        %v4760 = vld [vmem:[#allocation20 + $0xc8] sm:$0xff]
        %v4761 = vld [vmem:[#allocation20 + $0xd0] sm:$0xff]
        %v4762 = vld [vmem:[#allocation20 + $0xd8] sm:$0xff]
        %v4763 = vld [vmem:[#allocation20 + $0xe0] sm:$0xff]
        %v4764 = vld [vmem:[#allocation20 + $0xe8] sm:$0xff]
        %v4765 = vld [vmem:[#allocation20 + $0xf0] sm:$0xff]
        %v4766 = vld [vmem:[#allocation20 + $0xf8] sm:$0xff]
        %v4767 = vld [vmem:[#allocation20 + $0x100] sm:$0xff]
        %v4768 = vld [vmem:[#allocation20 + $0x108] sm:$0xff]
        %v4769 = vld [vmem:[#allocation20 + $0x110] sm:$0xff]
        %v4770 = vld [vmem:[#allocation20 + $0x118] sm:$0xff]
        %v4771 = vld [vmem:[#allocation20 + $0x120] sm:$0xff]
        %v4772 = vld [vmem:[#allocation20 + $0x128] sm:$0xff]
        %v4773 = vld [vmem:[#allocation20 + $0x130] sm:$0xff]
        %v4774 = vld [vmem:[#allocation20 + $0x138] sm:$0xff]
        %v4775 = vld [vmem:[#allocation20 + $0x140] sm:$0xff]
        %v4776 = vld [vmem:[#allocation20 + $0x148] sm:$0xff]
        %v4777 = vld [vmem:[#allocation20 + $0x150] sm:$0xff]
        %v4778 = vld [vmem:[#allocation20 + $0x158] sm:$0xff]
        %v4779 = vld [vmem:[#allocation20 + $0x160] sm:$0xff]
        %v4780 = vld [vmem:[#allocation20 + $0x168] sm:$0xff]
        %v4781 = vld [vmem:[#allocation20 + $0x170] sm:$0xff]
        %v4782 = vld [vmem:[#allocation20 + $0x178] sm:$0xff]
        %v4783 = vld [vmem:[#allocation20 + $0x180] sm:$0xff]
        %v4784 = vld [vmem:[#allocation20 + $0x188] sm:$0xff]
        %v4785 = vld [vmem:[#allocation20 + $0x190] sm:$0xff]
        %v4786 = vld [vmem:[#allocation20 + $0x198] sm:$0xff]
        %v4787 = vld [vmem:[#allocation20 + $0x1a0] sm:$0xff]
        %v4788 = vld [vmem:[#allocation20 + $0x1a8] sm:$0xff]
        %v4789 = vld [vmem:[#allocation20 + $0x1b0] sm:$0xff]
        %v4790 = vld [vmem:[#allocation20 + $0x1b8] sm:$0xff]
        %v4791 = vld [vmem:[#allocation20 + $0x1c0] sm:$0xff]
        %v4792 = vld [vmem:[#allocation20 + $0x1c8] sm:$0xff]
        %v4793 = vld [vmem:[#allocation20 + $0x1d0] sm:$0xff]
        %v4794 = vld [vmem:[#allocation20 + $0x1d8] sm:$0xff]
        %v4795 = vld [vmem:[#allocation20 + $0x1e0] sm:$0xff]
        %v4796 = vld [vmem:[#allocation20 + $0x1e8] sm:$0xff]
        %v4797 = vld [vmem:[#allocation20 + $0x1f0] sm:$0xff]
        %v4798 = vld [vmem:[#allocation20 + $0x1f8] sm:$0xff]
        %v4799 = vld [vmem:[#allocation20 + $0x200] sm:$0xff]
        %v4800 = vld [vmem:[#allocation20 + $0x208] sm:$0xff]
        %v4801 = vld [vmem:[#allocation20 + $0x210] sm:$0xff]
        %v4802 = vld [vmem:[#allocation20 + $0x218] sm:$0xff]
        %v4803 = vld [vmem:[#allocation20 + $0x220] sm:$0xff]
        %v4804 = vld [vmem:[#allocation20 + $0x228] sm:$0xff]
        %v4805 = vld [vmem:[#allocation20 + $0x230] sm:$0xff]
        %v4806 = vld [vmem:[#allocation20 + $0x238] sm:$0xff]
        %v4807 = vld [vmem:[#allocation20 + $0x240] sm:$0xff]
        %v4808 = vld [vmem:[#allocation20 + $0x248] sm:$0xff]
        %v4809 = vld [vmem:[#allocation20 + $0x250] sm:$0xff]
        %v4810 = vld [vmem:[#allocation20 + $0x258] sm:$0xff]
        %v4811 = vld [vmem:[#allocation20 + $0x260] sm:$0xff]
        %v4812 = vld [vmem:[#allocation20 + $0x268] sm:$0xff]
        %v4813 = vld [vmem:[#allocation20 + $0x270] sm:$0xff]
        %v4814 = vld [vmem:[#allocation20 + $0x278] sm:$0xff]
        %v4815 = vld [vmem:[#allocation20 + $0x280] sm:$0xff]
        %v4816 = vld [vmem:[#allocation20 + $0x288] sm:$0xff]
        %v4817 = vld [vmem:[#allocation20 + $0x290] sm:$0xff]
        %v4818 = vld [vmem:[#allocation20 + $0x298] sm:$0xff]
        %v4819 = vld [vmem:[#allocation20 + $0x2a0] sm:$0xff]
        %v4820 = vld [vmem:[#allocation20 + $0x2a8] sm:$0xff]
        %v4821 = vld [vmem:[#allocation20 + $0x2b0] sm:$0xff]
        %v4822 = vld [vmem:[#allocation20 + $0x2b8] sm:$0xff]
        %v4823 = vld [vmem:[#allocation20 + $0x2c0] sm:$0xff]
        %v4824 = vld [vmem:[#allocation20 + $0x2c8] sm:$0xff]
        %v4825 = vld [vmem:[#allocation20 + $0x2d0] sm:$0xff]
        %v4826 = vld [vmem:[#allocation20 + $0x2d8] sm:$0xff]
        %v4827 = vld [vmem:[#allocation20 + $0x2e0] sm:$0xff]
        %v4828 = vld [vmem:[#allocation20 + $0x2e8] sm:$0xff]
        %v4829 = vld [vmem:[#allocation20 + $0x2f0] sm:$0xff]
        %v4830 = vld [vmem:[#allocation20 + $0x2f8] sm:$0xff]
        %v4831 = vld [vmem:[#allocation20 + $0x300] sm:$0xff]
        %v4832 = vld [vmem:[#allocation20 + $0x308] sm:$0xff]
        %v4833 = vld [vmem:[#allocation20 + $0x310] sm:$0xff]
        %v4834 = vld [vmem:[#allocation20 + $0x318] sm:$0xff]
        %v4835 = vld [vmem:[#allocation20 + $0x320] sm:$0xff]
        %v4836 = vld [vmem:[#allocation20 + $0x328] sm:$0xff]
        %v4837 = vld [vmem:[#allocation20 + $0x330] sm:$0xff]
        %v4838 = vld [vmem:[#allocation20 + $0x338] sm:$0xff]
        %v4839 = vld [vmem:[#allocation20 + $0x340] sm:$0xff]
        %v4840 = vld [vmem:[#allocation20 + $0x348] sm:$0xff]
        %v4841 = vld [vmem:[#allocation20 + $0x350] sm:$0xff]
        %v4842 = vld [vmem:[#allocation20 + $0x358] sm:$0xff]
        %v4843 = vld [vmem:[#allocation20 + $0x360] sm:$0xff]
        %v4844 = vld [vmem:[#allocation20 + $0x368] sm:$0xff]
        %v4845 = vld [vmem:[#allocation20 + $0x370] sm:$0xff]
        %v4846 = vld [vmem:[#allocation20 + $0x378] sm:$0xff]
        %v4847 = vld [vmem:[#allocation20 + $0x380] sm:$0xff]
        %v4848 = vld [vmem:[#allocation20 + $0x388] sm:$0xff]
        %v4849 = vld [vmem:[#allocation20 + $0x390] sm:$0xff]
        %v4850 = vld [vmem:[#allocation20 + $0x398] sm:$0xff]
        %v4851 = vld [vmem:[#allocation20 + $0x3a0] sm:$0xff]
        %v4852 = vld [vmem:[#allocation20 + $0x3a8] sm:$0xff]
        %v4853 = vld [vmem:[#allocation20 + $0x3b0] sm:$0xff]
        %v4854 = vld [vmem:[#allocation20 + $0x3b8] sm:$0xff]
        %v4855 = vld [vmem:[#allocation20 + $0x3c0] sm:$0xff]
        %v4856 = vld [vmem:[#allocation20 + $0x3c8] sm:$0xff]
        %v4857 = vld [vmem:[#allocation20 + $0x3d0] sm:$0xff]
        %v4858 = vld [vmem:[#allocation20 + $0x3d8] sm:$0xff]
        %v4859 = vld [vmem:[#allocation20 + $0x3e0] sm:$0xff]
        %v4860 = vld [vmem:[#allocation20 + $0x3e8] sm:$0xff]
        %v4861 = vld [vmem:[#allocation20 + $0x3f0] sm:$0xff]
        %v4862 = vld [vmem:[#allocation20 + $0x3f8] sm:$0xff]
        %v4991 = vunpack.c.l.b16 %v4735
        %v4992 = vunpack.c.h.b16 %v4735
        %v4993 = vunpack.c.l.b16 %v4736
        %v4994 = vunpack.c.h.b16 %v4736
        %v4995 = vunpack.c.l.b16 %v4737
        %v4996 = vunpack.c.h.b16 %v4737
        %v4997 = vunpack.c.l.b16 %v4738
        %v4998 = vunpack.c.h.b16 %v4738
        %v4999 = vunpack.c.l.b16 %v4739
        %v5000 = vunpack.c.h.b16 %v4739
        %v5001 = vunpack.c.l.b16 %v4740
        %v5002 = vunpack.c.h.b16 %v4740
        %v5003 = vunpack.c.l.b16 %v4741
        %v5004 = vunpack.c.h.b16 %v4741
        %v5005 = vunpack.c.l.b16 %v4742
        %v5006 = vunpack.c.h.b16 %v4742
        %v5007 = vunpack.c.l.b16 %v4743
        %v5008 = vunpack.c.h.b16 %v4743
        %v5009 = vunpack.c.l.b16 %v4744
        %v5010 = vunpack.c.h.b16 %v4744
        %v5011 = vunpack.c.l.b16 %v4745
        %v5012 = vunpack.c.h.b16 %v4745
        %v5013 = vunpack.c.l.b16 %v4746
        %v5014 = vunpack.c.h.b16 %v4746
        %v5015 = vunpack.c.l.b16 %v4747
        %v5016 = vunpack.c.h.b16 %v4747
        %v5017 = vunpack.c.l.b16 %v4748
        %v5018 = vunpack.c.h.b16 %v4748
        %v5019 = vunpack.c.l.b16 %v4749
        %v5020 = vunpack.c.h.b16 %v4749
        %v5021 = vunpack.c.l.b16 %v4750
        %v5022 = vunpack.c.h.b16 %v4750
        %v5023 = vunpack.c.l.b16 %v4751
        %v5024 = vunpack.c.h.b16 %v4751
        %v5025 = vunpack.c.l.b16 %v4752
        %v5026 = vunpack.c.h.b16 %v4752
        %v5027 = vunpack.c.l.b16 %v4753
        %v5028 = vunpack.c.h.b16 %v4753
        %v5029 = vunpack.c.l.b16 %v4754
        %v5030 = vunpack.c.h.b16 %v4754
        %v5031 = vunpack.c.l.b16 %v4755
        %v5032 = vunpack.c.h.b16 %v4755
        %v5033 = vunpack.c.l.b16 %v4756
        %v5034 = vunpack.c.h.b16 %v4756
        %v5035 = vunpack.c.l.b16 %v4757
        %v5036 = vunpack.c.h.b16 %v4757
        %v5037 = vunpack.c.l.b16 %v4758
        %v5038 = vunpack.c.h.b16 %v4758
        %v5039 = vunpack.c.l.b16 %v4759
        %v5040 = vunpack.c.h.b16 %v4759
        %v5041 = vunpack.c.l.b16 %v4760
        %v5042 = vunpack.c.h.b16 %v4760
        %v5043 = vunpack.c.l.b16 %v4761
        %v5044 = vunpack.c.h.b16 %v4761
        %v5045 = vunpack.c.l.b16 %v4762
        %v5046 = vunpack.c.h.b16 %v4762
        %v5047 = vunpack.c.l.b16 %v4763
        %v5048 = vunpack.c.h.b16 %v4763
        %v5049 = vunpack.c.l.b16 %v4764
        %v5050 = vunpack.c.h.b16 %v4764
        %v5051 = vunpack.c.l.b16 %v4765
        %v5052 = vunpack.c.h.b16 %v4765
        %v5053 = vunpack.c.l.b16 %v4766
        %v5054 = vunpack.c.h.b16 %v4766
        %v5055 = vunpack.c.l.b16 %v4767
        %v5056 = vunpack.c.h.b16 %v4767
        %v5057 = vunpack.c.l.b16 %v4768
        %v5058 = vunpack.c.h.b16 %v4768
        %v5059 = vunpack.c.l.b16 %v4769
        %v5060 = vunpack.c.h.b16 %v4769
        %v5061 = vunpack.c.l.b16 %v4770
        %v5062 = vunpack.c.h.b16 %v4770
        %v5063 = vunpack.c.l.b16 %v4771
        %v5064 = vunpack.c.h.b16 %v4771
        %v5065 = vunpack.c.l.b16 %v4772
        %v5066 = vunpack.c.h.b16 %v4772
        %v5067 = vunpack.c.l.b16 %v4773
        %v5068 = vunpack.c.h.b16 %v4773
        %v5069 = vunpack.c.l.b16 %v4774
        %v5070 = vunpack.c.h.b16 %v4774
        %v5071 = vunpack.c.l.b16 %v4775
        %v5072 = vunpack.c.h.b16 %v4775
        %v5073 = vunpack.c.l.b16 %v4776
        %v5074 = vunpack.c.h.b16 %v4776
        %v5075 = vunpack.c.l.b16 %v4777
        %v5076 = vunpack.c.h.b16 %v4777
        %v5077 = vunpack.c.l.b16 %v4778
        %v5078 = vunpack.c.h.b16 %v4778
        %v5079 = vunpack.c.l.b16 %v4779
        %v5080 = vunpack.c.h.b16 %v4779
        %v5081 = vunpack.c.l.b16 %v4780
        %v5082 = vunpack.c.h.b16 %v4780
        %v5083 = vunpack.c.l.b16 %v4781
        %v5084 = vunpack.c.h.b16 %v4781
        %v5085 = vunpack.c.l.b16 %v4782
        %v5086 = vunpack.c.h.b16 %v4782
        %v5087 = vunpack.c.l.b16 %v4783
        %v5088 = vunpack.c.h.b16 %v4783
        %v5089 = vunpack.c.l.b16 %v4784
        %v5090 = vunpack.c.h.b16 %v4784
        %v5091 = vunpack.c.l.b16 %v4785
        %v5092 = vunpack.c.h.b16 %v4785
        %v5093 = vunpack.c.l.b16 %v4786
        %v5094 = vunpack.c.h.b16 %v4786
        %v5095 = vunpack.c.l.b16 %v4787
        %v5096 = vunpack.c.h.b16 %v4787
        %v5097 = vunpack.c.l.b16 %v4788
        %v5098 = vunpack.c.h.b16 %v4788
        %v5099 = vunpack.c.l.b16 %v4789
        %v5100 = vunpack.c.h.b16 %v4789
        %v5101 = vunpack.c.l.b16 %v4790
        %v5102 = vunpack.c.h.b16 %v4790
        %v5103 = vunpack.c.l.b16 %v4791
        %v5104 = vunpack.c.h.b16 %v4791
        %v5105 = vunpack.c.l.b16 %v4792
        %v5106 = vunpack.c.h.b16 %v4792
        %v5107 = vunpack.c.l.b16 %v4793
        %v5108 = vunpack.c.h.b16 %v4793
        %v5109 = vunpack.c.l.b16 %v4794
        %v5110 = vunpack.c.h.b16 %v4794
        %v5111 = vunpack.c.l.b16 %v4795
        %v5112 = vunpack.c.h.b16 %v4795
        %v5113 = vunpack.c.l.b16 %v4796
        %v5114 = vunpack.c.h.b16 %v4796
        %v5115 = vunpack.c.l.b16 %v4797
        %v5116 = vunpack.c.h.b16 %v4797
        %v5117 = vunpack.c.l.b16 %v4798
        %v5118 = vunpack.c.h.b16 %v4798
        %v5119 = vunpack.c.l.b16 %v4799
        %v5120 = vunpack.c.h.b16 %v4799
        %v5121 = vunpack.c.l.b16 %v4800
        %v5122 = vunpack.c.h.b16 %v4800
        %v5123 = vunpack.c.l.b16 %v4801
        %v5124 = vunpack.c.h.b16 %v4801
        %v5125 = vunpack.c.l.b16 %v4802
        %v5126 = vunpack.c.h.b16 %v4802
        %v5127 = vunpack.c.l.b16 %v4803
        %v5128 = vunpack.c.h.b16 %v4803
        %v5129 = vunpack.c.l.b16 %v4804
        %v5130 = vunpack.c.h.b16 %v4804
        %v5131 = vunpack.c.l.b16 %v4805
        %v5132 = vunpack.c.h.b16 %v4805
        %v5133 = vunpack.c.l.b16 %v4806
        %v5134 = vunpack.c.h.b16 %v4806
        %v5135 = vunpack.c.l.b16 %v4807
        %v5136 = vunpack.c.h.b16 %v4807
        %v5137 = vunpack.c.l.b16 %v4808
        %v5138 = vunpack.c.h.b16 %v4808
        %v5139 = vunpack.c.l.b16 %v4809
        %v5140 = vunpack.c.h.b16 %v4809
        %v5141 = vunpack.c.l.b16 %v4810
        %v5142 = vunpack.c.h.b16 %v4810
        %v5143 = vunpack.c.l.b16 %v4811
        %v5144 = vunpack.c.h.b16 %v4811
        %v5145 = vunpack.c.l.b16 %v4812
        %v5146 = vunpack.c.h.b16 %v4812
        %v5147 = vunpack.c.l.b16 %v4813
        %v5148 = vunpack.c.h.b16 %v4813
        %v5149 = vunpack.c.l.b16 %v4814
        %v5150 = vunpack.c.h.b16 %v4814
        %v5151 = vunpack.c.l.b16 %v4815
        %v5152 = vunpack.c.h.b16 %v4815
        %v5153 = vunpack.c.l.b16 %v4816
        %v5154 = vunpack.c.h.b16 %v4816
        %v5155 = vunpack.c.l.b16 %v4817
        %v5156 = vunpack.c.h.b16 %v4817
        %v5157 = vunpack.c.l.b16 %v4818
        %v5158 = vunpack.c.h.b16 %v4818
        %v5159 = vunpack.c.l.b16 %v4819
        %v5160 = vunpack.c.h.b16 %v4819
        %v5161 = vunpack.c.l.b16 %v4820
        %v5162 = vunpack.c.h.b16 %v4820
        %v5163 = vunpack.c.l.b16 %v4821
        %v5164 = vunpack.c.h.b16 %v4821
        %v5165 = vunpack.c.l.b16 %v4822
        %v5166 = vunpack.c.h.b16 %v4822
        %v5167 = vunpack.c.l.b16 %v4823
        %v5168 = vunpack.c.h.b16 %v4823
        %v5169 = vunpack.c.l.b16 %v4824
        %v5170 = vunpack.c.h.b16 %v4824
        %v5171 = vunpack.c.l.b16 %v4825
        %v5172 = vunpack.c.h.b16 %v4825
        %v5173 = vunpack.c.l.b16 %v4826
        %v5174 = vunpack.c.h.b16 %v4826
        %v5175 = vunpack.c.l.b16 %v4827
        %v5176 = vunpack.c.h.b16 %v4827
        %v5177 = vunpack.c.l.b16 %v4828
        %v5178 = vunpack.c.h.b16 %v4828
        %v5179 = vunpack.c.l.b16 %v4829
        %v5180 = vunpack.c.h.b16 %v4829
        %v5181 = vunpack.c.l.b16 %v4830
        %v5182 = vunpack.c.h.b16 %v4830
        %v5183 = vunpack.c.l.b16 %v4831
        %v5184 = vunpack.c.h.b16 %v4831
        %v5185 = vunpack.c.l.b16 %v4832
        %v5186 = vunpack.c.h.b16 %v4832
        %v5187 = vunpack.c.l.b16 %v4833
        %v5188 = vunpack.c.h.b16 %v4833
        %v5189 = vunpack.c.l.b16 %v4834
        %v5190 = vunpack.c.h.b16 %v4834
        %v5191 = vunpack.c.l.b16 %v4835
        %v5192 = vunpack.c.h.b16 %v4835
        %v5193 = vunpack.c.l.b16 %v4836
        %v5194 = vunpack.c.h.b16 %v4836
        %v5195 = vunpack.c.l.b16 %v4837
        %v5196 = vunpack.c.h.b16 %v4837
        %v5197 = vunpack.c.l.b16 %v4838
        %v5198 = vunpack.c.h.b16 %v4838
        %v5199 = vunpack.c.l.b16 %v4839
        %v5200 = vunpack.c.h.b16 %v4839
        %v5201 = vunpack.c.l.b16 %v4840
        %v5202 = vunpack.c.h.b16 %v4840
        %v5203 = vunpack.c.l.b16 %v4841
        %v5204 = vunpack.c.h.b16 %v4841
        %v5205 = vunpack.c.l.b16 %v4842
        %v5206 = vunpack.c.h.b16 %v4842
        %v5207 = vunpack.c.l.b16 %v4843
        %v5208 = vunpack.c.h.b16 %v4843
        %v5209 = vunpack.c.l.b16 %v4844
        %v5210 = vunpack.c.h.b16 %v4844
        %v5211 = vunpack.c.l.b16 %v4845
        %v5212 = vunpack.c.h.b16 %v4845
        %v5213 = vunpack.c.l.b16 %v4846
        %v5214 = vunpack.c.h.b16 %v4846
        %v5215 = vunpack.c.l.b16 %v4847
        %v5216 = vunpack.c.h.b16 %v4847
        %v5217 = vunpack.c.l.b16 %v4848
        %v5218 = vunpack.c.h.b16 %v4848
        %v5219 = vunpack.c.l.b16 %v4849
        %v5220 = vunpack.c.h.b16 %v4849
        %v5221 = vunpack.c.l.b16 %v4850
        %v5222 = vunpack.c.h.b16 %v4850
        %v5223 = vunpack.c.l.b16 %v4851
        %v5224 = vunpack.c.h.b16 %v4851
        %v5225 = vunpack.c.l.b16 %v4852
        %v5226 = vunpack.c.h.b16 %v4852
        %v5227 = vunpack.c.l.b16 %v4853
        %v5228 = vunpack.c.h.b16 %v4853
        %v5229 = vunpack.c.l.b16 %v4854
        %v5230 = vunpack.c.h.b16 %v4854
        %v5231 = vunpack.c.l.b16 %v4855
        %v5232 = vunpack.c.h.b16 %v4855
        %v5233 = vunpack.c.l.b16 %v4856
        %v5234 = vunpack.c.h.b16 %v4856
        %v5235 = vunpack.c.l.b16 %v4857
        %v5236 = vunpack.c.h.b16 %v4857
        %v5237 = vunpack.c.l.b16 %v4858
        %v5238 = vunpack.c.h.b16 %v4858
        %v5239 = vunpack.c.l.b16 %v4859
        %v5240 = vunpack.c.h.b16 %v4859
        %v5241 = vunpack.c.l.b16 %v4860
        %v5242 = vunpack.c.h.b16 %v4860
        %v5243 = vunpack.c.l.b16 %v4861
        %v5244 = vunpack.c.h.b16 %v4861
        %v5245 = vunpack.c.l.b16 %v4862
        %v5246 = vunpack.c.h.b16 %v4862
        %v5247 = vpack.c.b16 %v4993, %v4991
        %v5248 = vpack.c.b16 %v4994, %v4992
        %v5249 = vpack.c.b16 %v4997, %v4995
        %v5250 = vpack.c.b16 %v4998, %v4996
        %v5251 = vpack.c.b16 %v5001, %v4999
        %v5252 = vpack.c.b16 %v5002, %v5000
        %v5253 = vpack.c.b16 %v5005, %v5003
        %v5254 = vpack.c.b16 %v5006, %v5004
        %v5255 = vpack.c.b16 %v5009, %v5007
        %v5256 = vpack.c.b16 %v5010, %v5008
        %v5257 = vpack.c.b16 %v5013, %v5011
        %v5258 = vpack.c.b16 %v5014, %v5012
        %v5259 = vpack.c.b16 %v5017, %v5015
        %v5260 = vpack.c.b16 %v5018, %v5016
        %v5261 = vpack.c.b16 %v5021, %v5019
        %v5262 = vpack.c.b16 %v5022, %v5020
        %v5263 = vpack.c.b16 %v5025, %v5023
        %v5264 = vpack.c.b16 %v5026, %v5024
        %v5265 = vpack.c.b16 %v5029, %v5027
        %v5266 = vpack.c.b16 %v5030, %v5028
        %v5267 = vpack.c.b16 %v5033, %v5031
        %v5268 = vpack.c.b16 %v5034, %v5032
        %v5269 = vpack.c.b16 %v5037, %v5035
        %v5270 = vpack.c.b16 %v5038, %v5036
        %v5271 = vpack.c.b16 %v5041, %v5039
        %v5272 = vpack.c.b16 %v5042, %v5040
        %v5273 = vpack.c.b16 %v5045, %v5043
        %v5274 = vpack.c.b16 %v5046, %v5044
        %v5275 = vpack.c.b16 %v5049, %v5047
        %v5276 = vpack.c.b16 %v5050, %v5048
        %v5277 = vpack.c.b16 %v5053, %v5051
        %v5278 = vpack.c.b16 %v5054, %v5052
        %v5279 = vpack.c.b16 %v5057, %v5055
        %v5280 = vpack.c.b16 %v5058, %v5056
        %v5281 = vpack.c.b16 %v5061, %v5059
        %v5282 = vpack.c.b16 %v5062, %v5060
        %v5283 = vpack.c.b16 %v5065, %v5063
        %v5284 = vpack.c.b16 %v5066, %v5064
        %v5285 = vpack.c.b16 %v5069, %v5067
        %v5286 = vpack.c.b16 %v5070, %v5068
        %v5287 = vpack.c.b16 %v5073, %v5071
        %v5288 = vpack.c.b16 %v5074, %v5072
        %v5289 = vpack.c.b16 %v5077, %v5075
        %v5290 = vpack.c.b16 %v5078, %v5076
        %v5291 = vpack.c.b16 %v5081, %v5079
        %v5292 = vpack.c.b16 %v5082, %v5080
        %v5293 = vpack.c.b16 %v5085, %v5083
        %v5294 = vpack.c.b16 %v5086, %v5084
        %v5295 = vpack.c.b16 %v5089, %v5087
        %v5296 = vpack.c.b16 %v5090, %v5088
        %v5297 = vpack.c.b16 %v5093, %v5091
        %v5298 = vpack.c.b16 %v5094, %v5092
        %v5299 = vpack.c.b16 %v5097, %v5095
        %v5300 = vpack.c.b16 %v5098, %v5096
        %v5301 = vpack.c.b16 %v5101, %v5099
        %v5302 = vpack.c.b16 %v5102, %v5100
        %v5303 = vpack.c.b16 %v5105, %v5103
        %v5304 = vpack.c.b16 %v5106, %v5104
        %v5305 = vpack.c.b16 %v5109, %v5107
        %v5306 = vpack.c.b16 %v5110, %v5108
        %v5307 = vpack.c.b16 %v5113, %v5111
        %v5308 = vpack.c.b16 %v5114, %v5112
        %v5309 = vpack.c.b16 %v5117, %v5115
        %v5310 = vpack.c.b16 %v5118, %v5116
        %v5311 = vpack.c.b16 %v5121, %v5119
        %v5312 = vpack.c.b16 %v5122, %v5120
        %v5313 = vpack.c.b16 %v5125, %v5123
        %v5314 = vpack.c.b16 %v5126, %v5124
        %v5315 = vpack.c.b16 %v5129, %v5127
        %v5316 = vpack.c.b16 %v5130, %v5128
        %v5317 = vpack.c.b16 %v5133, %v5131
        %v5318 = vpack.c.b16 %v5134, %v5132
        %v5319 = vpack.c.b16 %v5137, %v5135
        %v5320 = vpack.c.b16 %v5138, %v5136
        %v5321 = vpack.c.b16 %v5141, %v5139
        %v5322 = vpack.c.b16 %v5142, %v5140
        %v5323 = vpack.c.b16 %v5145, %v5143
        %v5324 = vpack.c.b16 %v5146, %v5144
        %v5325 = vpack.c.b16 %v5149, %v5147
        %v5326 = vpack.c.b16 %v5150, %v5148
        %v5327 = vpack.c.b16 %v5153, %v5151
        %v5328 = vpack.c.b16 %v5154, %v5152
        %v5329 = vpack.c.b16 %v5157, %v5155
        %v5330 = vpack.c.b16 %v5158, %v5156
        %v5331 = vpack.c.b16 %v5161, %v5159
        %v5332 = vpack.c.b16 %v5162, %v5160
        %v5333 = vpack.c.b16 %v5165, %v5163
        %v5334 = vpack.c.b16 %v5166, %v5164
        %v5335 = vpack.c.b16 %v5169, %v5167
        %v5336 = vpack.c.b16 %v5170, %v5168
        %v5337 = vpack.c.b16 %v5173, %v5171
        %v5338 = vpack.c.b16 %v5174, %v5172
        %v5339 = vpack.c.b16 %v5177, %v5175
        %v5340 = vpack.c.b16 %v5178, %v5176
        %v5341 = vpack.c.b16 %v5181, %v5179
        %v5342 = vpack.c.b16 %v5182, %v5180
        %v5343 = vpack.c.b16 %v5185, %v5183
        %v5344 = vpack.c.b16 %v5186, %v5184
        %v5345 = vpack.c.b16 %v5189, %v5187
        %v5346 = vpack.c.b16 %v5190, %v5188
        %v5347 = vpack.c.b16 %v5193, %v5191
        %v5348 = vpack.c.b16 %v5194, %v5192
        %v5349 = vpack.c.b16 %v5197, %v5195
        %v5350 = vpack.c.b16 %v5198, %v5196
        %v5351 = vpack.c.b16 %v5201, %v5199
        %v5352 = vpack.c.b16 %v5202, %v5200
        %v5353 = vpack.c.b16 %v5205, %v5203
        %v5354 = vpack.c.b16 %v5206, %v5204
        %v5355 = vpack.c.b16 %v5209, %v5207
        %v5356 = vpack.c.b16 %v5210, %v5208
        %v5357 = vpack.c.b16 %v5213, %v5211
        %v5358 = vpack.c.b16 %v5214, %v5212
        %v5359 = vpack.c.b16 %v5217, %v5215
        %v5360 = vpack.c.b16 %v5218, %v5216
        %v5361 = vpack.c.b16 %v5221, %v5219
        %v5362 = vpack.c.b16 %v5222, %v5220
        %v5363 = vpack.c.b16 %v5225, %v5223
        %v5364 = vpack.c.b16 %v5226, %v5224
        %v5365 = vpack.c.b16 %v5229, %v5227
        %v5366 = vpack.c.b16 %v5230, %v5228
        %v5367 = vpack.c.b16 %v5233, %v5231
        %v5368 = vpack.c.b16 %v5234, %v5232
        %v5369 = vpack.c.b16 %v5237, %v5235
        %v5370 = vpack.c.b16 %v5238, %v5236
        %v5371 = vpack.c.b16 %v5241, %v5239
        %v5372 = vpack.c.b16 %v5242, %v5240
        %v5373 = vpack.c.b16 %v5245, %v5243
        %v5374 = vpack.c.b16 %v5246, %v5244
        %5503 = vmatprep.subr.bf16.mxu0 %v5262
        %5504 = vmatpush1.bf16.msra.mxu0 %v5261
        %5505 = vmatprep.subr.bf16.mxu0 %v5260
        %5506 = vmatpush1.bf16.msra.mxu0 %v5259
        %5507 = vmatprep.subr.bf16.mxu0 %v5258
        %5508 = vmatpush1.bf16.msra.mxu0 %v5257
        %5509 = vmatprep.subr.bf16.mxu0 %v5256
        %5510 = vmatpush1.bf16.msra.mxu0 %v5255
        %5511 = vmatprep.subr.bf16.mxu0 %v5254
        %5512 = vmatpush1.bf16.msra.mxu0 %v5253
        %5513 = vmatprep.subr.bf16.mxu0 %v5252
        %5514 = vmatpush1.bf16.msra.mxu0 %v5251
        %5515 = vmatprep.subr.bf16.mxu0 %v5250
        %5516 = vmatpush1.bf16.msra.mxu0 %v5249
        %5517 = vmatprep.subr.bf16.mxu0 %v5248
        %5518 = vmatpush1.bf16.msra.mxu0 %v5247
        %5519 = vmatprep.subr.bf16.mxu0 %v5278
        %5520 = vmatpush2.bf16.msra.mxu0 %v5277
        %5521 = vmatprep.subr.bf16.mxu0 %v5276
        %5522 = vmatpush2.bf16.msra.mxu0 %v5275
        %5523 = vmatprep.subr.bf16.mxu0 %v5274
        %5524 = vmatpush2.bf16.msra.mxu0 %v5273
        %5525 = vmatprep.subr.bf16.mxu0 %v5272
        %5526 = vmatpush2.bf16.msra.mxu0 %v5271
        %5527 = vmatprep.subr.bf16.mxu0 %v5270
        %5528 = vmatpush2.bf16.msra.mxu0 %v5269
        %5529 = vmatprep.subr.bf16.mxu0 %v5268
        %5530 = vmatpush2.bf16.msra.mxu0 %v5267
        %5531 = vmatprep.subr.bf16.mxu0 %v5266
        %5532 = vmatpush2.bf16.msra.mxu0 %v5265
        %5533 = vmatprep.subr.bf16.mxu0 %v5264
        %5534 = vmatpush2.bf16.msra.mxu0 %v5263
        %5535 = vmatprep.mubr.bf16.mxu0 %v4728
        %5536 = vmatmul.mubr.bf16.gmra.mxu0 %v4727
        %v5537 = vpop.f32.mrf.mxu0
        %v5538 = vadd.f32 0.0, %v5537
        %v5539 = vpop.f32.mrf.mxu0
        %v5540 = vadd.f32 0.0, %v5539
        %v5541 = vpop.f32.mrf.mxu0
        %v5542 = vadd.f32 0.0, %v5541
        %v5543 = vpop.f32.mrf.mxu0
        %v5544 = vadd.f32 0.0, %v5543
        %5545 = vdwg.mxu0
        %5546 = vmatprep.subr.bf16.mxu0 %v5294
        %5547 = vmatpush1.bf16.msra.mxu0 %v5293
        %5548 = vmatprep.subr.bf16.mxu0 %v5292
        %5549 = vmatpush1.bf16.msra.mxu0 %v5291
        %5550 = vmatprep.subr.bf16.mxu0 %v5290
        %5551 = vmatpush1.bf16.msra.mxu0 %v5289
        %5552 = vmatprep.subr.bf16.mxu0 %v5288
        %5553 = vmatpush1.bf16.msra.mxu0 %v5287
        %5554 = vmatprep.subr.bf16.mxu0 %v5286
        %5555 = vmatpush1.bf16.msra.mxu0 %v5285
        %5556 = vmatprep.subr.bf16.mxu0 %v5284
        %5557 = vmatpush1.bf16.msra.mxu0 %v5283
        %5558 = vmatprep.subr.bf16.mxu0 %v5282
        %5559 = vmatpush1.bf16.msra.mxu0 %v5281
        %5560 = vmatprep.subr.bf16.mxu0 %v5280
        %5561 = vmatpush1.bf16.msra.mxu0 %v5279
        %5562 = vmatprep.subr.bf16.mxu0 %v5310
        %5563 = vmatpush2.bf16.msra.mxu0 %v5309
        %5564 = vmatprep.subr.bf16.mxu0 %v5308
        %5565 = vmatpush2.bf16.msra.mxu0 %v5307
        %5566 = vmatprep.subr.bf16.mxu0 %v5306
        %5567 = vmatpush2.bf16.msra.mxu0 %v5305
        %5568 = vmatprep.subr.bf16.mxu0 %v5304
        %5569 = vmatpush2.bf16.msra.mxu0 %v5303
        %5570 = vmatprep.subr.bf16.mxu0 %v5302
        %5571 = vmatpush2.bf16.msra.mxu0 %v5301
        %5572 = vmatprep.subr.bf16.mxu0 %v5300
        %5573 = vmatpush2.bf16.msra.mxu0 %v5299
        %5574 = vmatprep.subr.bf16.mxu0 %v5298
        %5575 = vmatpush2.bf16.msra.mxu0 %v5297
        %5576 = vmatprep.subr.bf16.mxu0 %v5296
        %5577 = vmatpush2.bf16.msra.mxu0 %v5295
        %5578 = vmatprep.mubr.bf16.mxu0 %v4730
        %5579 = vmatmul.mubr.bf16.gmra.mxu0 %v4729
        %v5580 = vpop.f32.mrf.mxu0
        %v5581 = vadd.f32 %v5538, %v5580
        %v5582 = vpop.f32.mrf.mxu0
        %v5583 = vadd.f32 %v5540, %v5582
        %v5584 = vpop.f32.mrf.mxu0
        %v5585 = vadd.f32 %v5542, %v5584
        %v5586 = vpop.f32.mrf.mxu0
        %v5587 = vadd.f32 %v5544, %v5586
        %5588 = vdwg.mxu0
        %5589 = vmatprep.subr.bf16.mxu0 %v5326
        %5590 = vmatpush1.bf16.msra.mxu0 %v5325
        %5591 = vmatprep.subr.bf16.mxu0 %v5324
        %5592 = vmatpush1.bf16.msra.mxu0 %v5323
        %5593 = vmatprep.subr.bf16.mxu0 %v5322
        %5594 = vmatpush1.bf16.msra.mxu0 %v5321
        %5595 = vmatprep.subr.bf16.mxu0 %v5320
        %5596 = vmatpush1.bf16.msra.mxu0 %v5319
        %5597 = vmatprep.subr.bf16.mxu0 %v5318
        %5598 = vmatpush1.bf16.msra.mxu0 %v5317
        %5599 = vmatprep.subr.bf16.mxu0 %v5316
        %5600 = vmatpush1.bf16.msra.mxu0 %v5315
        %5601 = vmatprep.subr.bf16.mxu0 %v5314
        %5602 = vmatpush1.bf16.msra.mxu0 %v5313
        %5603 = vmatprep.subr.bf16.mxu0 %v5312
        %5604 = vmatpush1.bf16.msra.mxu0 %v5311
        %5605 = vmatprep.subr.bf16.mxu0 %v5342
        %5606 = vmatpush2.bf16.msra.mxu0 %v5341
        %5607 = vmatprep.subr.bf16.mxu0 %v5340
        %5608 = vmatpush2.bf16.msra.mxu0 %v5339
        %5609 = vmatprep.subr.bf16.mxu0 %v5338
        %5610 = vmatpush2.bf16.msra.mxu0 %v5337
        %5611 = vmatprep.subr.bf16.mxu0 %v5336
        %5612 = vmatpush2.bf16.msra.mxu0 %v5335
        %5613 = vmatprep.subr.bf16.mxu0 %v5334
        %5614 = vmatpush2.bf16.msra.mxu0 %v5333
        %5615 = vmatprep.subr.bf16.mxu0 %v5332
        %5616 = vmatpush2.bf16.msra.mxu0 %v5331
        %5617 = vmatprep.subr.bf16.mxu0 %v5330
        %5618 = vmatpush2.bf16.msra.mxu0 %v5329
        %5619 = vmatprep.subr.bf16.mxu0 %v5328
        %5620 = vmatpush2.bf16.msra.mxu0 %v5327
        %5621 = vmatprep.mubr.bf16.mxu0 %v4732
        %5622 = vmatmul.mubr.bf16.gmra.mxu0 %v4731
        %v5623 = vpop.f32.mrf.mxu0
        %v5624 = vadd.f32 %v5581, %v5623
        %v5625 = vpop.f32.mrf.mxu0
        %v5626 = vadd.f32 %v5583, %v5625
        %v5627 = vpop.f32.mrf.mxu0
        %v5628 = vadd.f32 %v5585, %v5627
        %v5629 = vpop.f32.mrf.mxu0
        %v5630 = vadd.f32 %v5587, %v5629
        %5631 = vdwg.mxu0
        %5632 = vmatprep.subr.bf16.mxu0 %v5358
        %5633 = vmatpush1.bf16.msra.mxu0 %v5357
        %5634 = vmatprep.subr.bf16.mxu0 %v5356
        %5635 = vmatpush1.bf16.msra.mxu0 %v5355
        %5636 = vmatprep.subr.bf16.mxu0 %v5354
        %5637 = vmatpush1.bf16.msra.mxu0 %v5353
        %5638 = vmatprep.subr.bf16.mxu0 %v5352
        %5639 = vmatpush1.bf16.msra.mxu0 %v5351
        %5640 = vmatprep.subr.bf16.mxu0 %v5350
        %5641 = vmatpush1.bf16.msra.mxu0 %v5349
        %5642 = vmatprep.subr.bf16.mxu0 %v5348
        %5643 = vmatpush1.bf16.msra.mxu0 %v5347
        %5644 = vmatprep.subr.bf16.mxu0 %v5346
        %5645 = vmatpush1.bf16.msra.mxu0 %v5345
        %5646 = vmatprep.subr.bf16.mxu0 %v5344
        %5647 = vmatpush1.bf16.msra.mxu0 %v5343
        %5648 = vmatprep.subr.bf16.mxu0 %v5374
        %5649 = vmatpush2.bf16.msra.mxu0 %v5373
        %5650 = vmatprep.subr.bf16.mxu0 %v5372
        %5651 = vmatpush2.bf16.msra.mxu0 %v5371
        %5652 = vmatprep.subr.bf16.mxu0 %v5370
        %5653 = vmatpush2.bf16.msra.mxu0 %v5369
        %5654 = vmatprep.subr.bf16.mxu0 %v5368
        %5655 = vmatpush2.bf16.msra.mxu0 %v5367
        %5656 = vmatprep.subr.bf16.mxu0 %v5366
        %5657 = vmatpush2.bf16.msra.mxu0 %v5365
        %5658 = vmatprep.subr.bf16.mxu0 %v5364
        %5659 = vmatpush2.bf16.msra.mxu0 %v5363
        %5660 = vmatprep.subr.bf16.mxu0 %v5362
        %5661 = vmatpush2.bf16.msra.mxu0 %v5361
        %5662 = vmatprep.subr.bf16.mxu0 %v5360
        %5663 = vmatpush2.bf16.msra.mxu0 %v5359
        %5664 = vmatprep.mubr.bf16.mxu0 %v4734
        %5665 = vmatmul.mubr.bf16.gmra.mxu0 %v4733
        %v5666 = vpop.f32.mrf.mxu0
        %v5667 = vadd.f32 %v5624, %v5666
        %v5668 = vpop.f32.mrf.mxu0
        %v5669 = vadd.f32 %v5626, %v5668
        %v5670 = vpop.f32.mrf.mxu0
        %v5671 = vadd.f32 %v5628, %v5670
        %v5672 = vpop.f32.mrf.mxu0
        %v5673 = vadd.f32 %v5630, %v5672
        %5674 = vdwg.mxu0
        %v5675 = vadd.f32 %v3653, %v5667
        %v5676 = vadd.f32 %v3654, %v5669
        %v5677 = vadd.f32 %v3655, %v5671
        %v5678 = vadd.f32 %v3656, %v5673
        %5679 = vst [vmem:[%s693] sm:$0xff] %v5675
        %5680 = vst [vmem:[%s693 + $0x8] sm:$0xff] %v5676
        %5681 = vst [vmem:[%s693 + $0x10] sm:$0xff] %v5677
        %5682 = vst [vmem:[%s693 + $0x18] sm:$0xff] %v5678
        %s5683 = sand.u32 %s373, 1
        %s5684 = scalar_lea.sflag [#allocation4], %s5683
        %s5685 = sand.u32 %s373, 1
        %s5686 = smul.addr %s5685, 32
        %s5687 = scalar_lea.vmem [#allocation22], %s5686
        // Predicated region
        $region129: #{tpu_custom_call.1} parent=79 // pred_check
          %p5688 = pneg %p383
        $region130: #{tpu_custom_call.1} parent=79 // pred_check_branch
          %5690 = sbr.rel (%p5688) target = $region132
        $region131: #{tpu_custom_call.1} parent=79 // pred_region
          %s5691 = smul.u32 2, %s40
          %s5693 = ssub.s32 512, 512
          %5694 = vsyncadd %s5684, %s5693
          %s5695 = smul.addr %s5691, 2
          %s5696 = smul.addr %s5695, 128
          %s5697 = scalar_lea.hbm %s15, %s5696
          %s5698 = sshll.u32 %s5687, 4
          %s5699 = int_to_ptr.vmem [resolvable:$true] %s5698
          %5704 = dma.vmem_to_hbm [thread:$0]  %s5699, 512, %s5697, %s5684, 256, 256, 16
        $region132: #{tpu_custom_call.1} parent=79 // pred_fallthru
          _
      $region80: #{tpu_custom_call.1} parent=5 // pred_fallthru
        _
      %p5705 = scmp.le.s32.totalorder 2, %s35
      // Predicated region
      $region133: #{tpu_custom_call.1} parent=5 // pred_check
        %p5706 = pneg %p5705
      $region134: #{tpu_custom_call.1} parent=5 // pred_check_branch
        %5708 = sbr.rel (%p5706) target = $region136
      $region135: #{tpu_custom_call.1} parent=5 // pred_region
        %s5709 = ssub.s32 %s35, 2
        // Predicated region
        $region137: #{tpu_custom_call.1} parent=135 // pred_check
          %p5710 = pneg %p389
        $region138: #{tpu_custom_call.1} parent=135 // pred_check_branch
          %5712 = sbr.rel (%p5710) target = $region140
        $region139: #{tpu_custom_call.1} parent=135 // pred_region
          %s5713 = sand.u32 %s374, 1
          %s5714 = scalar_lea.sflag [#allocation4], %s5713
          %s5715 = sand.u32 %s374, 1
          %s5716 = smul.addr %s5715, 32
          %s5717 = scalar_lea.vmem [#allocation22], %s5716
          %5718 = dma.done %s5714, 512
        $region140: #{tpu_custom_call.1} parent=135 // pred_fallthru
          _
      $region136: #{tpu_custom_call.1} parent=5 // pred_fallthru
        _
    $region6: #{tpu_custom_call.1} parent=1 // loop_footer
      %s39 = sadd.s32 1, %s35
    $region7: #{tpu_custom_call.1} parent=1 // loop_footer_branch
      %34 = sbr.rel target = $region3
    $region8: #{tpu_custom_call.1} parent=1 // loop_exit
      _
    %5719 = vsyncpa [#allocation3], 1
    %s5720 = scalar_lea.sflag [#allocation3], 1
    %5721 = vsyncpa %s5720, 1
    %5722 = vsyncpa [#allocation6], 1
    %s5723 = scalar_lea.sflag [#allocation6], 1
    %5724 = vsyncpa %s5723, 1
    %5725 = vsyncpa [#allocation9], 1
    %5726 = vsyncpa [#allocation12], 1
    %5727 = vsyncpa [#allocation15], 1
    %5728 = vsyncpa [#allocation18], 1
    %5729 = vsyncpa [#allocation21], 1
    %5730 = vsyncpa [#allocation4], 1
    %s5731 = scalar_lea.sflag [#allocation4], 1
    %5732 = vsyncpa %s5731, 1

</llo_original>
